<compile_context>
chip_gen: v6e
topology: v6e:2x2x1
jax: 0.10.0
libtpu: 0.0.40
codegen_flags: <defaults>
</compile_context>

<pallas_src>
import functools

import jax
import jax.numpy as jnp
from jax.experimental import pallas as pl
from jax.experimental.pallas import tpu as pltpu


def _lstm_text_encoder_kernel(x_ref, wih_t_ref, whh_t_ref, b_ref,
                              wfc_t_ref, bfc_ref, out_ref,
                              h_scr, c_scr, xproj_scr, *, seq_len, seq_pad):
    """One time-chunk of the LSTM recurrence.

    x_ref:     (Tc*Bp, E)  time-major-flattened embedded input for this chunk (compute dtype)
    wih_t_ref: (E, 4H)     W_ih pre-transposed (compute dtype)
    whh_t_ref: (H, 4H)     W_hh pre-transposed (compute dtype)
    b_ref:     (1, 4H)     b_ih + b_hh (f32)
    wfc_t_ref: (H, H)      fc weight pre-transposed (compute dtype)
    bfc_ref:   (1, H)      fc bias (f32)
    out_ref:   (Bp, H)     f32 output (written on the last chunk only)
    h_scr/c_scr: VMEM (Bp, H) f32 carried LSTM state across chunks
    xproj_scr:   VMEM (Tc*Bp, 4H) f32 hoisted input projection for this chunk
    """
    Bp, H = out_ref.shape
    Tc = x_ref.shape[0] // Bp
    chunk = pl.program_id(0)
    n_chunks = pl.num_programs(0)

    @pl.when(chunk == 0)
    def _():
        h_scr[...] = jnp.zeros_like(h_scr)
        c_scr[...] = jnp.zeros_like(c_scr)

    # Hoisted, time-independent input projection for the whole chunk:
    #   (Tc*Bp, E) @ (E, 4H) + b  ->  (Tc*Bp, 4H)   (one MXU-efficient bf16 matmul, f32 acc)
    xproj_scr[...] = (
        jnp.dot(x_ref[...], wih_t_ref[...], preferred_element_type=jnp.float32)
        + b_ref[...])

    def step(t, carry):
        h, c = carry
        row0 = pl.multiple_of(t * Bp, Bp)   # sublane-aligned dynamic slice start
        gates = (xproj_scr[pl.ds(row0, Bp), :]
                 + jnp.dot(h.astype(whh_t_ref.dtype), whh_t_ref[...],
                           preferred_element_type=jnp.float32))      # (Bp, 4H) f32
        # PyTorch LSTM gate order: input, forget, cell(g), output.
        i_g = jax.nn.sigmoid(gates[:, 0:H])
        f_g = jax.nn.sigmoid(gates[:, H:2 * H])
        g_g = jnp.tanh(gates[:, 2 * H:3 * H])
        o_g = jax.nn.sigmoid(gates[:, 3 * H:4 * H])
        c_new = f_g * c + i_g * g_g
        h_new = o_g * jnp.tanh(c_new)
        if seq_pad != seq_len:
            # Time-padding steps (t_global >= true seq_len) must not advance the state.
            valid = (chunk * Tc + t) < seq_len
            h_new = jnp.where(valid, h_new, h)
            c_new = jnp.where(valid, c_new, c)
        return (h_new, c_new)

    h_last, c_last = jax.lax.fori_loop(0, Tc, step, (h_scr[...], c_scr[...]),
                                       unroll=True)
    h_scr[...] = h_last
    c_scr[...] = c_last

    @pl.when(chunk == n_chunks - 1)
    def _():
        # Fused fc(last_hidden); dropout is identity in eval mode.
        out = (jnp.dot(h_last.astype(wfc_t_ref.dtype), wfc_t_ref[...],
                       preferred_element_type=jnp.float32)
               + bfc_ref[...])
        out_ref[...] = out.astype(out_ref.dtype)


def _nbytes(shape, dtype):
    n = 1
    for d in shape:
        n *= int(d)
    return n * jnp.dtype(dtype).itemsize


def text_encoder_pallas(tokens, params, *, compute_dtype=jnp.bfloat16):
    """tokens: (B, T) int32.  Returns (B, H) float32 (eval-mode forward)."""
    emb_table = params["embedding"]
    w_ih_t, w_hh_t, b_sum = params["w_ih_t"], params["w_hh_t"], params["b_sum"]
    w_fc_t, b_fc = params["w_fc_t"], params["b_fc"]

    B, T = tokens.shape
    E = emb_table.shape[1]
    H = w_hh_t.shape[0]
    G = 4 * H

    # Pad batch rows to full (packed) sublanes: 16 for bf16, 8 for f32.
    row_align = 16 if jnp.dtype(compute_dtype).itemsize < 4 else 8
    Bp = ((B + row_align - 1) // row_align) * row_align
    Bp = max(Bp, row_align)

    # Time chunking: small chunk -> small, T-independent VMEM footprint; the grid
    # axis covers the full sequence and lets Pallas pipeline the x-chunk DMAs.
    Tc = 8 if T <= 8 else 16
    T_pad = ((T + Tc - 1) // Tc) * Tc
    n_chunks = T_pad // Tc

    # Embedding gather directly in time-major order (no transpose of the big
    # (B,T,E) tensor; only the tiny int index matrix is transposed/padded).
    tok_pad = jnp.pad(tokens, ((0, Bp - B), (0, T_pad - T)))        # (Bp, T_pad), pad tok = 0
    embedded = jnp.take(emb_table, jnp.transpose(tok_pad), axis=0)  # (T_pad, Bp, E)
    x2d = embedded.reshape(T_pad * Bp, E).astype(compute_dtype)     # (T_pad*Bp, E)

    wih_t = w_ih_t.astype(compute_dtype)
    whh_t = w_hh_t.astype(compute_dtype)
    wfc_t = w_fc_t.astype(compute_dtype)

    # VMEM budget: per-invocation working set (x chunk double-buffered) + headroom,
    # clamped to this generation's physical VMEM minus ~8 MiB.
    vmem_needed = (
        2 * _nbytes((Tc * Bp, E), compute_dtype)                   # x chunk, double-buffered
        + _nbytes((E, G), compute_dtype) + _nbytes((H, G), compute_dtype)
        + _nbytes((H, H), compute_dtype)
        + _nbytes((1, G), jnp.float32) + _nbytes((1, H), jnp.float32)
        + _nbytes((Bp, H), jnp.float32)                            # out block
        + 2 * _nbytes((Bp, H), jnp.float32)                        # h/c scratch
        + _nbytes((Tc * Bp, G), jnp.float32))                      # xproj scratch
    try:
        vmem_cap = int(getattr(pltpu.get_tpu_info(), "vmem_capacity_bytes", 64 << 20))
    except Exception:
        vmem_cap = 64 << 20
    vmem_limit = int(min(max(2 * vmem_needed + (4 << 20), 16 << 20),
                         max(vmem_cap - (8 << 20), 16 << 20)))

    kernel = functools.partial(_lstm_text_encoder_kernel, seq_len=T, seq_pad=T_pad)

    out = pl.pallas_call(
        kernel,
        out_shape=jax.ShapeDtypeStruct((Bp, H), jnp.float32),
        grid=(n_chunks,),
        in_specs=[
            pl.BlockSpec((Tc * Bp, E), lambda i: (i, 0)),   # x chunk (time-major, flattened)
            pl.BlockSpec((E, G), lambda i: (0, 0)),         # W_ih^T
            pl.BlockSpec((H, G), lambda i: (0, 0)),         # W_hh^T
            pl.BlockSpec((1, G), lambda i: (0, 0)),         # b_ih + b_hh
            pl.BlockSpec((H, H), lambda i: (0, 0)),         # W_fc^T
            pl.BlockSpec((1, H), lambda i: (0, 0)),         # b_fc
        ],
        out_specs=pl.BlockSpec((Bp, H), lambda i: (0, 0)),  # resident accumulator-style output
        scratch_shapes=[
            pltpu.VMEM((Bp, H), jnp.float32),               # h carry
            pltpu.VMEM((Bp, H), jnp.float32),               # c carry
            pltpu.VMEM((Tc * Bp, G), jnp.float32),          # hoisted input projection (chunk)
        ],
        compiler_params=pltpu.CompilerParams(
            dimension_semantics=("arbitrary",),             # strictly serial recurrence
            vmem_limit_bytes=vmem_limit),
    )(x2d, wih_t, whh_t, b_sum, wfc_t, b_fc)

    return out[:B]


def text_encoder_ref(tokens, params):
    """Pure-JAX f32 reference of the same forward pass (eval mode)."""
    emb_table = params["embedding"]
    w_ih_t, w_hh_t, b_sum = params["w_ih_t"], params["w_hh_t"], params["b_sum"]
    w_fc_t, b_fc = params["w_fc_t"], params["b_fc"]
    B, T = tokens.shape
    H = w_hh_t.shape[0]
    x = jnp.take(emb_table, tokens, axis=0)   # (B, T, E)

    def step(carry, x_t):
        h, c = carry
        gates = x_t @ w_ih_t + h @ w_hh_t + b_sum[0]
        i = jax.nn.sigmoid(gates[:, 0:H])
        f = jax.nn.sigmoid(gates[:, H:2 * H])
        g = jnp.tanh(gates[:, 2 * H:3 * H])
        o = jax.nn.sigmoid(gates[:, 3 * H:4 * H])
        c = f * c + i * g
        h = o * jnp.tanh(c)
        return (h, c), None

    h0 = jnp.zeros((B, H), jnp.float32)
    c0 = jnp.zeros((B, H), jnp.float32)
    (h_last, _), _ = jax.lax.scan(step, (h0, c0), jnp.transpose(x, (1, 0, 2)))
    return h_last @ w_fc_t + b_fc[0]


def make_params(key, vocab_size, embedding_dim, hidden_dim):
    ks = jax.random.split(key, 7)
    emb = 0.1 * jax.random.normal(ks[0], (vocab_size, embedding_dim), jnp.float32)
    emb = emb.at[0].set(0.0)                              # padding_idx=0
    w_ih = 0.1 * jax.random.normal(ks[1], (4 * hidden_dim, embedding_dim), jnp.float32)
    w_hh = 0.1 * jax.random.normal(ks[2], (4 * hidden_dim, hidden_dim), jnp.float32)
    b_ih = 0.1 * jax.random.normal(ks[3], (4 * hidden_dim,), jnp.float32)
    b_hh = 0.1 * jax.random.normal(ks[4], (4 * hidden_dim,), jnp.float32)
    w_fc = 0.1 * jax.random.normal(ks[5], (hidden_dim, hidden_dim), jnp.float32)
    b_fc = 0.1 * jax.random.normal(ks[6], (hidden_dim,), jnp.float32)
    return {
        "embedding": emb,
        "w_ih_t": jnp.transpose(w_ih),       # (E, 4H)  pre-transposed
        "w_hh_t": jnp.transpose(w_hh),       # (H, 4H)  pre-transposed
        "b_sum": (b_ih + b_hh)[None, :],     # (1, 4H)
        "w_fc_t": jnp.transpose(w_fc),       # (H, H)   pre-transposed
        "b_fc": b_fc[None, :],               # (1, H)
    }


if __name__ == "__main__":
    # Module defaults: embedding_dim=128, hidden_dim=256; small demo batch/seq.
    VOCAB, EMB, HID = 50, 128, 256
    B, T = 2, 8

    key = jax.random.PRNGKey(0)
    k_tok, k_par = jax.random.split(key)
    tokens = jax.random.randint(k_tok, (B, T), 0, VOCAB, dtype=jnp.int32)
    params = make_params(k_par, VOCAB, EMB, HID)

    out = text_encoder_pallas(tokens, params)           # bf16 MXU path, f32 accumulate
    out = jax.block_until_ready(out)

    ref = text_encoder_ref(tokens, params)
    assert out.shape == (B, HID)
    # bf16 inputs/weights (f32 accumulation + f32 gate math) -> relaxed tolerance.
    assert jnp.allclose(out, ref, atol=2.5e-2, rtol=2.5e-2), "mismatch vs reference"

    print("KERNEL_OK")
</pallas_src>

<mosaic_0001>
module attributes {stable_mosaic.version = 11 : i64} {
  func.func @_lstm_text_encoder_kernel(%arg0: i32, %arg1: memref<128x128xbf16, #tpu.memory_space<vmem>>, %arg2: memref<128x1024xbf16, #tpu.memory_space<vmem>>, %arg3: memref<256x1024xbf16, #tpu.memory_space<vmem>>, %arg4: memref<1x1024xf32, #tpu.memory_space<vmem>>, %arg5: memref<256x256xbf16, #tpu.memory_space<vmem>>, %arg6: memref<1x256xf32, #tpu.memory_space<vmem>>, %arg7: memref<16x256xf32, #tpu.memory_space<vmem>>, %arg8: memref<16x256xf32, #tpu.memory_space<vmem>>, %arg9: memref<16x256xf32, #tpu.memory_space<vmem>>, %arg10: memref<128x1024xf32, #tpu.memory_space<vmem>>) attributes {dimension_semantics = [#tpu.dimension_semantics<arbitrary>], iteration_bounds = array<i64: 1>, scalar_prefetch = 0 : i64, scratch_operands = 3 : i64, tpu.core_type = #tpu.core_type<tc>, window_params = [{transform_indices = @transform_0, window_bounds = array<i64: 128, 128>}, {pipeline_mode = #tpu.pipeline_mode<synchronous>, transform_indices = @transform_1, window_bounds = array<i64: 128, 1024>}, {pipeline_mode = #tpu.pipeline_mode<synchronous>, transform_indices = @transform_2, window_bounds = array<i64: 256, 1024>}, {pipeline_mode = #tpu.pipeline_mode<synchronous>, transform_indices = @transform_3, window_bounds = array<i64: 1, 1024>}, {pipeline_mode = #tpu.pipeline_mode<synchronous>, transform_indices = @transform_4, window_bounds = array<i64: 256, 256>}, {pipeline_mode = #tpu.pipeline_mode<synchronous>, transform_indices = @transform_5, window_bounds = array<i64: 1, 256>}, {pipeline_mode = #tpu.pipeline_mode<synchronous>, transform_indices = @transform_6, window_bounds = array<i64: 16, 256>}]} {
    %c0_i32 = arith.constant 0 : i32
    %0 = arith.cmpi eq, %arg0, %c0_i32 : i32
    %1 = arith.extui %0 : i1 to i32
    %c0_i32_0 = arith.constant 0 : i32
    %2 = arith.cmpi ne, %1, %c0_i32_0 : i32
    scf.if %2 {
      %cst_82 = arith.constant 0.000000e+00 : f32
      %281 = vector.broadcast %cst_82 : f32 to vector<16x256xf32>
      %c0_83 = arith.constant 0 : index
      %c0_84 = arith.constant 0 : index
      %282 = vector.load %arg8[%c0_83, %c0_84] : memref<16x256xf32, #tpu.memory_space<vmem>>, vector<16x256xf32>
      tpu.vector_store %arg8[%c0_83, %c0_84], %281 {strides = array<i32>} : memref<16x256xf32, #tpu.memory_space<vmem>>, vector<16x256xf32>,
      %cst_85 = arith.constant 0.000000e+00 : f32
      %283 = vector.broadcast %cst_85 : f32 to vector<16x256xf32>
      %c0_86 = arith.constant 0 : index
      %c0_87 = arith.constant 0 : index
      %284 = vector.load %arg9[%c0_86, %c0_87] : memref<16x256xf32, #tpu.memory_space<vmem>>, vector<16x256xf32>
      tpu.vector_store %arg9[%c0_86, %c0_87], %283 {strides = array<i32>} : memref<16x256xf32, #tpu.memory_space<vmem>>, vector<16x256xf32>,
    } else {
    }
    %c0 = arith.constant 0 : index
    %c0_1 = arith.constant 0 : index
    %3 = vector.load %arg1[%c0, %c0_1] : memref<128x128xbf16, #tpu.memory_space<vmem>>, vector<128x128xbf16>
    %c0_2 = arith.constant 0 : index
    %c0_3 = arith.constant 0 : index
    %4 = vector.load %arg2[%c0_2, %c0_3] : memref<128x1024xbf16, #tpu.memory_space<vmem>>, vector<128x1024xbf16>
    %cst = arith.constant dense<0.000000e+00> : vector<128x1024xf32>
    %5 = tpu.matmul %3, %4, %cst {dimension_numbers = #tpu.dot_dimension_numbers<[1], [0], [0], [1], [0, 0, 1, 1], [], []>} : vector<128x128xbf16>, vector<128x1024xbf16>, vector<128x1024xf32> -> vector<128x1024xf32>
    %c0_4 = arith.constant 0 : index
    %c0_5 = arith.constant 0 : index
    %6 = vector.load %arg4[%c0_4, %c0_5] : memref<1x1024xf32, #tpu.memory_space<vmem>>, vector<1x1024xf32>
    %7 = vector.broadcast %6 : vector<1x1024xf32> to vector<128x1024xf32>
    %8 = arith.addf %5, %7 : vector<128x1024xf32>
    %c0_6 = arith.constant 0 : index
    %c0_7 = arith.constant 0 : index
    %9 = vector.load %arg10[%c0_6, %c0_7] : memref<128x1024xf32, #tpu.memory_space<vmem>>, vector<128x1024xf32>
    tpu.vector_store %arg10[%c0_6, %c0_7], %8 {strides = array<i32>} : memref<128x1024xf32, #tpu.memory_space<vmem>>, vector<128x1024xf32>,
    %c0_8 = arith.constant 0 : index
    %c0_9 = arith.constant 0 : index
    %10 = vector.load %arg8[%c0_8, %c0_9] : memref<16x256xf32, #tpu.memory_space<vmem>>, vector<16x256xf32>
    %c0_10 = arith.constant 0 : index
    %c0_11 = arith.constant 0 : index
    %11 = vector.load %arg9[%c0_10, %c0_11] : memref<16x256xf32, #tpu.memory_space<vmem>>, vector<16x256xf32>
    %c0_i32_12 = arith.constant 0 : i32
    %c16_i32 = arith.constant 16 : i32
    %12 = arith.muli %c0_i32_12, %c16_i32 : i32
    %13 = tpu.assume_multiple %12, 16 : i32
    %14 = arith.index_cast %13 : i32 to index
    %c0_13 = arith.constant 0 : index
    %15 = vector.load %arg10[%14, %c0_13] : memref<128x1024xf32, #tpu.memory_space<vmem>>, vector<16x1024xf32>
    %16 = arith.truncf %10 : vector<16x256xf32> to vector<16x256xbf16>
    %c0_14 = arith.constant 0 : index
    %c0_15 = arith.constant 0 : index
    %17 = vector.load %arg3[%c0_14, %c0_15] : memref<256x1024xbf16, #tpu.memory_space<vmem>>, vector<256x1024xbf16>
    %cst_16 = arith.constant dense<0.000000e+00> : vector<16x1024xf32>
    %18 = tpu.matmul %16, %17, %cst_16 {dimension_numbers = #tpu.dot_dimension_numbers<[1], [0], [0], [1], [0, 0, 1, 1], [], []>} : vector<16x256xbf16>, vector<256x1024xbf16>, vector<16x1024xf32> -> vector<16x1024xf32>
    %19 = arith.addf %15, %18 : vector<16x1024xf32>
    %20 = vector.extract_strided_slice %19 {offsets = [0, 0], sizes = [16, 256], strides = [1, 1]} : vector<16x1024xf32> to vector<16x256xf32>
    %21 = arith.negf %20 : vector<16x256xf32>
    %22 = math.exp %21 : vector<16x256xf32>
    %cst_17 = arith.constant 1.000000e+00 : f32
    %23 = vector.broadcast %cst_17 : f32 to vector<16x256xf32>
    %24 = arith.addf %23, %22 : vector<16x256xf32>
    %25 = arith.divf %23, %24 : vector<16x256xf32>
    %26 = vector.extract_strided_slice %19 {offsets = [0, 256], sizes = [16, 256], strides = [1, 1]} : vector<16x1024xf32> to vector<16x256xf32>
    %27 = arith.negf %26 : vector<16x256xf32>
    %28 = math.exp %27 : vector<16x256xf32>
    %cst_18 = arith.constant 1.000000e+00 : f32
    %29 = vector.broadcast %cst_18 : f32 to vector<16x256xf32>
    %30 = arith.addf %29, %28 : vector<16x256xf32>
    %31 = arith.divf %29, %30 : vector<16x256xf32>
    %32 = vector.extract_strided_slice %19 {offsets = [0, 512], sizes = [16, 256], strides = [1, 1]} : vector<16x1024xf32> to vector<16x256xf32>
    %33 = math.tanh %32 : vector<16x256xf32>
    %34 = vector.extract_strided_slice %19 {offsets = [0, 768], sizes = [16, 256], strides = [1, 1]} : vector<16x1024xf32> to vector<16x256xf32>
    %35 = arith.negf %34 : vector<16x256xf32>
    %36 = math.exp %35 : vector<16x256xf32>
    %cst_19 = arith.constant 1.000000e+00 : f32
    %37 = vector.broadcast %cst_19 : f32 to vector<16x256xf32>
    %38 = arith.addf %37, %36 : vector<16x256xf32>
    %39 = arith.divf %37, %38 : vector<16x256xf32>
    %40 = arith.mulf %31, %11 : vector<16x256xf32>
    %41 = arith.mulf %25, %33 : vector<16x256xf32>
    %42 = arith.addf %40, %41 : vector<16x256xf32>
    %43 = math.tanh %42 : vector<16x256xf32>
    %44 = arith.mulf %39, %43 : vector<16x256xf32>
    %c1_i32 = arith.constant 1 : i32
    %c16_i32_20 = arith.constant 16 : i32
    %45 = arith.muli %c1_i32, %c16_i32_20 : i32
    %46 = tpu.assume_multiple %45, 16 : i32
    %47 = arith.index_cast %46 : i32 to index
    %c0_21 = arith.constant 0 : index
    %48 = vector.load %arg10[%47, %c0_21] : memref<128x1024xf32, #tpu.memory_space<vmem>>, vector<16x1024xf32>
    %49 = arith.truncf %44 : vector<16x256xf32> to vector<16x256xbf16>
    %c0_22 = arith.constant 0 : index
    %c0_23 = arith.constant 0 : index
    %50 = vector.load %arg3[%c0_22, %c0_23] : memref<256x1024xbf16, #tpu.memory_space<vmem>>, vector<256x1024xbf16>
    %cst_24 = arith.constant dense<0.000000e+00> : vector<16x1024xf32>
    %51 = tpu.matmul %49, %50, %cst_24 {dimension_numbers = #tpu.dot_dimension_numbers<[1], [0], [0], [1], [0, 0, 1, 1], [], []>} : vector<16x256xbf16>, vector<256x1024xbf16>, vector<16x1024xf32> -> vector<16x1024xf32>
    %52 = arith.addf %48, %51 : vector<16x1024xf32>
    %53 = vector.extract_strided_slice %52 {offsets = [0, 0], sizes = [16, 256], strides = [1, 1]} : vector<16x1024xf32> to vector<16x256xf32>
    %54 = arith.negf %53 : vector<16x256xf32>
    %55 = math.exp %54 : vector<16x256xf32>
    %cst_25 = arith.constant 1.000000e+00 : f32
    %56 = vector.broadcast %cst_25 : f32 to vector<16x256xf32>
    %57 = arith.addf %56, %55 : vector<16x256xf32>
    %58 = arith.divf %56, %57 : vector<16x256xf32>
    %59 = vector.extract_strided_slice %52 {offsets = [0, 256], sizes = [16, 256], strides = [1, 1]} : vector<16x1024xf32> to vector<16x256xf32>
    %60 = arith.negf %59 : vector<16x256xf32>
    %61 = math.exp %60 : vector<16x256xf32>
    %cst_26 = arith.constant 1.000000e+00 : f32
    %62 = vector.broadcast %cst_26 : f32 to vector<16x256xf32>
    %63 = arith.addf %62, %61 : vector<16x256xf32>
    %64 = arith.divf %62, %63 : vector<16x256xf32>
    %65 = vector.extract_strided_slice %52 {offsets = [0, 512], sizes = [16, 256], strides = [1, 1]} : vector<16x1024xf32> to vector<16x256xf32>
    %66 = math.tanh %65 : vector<16x256xf32>
    %67 = vector.extract_strided_slice %52 {offsets = [0, 768], sizes = [16, 256], strides = [1, 1]} : vector<16x1024xf32> to vector<16x256xf32>
    %68 = arith.negf %67 : vector<16x256xf32>
    %69 = math.exp %68 : vector<16x256xf32>
    %cst_27 = arith.constant 1.000000e+00 : f32
    %70 = vector.broadcast %cst_27 : f32 to vector<16x256xf32>
    %71 = arith.addf %70, %69 : vector<16x256xf32>
    %72 = arith.divf %70, %71 : vector<16x256xf32>
    %73 = arith.mulf %64, %42 : vector<16x256xf32>
    %74 = arith.mulf %58, %66 : vector<16x256xf32>
    %75 = arith.addf %73, %74 : vector<16x256xf32>
    %76 = math.tanh %75 : vector<16x256xf32>
    %77 = arith.mulf %72, %76 : vector<16x256xf32>
    %c2_i32 = arith.constant 2 : i32
    %c16_i32_28 = arith.constant 16 : i32
    %78 = arith.muli %c2_i32, %c16_i32_28 : i32
    %79 = tpu.assume_multiple %78, 16 : i32
    %80 = arith.index_cast %79 : i32 to index
    %c0_29 = arith.constant 0 : index
    %81 = vector.load %arg10[%80, %c0_29] : memref<128x1024xf32, #tpu.memory_space<vmem>>, vector<16x1024xf32>
    %82 = arith.truncf %77 : vector<16x256xf32> to vector<16x256xbf16>
    %c0_30 = arith.constant 0 : index
    %c0_31 = arith.constant 0 : index
    %83 = vector.load %arg3[%c0_30, %c0_31] : memref<256x1024xbf16, #tpu.memory_space<vmem>>, vector<256x1024xbf16>
    %cst_32 = arith.constant dense<0.000000e+00> : vector<16x1024xf32>
    %84 = tpu.matmul %82, %83, %cst_32 {dimension_numbers = #tpu.dot_dimension_numbers<[1], [0], [0], [1], [0, 0, 1, 1], [], []>} : vector<16x256xbf16>, vector<256x1024xbf16>, vector<16x1024xf32> -> vector<16x1024xf32>
    %85 = arith.addf %81, %84 : vector<16x1024xf32>
    %86 = vector.extract_strided_slice %85 {offsets = [0, 0], sizes = [16, 256], strides = [1, 1]} : vector<16x1024xf32> to vector<16x256xf32>
    %87 = arith.negf %86 : vector<16x256xf32>
    %88 = math.exp %87 : vector<16x256xf32>
    %cst_33 = arith.constant 1.000000e+00 : f32
    %89 = vector.broadcast %cst_33 : f32 to vector<16x256xf32>
    %90 = arith.addf %89, %88 : vector<16x256xf32>
    %91 = arith.divf %89, %90 : vector<16x256xf32>
    %92 = vector.extract_strided_slice %85 {offsets = [0, 256], sizes = [16, 256], strides = [1, 1]} : vector<16x1024xf32> to vector<16x256xf32>
    %93 = arith.negf %92 : vector<16x256xf32>
    %94 = math.exp %93 : vector<16x256xf32>
    %cst_34 = arith.constant 1.000000e+00 : f32
    %95 = vector.broadcast %cst_34 : f32 to vector<16x256xf32>
    %96 = arith.addf %95, %94 : vector<16x256xf32>
    %97 = arith.divf %95, %96 : vector<16x256xf32>
    %98 = vector.extract_strided_slice %85 {offsets = [0, 512], sizes = [16, 256], strides = [1, 1]} : vector<16x1024xf32> to vector<16x256xf32>
    %99 = math.tanh %98 : vector<16x256xf32>
    %100 = vector.extract_strided_slice %85 {offsets = [0, 768], sizes = [16, 256], strides = [1, 1]} : vector<16x1024xf32> to vector<16x256xf32>
    %101 = arith.negf %100 : vector<16x256xf32>
    %102 = math.exp %101 : vector<16x256xf32>
    %cst_35 = arith.constant 1.000000e+00 : f32
    %103 = vector.broadcast %cst_35 : f32 to vector<16x256xf32>
    %104 = arith.addf %103, %102 : vector<16x256xf32>
    %105 = arith.divf %103, %104 : vector<16x256xf32>
    %106 = arith.mulf %97, %75 : vector<16x256xf32>
    %107 = arith.mulf %91, %99 : vector<16x256xf32>
    %108 = arith.addf %106, %107 : vector<16x256xf32>
    %109 = math.tanh %108 : vector<16x256xf32>
    %110 = arith.mulf %105, %109 : vector<16x256xf32>
    %c3_i32 = arith.constant 3 : i32
    %c16_i32_36 = arith.constant 16 : i32
    %111 = arith.muli %c3_i32, %c16_i32_36 : i32
    %112 = tpu.assume_multiple %111, 16 : i32
    %113 = arith.index_cast %112 : i32 to index
    %c0_37 = arith.constant 0 : index
    %114 = vector.load %arg10[%113, %c0_37] : memref<128x1024xf32, #tpu.memory_space<vmem>>, vector<16x1024xf32>
    %115 = arith.truncf %110 : vector<16x256xf32> to vector<16x256xbf16>
    %c0_38 = arith.constant 0 : index
    %c0_39 = arith.constant 0 : index
    %116 = vector.load %arg3[%c0_38, %c0_39] : memref<256x1024xbf16, #tpu.memory_space<vmem>>, vector<256x1024xbf16>
    %cst_40 = arith.constant dense<0.000000e+00> : vector<16x1024xf32>
    %117 = tpu.matmul %115, %116, %cst_40 {dimension_numbers = #tpu.dot_dimension_numbers<[1], [0], [0], [1], [0, 0, 1, 1], [], []>} : vector<16x256xbf16>, vector<256x1024xbf16>, vector<16x1024xf32> -> vector<16x1024xf32>
    %118 = arith.addf %114, %117 : vector<16x1024xf32>
    %119 = vector.extract_strided_slice %118 {offsets = [0, 0], sizes = [16, 256], strides = [1, 1]} : vector<16x1024xf32> to vector<16x256xf32>
    %120 = arith.negf %119 : vector<16x256xf32>
    %121 = math.exp %120 : vector<16x256xf32>
    %cst_41 = arith.constant 1.000000e+00 : f32
    %122 = vector.broadcast %cst_41 : f32 to vector<16x256xf32>
    %123 = arith.addf %122, %121 : vector<16x256xf32>
    %124 = arith.divf %122, %123 : vector<16x256xf32>
    %125 = vector.extract_strided_slice %118 {offsets = [0, 256], sizes = [16, 256], strides = [1, 1]} : vector<16x1024xf32> to vector<16x256xf32>
    %126 = arith.negf %125 : vector<16x256xf32>
    %127 = math.exp %126 : vector<16x256xf32>
    %cst_42 = arith.constant 1.000000e+00 : f32
    %128 = vector.broadcast %cst_42 : f32 to vector<16x256xf32>
    %129 = arith.addf %128, %127 : vector<16x256xf32>
    %130 = arith.divf %128, %129 : vector<16x256xf32>
    %131 = vector.extract_strided_slice %118 {offsets = [0, 512], sizes = [16, 256], strides = [1, 1]} : vector<16x1024xf32> to vector<16x256xf32>
    %132 = math.tanh %131 : vector<16x256xf32>
    %133 = vector.extract_strided_slice %118 {offsets = [0, 768], sizes = [16, 256], strides = [1, 1]} : vector<16x1024xf32> to vector<16x256xf32>
    %134 = arith.negf %133 : vector<16x256xf32>
    %135 = math.exp %134 : vector<16x256xf32>
    %cst_43 = arith.constant 1.000000e+00 : f32
    %136 = vector.broadcast %cst_43 : f32 to vector<16x256xf32>
    %137 = arith.addf %136, %135 : vector<16x256xf32>
    %138 = arith.divf %136, %137 : vector<16x256xf32>
    %139 = arith.mulf %130, %108 : vector<16x256xf32>
    %140 = arith.mulf %124, %132 : vector<16x256xf32>
    %141 = arith.addf %139, %140 : vector<16x256xf32>
    %142 = math.tanh %141 : vector<16x256xf32>
    %143 = arith.mulf %138, %142 : vector<16x256xf32>
    %c4_i32 = arith.constant 4 : i32
    %c16_i32_44 = arith.constant 16 : i32
    %144 = arith.muli %c4_i32, %c16_i32_44 : i32
    %145 = tpu.assume_multiple %144, 16 : i32
    %146 = arith.index_cast %145 : i32 to index
    %c0_45 = arith.constant 0 : index
    %147 = vector.load %arg10[%146, %c0_45] : memref<128x1024xf32, #tpu.memory_space<vmem>>, vector<16x1024xf32>
    %148 = arith.truncf %143 : vector<16x256xf32> to vector<16x256xbf16>
    %c0_46 = arith.constant 0 : index
    %c0_47 = arith.constant 0 : index
    %149 = vector.load %arg3[%c0_46, %c0_47] : memref<256x1024xbf16, #tpu.memory_space<vmem>>, vector<256x1024xbf16>
    %cst_48 = arith.constant dense<0.000000e+00> : vector<16x1024xf32>
    %150 = tpu.matmul %148, %149, %cst_48 {dimension_numbers = #tpu.dot_dimension_numbers<[1], [0], [0], [1], [0, 0, 1, 1], [], []>} : vector<16x256xbf16>, vector<256x1024xbf16>, vector<16x1024xf32> -> vector<16x1024xf32>
    %151 = arith.addf %147, %150 : vector<16x1024xf32>
    %152 = vector.extract_strided_slice %151 {offsets = [0, 0], sizes = [16, 256], strides = [1, 1]} : vector<16x1024xf32> to vector<16x256xf32>
    %153 = arith.negf %152 : vector<16x256xf32>
    %154 = math.exp %153 : vector<16x256xf32>
    %cst_49 = arith.constant 1.000000e+00 : f32
    %155 = vector.broadcast %cst_49 : f32 to vector<16x256xf32>
    %156 = arith.addf %155, %154 : vector<16x256xf32>
    %157 = arith.divf %155, %156 : vector<16x256xf32>
    %158 = vector.extract_strided_slice %151 {offsets = [0, 256], sizes = [16, 256], strides = [1, 1]} : vector<16x1024xf32> to vector<16x256xf32>
    %159 = arith.negf %158 : vector<16x256xf32>
    %160 = math.exp %159 : vector<16x256xf32>
    %cst_50 = arith.constant 1.000000e+00 : f32
    %161 = vector.broadcast %cst_50 : f32 to vector<16x256xf32>
    %162 = arith.addf %161, %160 : vector<16x256xf32>
    %163 = arith.divf %161, %162 : vector<16x256xf32>
    %164 = vector.extract_strided_slice %151 {offsets = [0, 512], sizes = [16, 256], strides = [1, 1]} : vector<16x1024xf32> to vector<16x256xf32>
    %165 = math.tanh %164 : vector<16x256xf32>
    %166 = vector.extract_strided_slice %151 {offsets = [0, 768], sizes = [16, 256], strides = [1, 1]} : vector<16x1024xf32> to vector<16x256xf32>
    %167 = arith.negf %166 : vector<16x256xf32>
    %168 = math.exp %167 : vector<16x256xf32>
    %cst_51 = arith.constant 1.000000e+00 : f32
    %169 = vector.broadcast %cst_51 : f32 to vector<16x256xf32>
    %170 = arith.addf %169, %168 : vector<16x256xf32>
    %171 = arith.divf %169, %170 : vector<16x256xf32>
    %172 = arith.mulf %163, %141 : vector<16x256xf32>
    %173 = arith.mulf %157, %165 : vector<16x256xf32>
    %174 = arith.addf %172, %173 : vector<16x256xf32>
    %175 = math.tanh %174 : vector<16x256xf32>
    %176 = arith.mulf %171, %175 : vector<16x256xf32>
    %c5_i32 = arith.constant 5 : i32
    %c16_i32_52 = arith.constant 16 : i32
    %177 = arith.muli %c5_i32, %c16_i32_52 : i32
    %178 = tpu.assume_multiple %177, 16 : i32
    %179 = arith.index_cast %178 : i32 to index
    %c0_53 = arith.constant 0 : index
    %180 = vector.load %arg10[%179, %c0_53] : memref<128x1024xf32, #tpu.memory_space<vmem>>, vector<16x1024xf32>
    %181 = arith.truncf %176 : vector<16x256xf32> to vector<16x256xbf16>
    %c0_54 = arith.constant 0 : index
    %c0_55 = arith.constant 0 : index
    %182 = vector.load %arg3[%c0_54, %c0_55] : memref<256x1024xbf16, #tpu.memory_space<vmem>>, vector<256x1024xbf16>
    %cst_56 = arith.constant dense<0.000000e+00> : vector<16x1024xf32>
    %183 = tpu.matmul %181, %182, %cst_56 {dimension_numbers = #tpu.dot_dimension_numbers<[1], [0], [0], [1], [0, 0, 1, 1], [], []>} : vector<16x256xbf16>, vector<256x1024xbf16>, vector<16x1024xf32> -> vector<16x1024xf32>
    %184 = arith.addf %180, %183 : vector<16x1024xf32>
    %185 = vector.extract_strided_slice %184 {offsets = [0, 0], sizes = [16, 256], strides = [1, 1]} : vector<16x1024xf32> to vector<16x256xf32>
    %186 = arith.negf %185 : vector<16x256xf32>
    %187 = math.exp %186 : vector<16x256xf32>
    %cst_57 = arith.constant 1.000000e+00 : f32
    %188 = vector.broadcast %cst_57 : f32 to vector<16x256xf32>
    %189 = arith.addf %188, %187 : vector<16x256xf32>
    %190 = arith.divf %188, %189 : vector<16x256xf32>
    %191 = vector.extract_strided_slice %184 {offsets = [0, 256], sizes = [16, 256], strides = [1, 1]} : vector<16x1024xf32> to vector<16x256xf32>
    %192 = arith.negf %191 : vector<16x256xf32>
    %193 = math.exp %192 : vector<16x256xf32>
    %cst_58 = arith.constant 1.000000e+00 : f32
    %194 = vector.broadcast %cst_58 : f32 to vector<16x256xf32>
    %195 = arith.addf %194, %193 : vector<16x256xf32>
    %196 = arith.divf %194, %195 : vector<16x256xf32>
    %197 = vector.extract_strided_slice %184 {offsets = [0, 512], sizes = [16, 256], strides = [1, 1]} : vector<16x1024xf32> to vector<16x256xf32>
    %198 = math.tanh %197 : vector<16x256xf32>
    %199 = vector.extract_strided_slice %184 {offsets = [0, 768], sizes = [16, 256], strides = [1, 1]} : vector<16x1024xf32> to vector<16x256xf32>
    %200 = arith.negf %199 : vector<16x256xf32>
    %201 = math.exp %200 : vector<16x256xf32>
    %cst_59 = arith.constant 1.000000e+00 : f32
    %202 = vector.broadcast %cst_59 : f32 to vector<16x256xf32>
    %203 = arith.addf %202, %201 : vector<16x256xf32>
    %204 = arith.divf %202, %203 : vector<16x256xf32>
    %205 = arith.mulf %196, %174 : vector<16x256xf32>
    %206 = arith.mulf %190, %198 : vector<16x256xf32>
    %207 = arith.addf %205, %206 : vector<16x256xf32>
    %208 = math.tanh %207 : vector<16x256xf32>
    %209 = arith.mulf %204, %208 : vector<16x256xf32>
    %c6_i32 = arith.constant 6 : i32
    %c16_i32_60 = arith.constant 16 : i32
    %210 = arith.muli %c6_i32, %c16_i32_60 : i32
    %211 = tpu.assume_multiple %210, 16 : i32
    %212 = arith.index_cast %211 : i32 to index
    %c0_61 = arith.constant 0 : index
    %213 = vector.load %arg10[%212, %c0_61] : memref<128x1024xf32, #tpu.memory_space<vmem>>, vector<16x1024xf32>
    %214 = arith.truncf %209 : vector<16x256xf32> to vector<16x256xbf16>
    %c0_62 = arith.constant 0 : index
    %c0_63 = arith.constant 0 : index
    %215 = vector.load %arg3[%c0_62, %c0_63] : memref<256x1024xbf16, #tpu.memory_space<vmem>>, vector<256x1024xbf16>
    %cst_64 = arith.constant dense<0.000000e+00> : vector<16x1024xf32>
    %216 = tpu.matmul %214, %215, %cst_64 {dimension_numbers = #tpu.dot_dimension_numbers<[1], [0], [0], [1], [0, 0, 1, 1], [], []>} : vector<16x256xbf16>, vector<256x1024xbf16>, vector<16x1024xf32> -> vector<16x1024xf32>
    %217 = arith.addf %213, %216 : vector<16x1024xf32>
    %218 = vector.extract_strided_slice %217 {offsets = [0, 0], sizes = [16, 256], strides = [1, 1]} : vector<16x1024xf32> to vector<16x256xf32>
    %219 = arith.negf %218 : vector<16x256xf32>
    %220 = math.exp %219 : vector<16x256xf32>
    %cst_65 = arith.constant 1.000000e+00 : f32
    %221 = vector.broadcast %cst_65 : f32 to vector<16x256xf32>
    %222 = arith.addf %221, %220 : vector<16x256xf32>
    %223 = arith.divf %221, %222 : vector<16x256xf32>
    %224 = vector.extract_strided_slice %217 {offsets = [0, 256], sizes = [16, 256], strides = [1, 1]} : vector<16x1024xf32> to vector<16x256xf32>
    %225 = arith.negf %224 : vector<16x256xf32>
    %226 = math.exp %225 : vector<16x256xf32>
    %cst_66 = arith.constant 1.000000e+00 : f32
    %227 = vector.broadcast %cst_66 : f32 to vector<16x256xf32>
    %228 = arith.addf %227, %226 : vector<16x256xf32>
    %229 = arith.divf %227, %228 : vector<16x256xf32>
    %230 = vector.extract_strided_slice %217 {offsets = [0, 512], sizes = [16, 256], strides = [1, 1]} : vector<16x1024xf32> to vector<16x256xf32>
    %231 = math.tanh %230 : vector<16x256xf32>
    %232 = vector.extract_strided_slice %217 {offsets = [0, 768], sizes = [16, 256], strides = [1, 1]} : vector<16x1024xf32> to vector<16x256xf32>
    %233 = arith.negf %232 : vector<16x256xf32>
    %234 = math.exp %233 : vector<16x256xf32>
    %cst_67 = arith.constant 1.000000e+00 : f32
    %235 = vector.broadcast %cst_67 : f32 to vector<16x256xf32>
    %236 = arith.addf %235, %234 : vector<16x256xf32>
    %237 = arith.divf %235, %236 : vector<16x256xf32>
    %238 = arith.mulf %229, %207 : vector<16x256xf32>
    %239 = arith.mulf %223, %231 : vector<16x256xf32>
    %240 = arith.addf %238, %239 : vector<16x256xf32>
    %241 = math.tanh %240 : vector<16x256xf32>
    %242 = arith.mulf %237, %241 : vector<16x256xf32>
    %c7_i32 = arith.constant 7 : i32
    %c16_i32_68 = arith.constant 16 : i32
    %243 = arith.muli %c7_i32, %c16_i32_68 : i32
    %244 = tpu.assume_multiple %243, 16 : i32
    %245 = arith.index_cast %244 : i32 to index
    %c0_69 = arith.constant 0 : index
    %246 = vector.load %arg10[%245, %c0_69] : memref<128x1024xf32, #tpu.memory_space<vmem>>, vector<16x1024xf32>
    %247 = arith.truncf %242 : vector<16x256xf32> to vector<16x256xbf16>
    %c0_70 = arith.constant 0 : index
    %c0_71 = arith.constant 0 : index
    %248 = vector.load %arg3[%c0_70, %c0_71] : memref<256x1024xbf16, #tpu.memory_space<vmem>>, vector<256x1024xbf16>
    %cst_72 = arith.constant dense<0.000000e+00> : vector<16x1024xf32>
    %249 = tpu.matmul %247, %248, %cst_72 {dimension_numbers = #tpu.dot_dimension_numbers<[1], [0], [0], [1], [0, 0, 1, 1], [], []>} : vector<16x256xbf16>, vector<256x1024xbf16>, vector<16x1024xf32> -> vector<16x1024xf32>
    %250 = arith.addf %246, %249 : vector<16x1024xf32>
    %251 = vector.extract_strided_slice %250 {offsets = [0, 0], sizes = [16, 256], strides = [1, 1]} : vector<16x1024xf32> to vector<16x256xf32>
    %252 = arith.negf %251 : vector<16x256xf32>
    %253 = math.exp %252 : vector<16x256xf32>
    %cst_73 = arith.constant 1.000000e+00 : f32
    %254 = vector.broadcast %cst_73 : f32 to vector<16x256xf32>
    %255 = arith.addf %254, %253 : vector<16x256xf32>
    %256 = arith.divf %254, %255 : vector<16x256xf32>
    %257 = vector.extract_strided_slice %250 {offsets = [0, 256], sizes = [16, 256], strides = [1, 1]} : vector<16x1024xf32> to vector<16x256xf32>
    %258 = arith.negf %257 : vector<16x256xf32>
    %259 = math.exp %258 : vector<16x256xf32>
    %cst_74 = arith.constant 1.000000e+00 : f32
    %260 = vector.broadcast %cst_74 : f32 to vector<16x256xf32>
    %261 = arith.addf %260, %259 : vector<16x256xf32>
    %262 = arith.divf %260, %261 : vector<16x256xf32>
    %263 = vector.extract_strided_slice %250 {offsets = [0, 512], sizes = [16, 256], strides = [1, 1]} : vector<16x1024xf32> to vector<16x256xf32>
    %264 = math.tanh %263 : vector<16x256xf32>
    %265 = vector.extract_strided_slice %250 {offsets = [0, 768], sizes = [16, 256], strides = [1, 1]} : vector<16x1024xf32> to vector<16x256xf32>
    %266 = arith.negf %265 : vector<16x256xf32>
    %267 = math.exp %266 : vector<16x256xf32>
    %cst_75 = arith.constant 1.000000e+00 : f32
    %268 = vector.broadcast %cst_75 : f32 to vector<16x256xf32>
    %269 = arith.addf %268, %267 : vector<16x256xf32>
    %270 = arith.divf %268, %269 : vector<16x256xf32>
    %271 = arith.mulf %262, %240 : vector<16x256xf32>
    %272 = arith.mulf %256, %264 : vector<16x256xf32>
    %273 = arith.addf %271, %272 : vector<16x256xf32>
    %274 = math.tanh %273 : vector<16x256xf32>
    %275 = arith.mulf %270, %274 : vector<16x256xf32>
    %c8_i32 = arith.constant 8 : i32
    %c0_76 = arith.constant 0 : index
    %c0_77 = arith.constant 0 : index
    %276 = vector.load %arg8[%c0_76, %c0_77] : memref<16x256xf32, #tpu.memory_space<vmem>>, vector<16x256xf32>
    tpu.vector_store %arg8[%c0_76, %c0_77], %275 {strides = array<i32>} : memref<16x256xf32, #tpu.memory_space<vmem>>, vector<16x256xf32>,
    %c0_78 = arith.constant 0 : index
    %c0_79 = arith.constant 0 : index
    %277 = vector.load %arg9[%c0_78, %c0_79] : memref<16x256xf32, #tpu.memory_space<vmem>>, vector<16x256xf32>
    tpu.vector_store %arg9[%c0_78, %c0_79], %273 {strides = array<i32>} : memref<16x256xf32, #tpu.memory_space<vmem>>, vector<16x256xf32>,
    %c0_i32_80 = arith.constant 0 : i32
    %278 = arith.cmpi eq, %arg0, %c0_i32_80 : i32
    %279 = arith.extui %278 : i1 to i32
    %c0_i32_81 = arith.constant 0 : i32
    %280 = arith.cmpi ne, %279, %c0_i32_81 : i32
    scf.if %280 {
      %281 = arith.truncf %275 : vector<16x256xf32> to vector<16x256xbf16>
      %c0_82 = arith.constant 0 : index
      %c0_83 = arith.constant 0 : index
      %282 = vector.load %arg5[%c0_82, %c0_83] : memref<256x256xbf16, #tpu.memory_space<vmem>>, vector<256x256xbf16>
      %cst_84 = arith.constant dense<0.000000e+00> : vector<16x256xf32>
      %283 = tpu.matmul %281, %282, %cst_84 {dimension_numbers = #tpu.dot_dimension_numbers<[1], [0], [0], [1], [0, 0, 1, 1], [], []>} : vector<16x256xbf16>, vector<256x256xbf16>, vector<16x256xf32> -> vector<16x256xf32>
      %c0_85 = arith.constant 0 : index
      %c0_86 = arith.constant 0 : index
      %284 = vector.load %arg6[%c0_85, %c0_86] : memref<1x256xf32, #tpu.memory_space<vmem>>, vector<1x256xf32>
      %285 = vector.broadcast %284 : vector<1x256xf32> to vector<16x256xf32>
      %286 = arith.addf %283, %285 : vector<16x256xf32>
      %c0_87 = arith.constant 0 : index
      %c0_88 = arith.constant 0 : index
      %287 = vector.load %arg7[%c0_87, %c0_88] : memref<16x256xf32, #tpu.memory_space<vmem>>, vector<16x256xf32>
      tpu.vector_store %arg7[%c0_87, %c0_88], %286 {strides = array<i32>} : memref<16x256xf32, #tpu.memory_space<vmem>>, vector<16x256xf32>,
    } else {
    }
    return
  }
  func.func @transform_0(%arg0: i32) -> (i32, i32) {
    %c0_i32 = arith.constant 0 : i32
    %c0_i32_0 = arith.constant 0 : i32
    return %arg0, %c0_i32 : i32, i32
  }
  func.func @transform_1(%arg0: i32) -> (i32, i32) {
    %c0_i32 = arith.constant 0 : i32
    %c0_i32_0 = arith.constant 0 : i32
    %c0_i32_1 = arith.constant 0 : i32
    return %c0_i32, %c0_i32_0 : i32, i32
  }
  func.func @transform_2(%arg0: i32) -> (i32, i32) {
    %c0_i32 = arith.constant 0 : i32
    %c0_i32_0 = arith.constant 0 : i32
    %c0_i32_1 = arith.constant 0 : i32
    return %c0_i32, %c0_i32_0 : i32, i32
  }
  func.func @transform_3(%arg0: i32) -> (i32, i32) {
    %c0_i32 = arith.constant 0 : i32
    %c0_i32_0 = arith.constant 0 : i32
    %c0_i32_1 = arith.constant 0 : i32
    return %c0_i32, %c0_i32_0 : i32, i32
  }
  func.func @transform_4(%arg0: i32) -> (i32, i32) {
    %c0_i32 = arith.constant 0 : i32
    %c0_i32_0 = arith.constant 0 : i32
    %c0_i32_1 = arith.constant 0 : i32
    return %c0_i32, %c0_i32_0 : i32, i32
  }
  func.func @transform_5(%arg0: i32) -> (i32, i32) {
    %c0_i32 = arith.constant 0 : i32
    %c0_i32_0 = arith.constant 0 : i32
    %c0_i32_1 = arith.constant 0 : i32
    return %c0_i32, %c0_i32_0 : i32, i32
  }
  func.func @transform_6(%arg0: i32) -> (i32, i32) {
    %c0_i32 = arith.constant 0 : i32
    %c0_i32_0 = arith.constant 0 : i32
    %c0_i32_1 = arith.constant 0 : i32
    return %c0_i32, %c0_i32_0 : i32, i32
  }
}

</mosaic_0001>

<llo_original>
// kernel: tpu_custom_call.1
$region0: #{tpu_custom_call.1}
  #allocation0 [shape = 'u32[]', space=smem, size = 0x4, offset = 0x4, fixed_abs, tag = 'smem constant byte address 0x4 - core index']
  #allocation1 [shape = 'u32[144,128]{1,0:T(1,128)}', space=vmem, size = 0x12000, scoped, tag = 'internal scratch']
  #allocation2 [shape = 'f32[16,256]{1,0:T(8,128)}', space=vmem, size = 0x4000, scoped, tag = 'scratch operand']
  #allocation3 [shape = 'f32[16,256]{1,0:T(8,128)}', space=vmem, size = 0x4000, scoped, tag = 'scratch operand']
  #allocation4 [shape = 'f32[128,1024]{1,0:T(8,128)}', space=vmem, size = 0x80000, scoped, tag = 'scratch operand']
  %s0 = inlined_call_operand.hbm [shape: bf16[128,128], index: 0, kind: input, shape index: {}]
  %s1 = inlined_call_operand.hbm [shape: bf16[128,1024], index: 1, kind: input, shape index: {}]
  %s2 = inlined_call_operand.hbm [shape: bf16[256,1024], index: 2, kind: input, shape index: {}]
  %s3 = inlined_call_operand.hbm [shape: f32[1,1024], index: 3, kind: input, shape index: {}]
  %s4 = inlined_call_operand.hbm [shape: bf16[256,256], index: 4, kind: input, shape index: {}]
  %s5 = inlined_call_operand.vmem [shape: f32[1,256], index: 5, kind: input, shape index: {}]
  %s6 = inlined_call_operand.hbm [shape: f32[16,256], index: 6, kind: output, shape index: {}]
  %s7 = sld [smem:[#allocation0]]
  $region62: #{tpu_custom_call.1} parent=0
    _
  %s9 = ssub.s32 1, %s7
  %s10 = scalar_select 0, %s9, %s7
  $region1: #{tpu_custom_call.1} parent=0
    #allocation5 [shape = 'u8[32768]{0}', space=vmem, size = 0x8000, scoped, tag = 'input window, operand 0, single buffered']
    #allocation6 [shape = 's32[1]{0}', space=sflag, size = 0x4, scoped, tag = 'scoped memory for tpu_custom_call.1']
    #allocation7 [shape = 's32[1]{0}', space=sflag, size = 0x4, scoped, tag = 'scoped memory for tpu_custom_call.1']
    #allocation8 [shape = 'u8[262144]{0}', space=vmem, size = 0x40000, scoped, tag = 'input window, operand 1, single buffered']
    #allocation9 [shape = 's32[1]{0}', space=sflag, size = 0x4, scoped, tag = 'scoped memory for tpu_custom_call.1']
    #allocation10 [shape = 'u8[524288]{0}', space=vmem, size = 0x80000, scoped, tag = 'input window, operand 2, single buffered']
    #allocation11 [shape = 'u8[4096]{0}', space=vmem, size = 0x1000, scoped, tag = 'input window, operand 3, single buffered']
    #allocation12 [shape = 's32[1]{0}', space=sflag, size = 0x4, scoped, tag = 'scoped memory for tpu_custom_call.1']
    #allocation13 [shape = 'u8[131072]{0}', space=vmem, size = 0x20000, scoped, tag = 'input window, operand 4, single buffered']
    #allocation14 [shape = 'u8[16384]{0}', space=vmem, size = 0x4000, scoped, tag = 'output window, operand 0, single buffered']
    %11 = vsyncpa [#allocation6], 0
    %12 = vsyncpa [#allocation9], 0
    %13 = vsyncpa [#allocation12], 0
    %14 = vsyncpa [#allocation7], 0
    // Predicated region
    $region2: #{tpu_custom_call.1} parent=1 // pred_check
      _
    $region3: #{tpu_custom_call.1} parent=1 // pred_check_branch
      %16 = sbr.rel (0) target = $region5
    $region4: #{tpu_custom_call.1} parent=1 // pred_region
      %s18 = ssub.s32 1024, 1024
      %19 = vsyncadd [#allocation6], %s18
      %s20 = sshll.u32 [#allocation5], 4
      %s21 = int_to_ptr.vmem [resolvable:$true] %s20
      %26 = dma.hbm_to_vmem [thread:$0]  %s0, 1024, %s21, [#allocation6], 64, 64, 4
    $region5: #{tpu_custom_call.1} parent=1 // pred_fallthru
      _
    // Predicated region
    $region6: #{tpu_custom_call.1} parent=1 // pred_check
      _
    $region7: #{tpu_custom_call.1} parent=1 // pred_check_branch
      %28 = sbr.rel (0) target = $region9
    $region8: #{tpu_custom_call.1} parent=1 // pred_region
      %s30 = ssub.s32 8192, 8192
      %31 = vsyncadd [#allocation9], %s30
      %s32 = sshll.u32 [#allocation8], 4
      %s33 = int_to_ptr.vmem [resolvable:$true] %s32
      %38 = dma.hbm_to_vmem [thread:$0]  %s1, 8192, %s33, [#allocation9], 512, 512, 32
    $region9: #{tpu_custom_call.1} parent=1 // pred_fallthru
      _
    // Predicated region
    $region10: #{tpu_custom_call.1} parent=1 // pred_check
      _
    $region11: #{tpu_custom_call.1} parent=1 // pred_check_branch
      %40 = sbr.rel (0) target = $region13
    $region12: #{tpu_custom_call.1} parent=1 // pred_region
      %s42 = ssub.s32 16384, 16384
      %43 = vsyncadd [#allocation9], %s42
      %s44 = sshll.u32 [#allocation10], 4
      %s45 = int_to_ptr.vmem [resolvable:$true] %s44
      %50 = dma.hbm_to_vmem [thread:$0]  %s2, 16384, %s45, [#allocation9], 512, 512, 32
    $region13: #{tpu_custom_call.1} parent=1 // pred_fallthru
      _
    // Predicated region
    $region14: #{tpu_custom_call.1} parent=1 // pred_check
      _
    $region15: #{tpu_custom_call.1} parent=1 // pred_check_branch
      %52 = sbr.rel (0) target = $region17
    $region16: #{tpu_custom_call.1} parent=1 // pred_region
      %s54 = ssub.s32 128, 128
      %55 = vsyncadd [#allocation12], %s54
      %s57 = sshll.u32 [#allocation11], 4
      %s58 = int_to_ptr.vmem [resolvable:$true] %s57
      %60 = dma.hbm_to_vmem [thread:$0]  %s3, 128, %s58, [#allocation12]
    $region17: #{tpu_custom_call.1} parent=1 // pred_fallthru
      _
    // Predicated region
    $region18: #{tpu_custom_call.1} parent=1 // pred_check
      _
    $region19: #{tpu_custom_call.1} parent=1 // pred_check_branch
      %62 = sbr.rel (0) target = $region21
    $region20: #{tpu_custom_call.1} parent=1 // pred_region
      %s64 = ssub.s32 4096, 4096
      %65 = vsyncadd [#allocation12], %s64
      %s66 = sshll.u32 [#allocation13], 4
      %s67 = int_to_ptr.vmem [resolvable:$true] %s66
      %72 = dma.hbm_to_vmem [thread:$0]  %s4, 4096, %s67, [#allocation12], 128, 128, 8
    $region21: #{tpu_custom_call.1} parent=1 // pred_fallthru
      _
    // Predicated region
    $region22: #{tpu_custom_call.1} parent=1 // pred_check
      _
    $region23: #{tpu_custom_call.1} parent=1 // pred_check_branch
      %74 = sbr.rel (0) target = $region25
    $region24: #{tpu_custom_call.1} parent=1 // pred_region
      _
    $region25: #{tpu_custom_call.1} parent=1 // pred_fallthru
      _
    // Predicated region
    $region26: #{tpu_custom_call.1} parent=1 // pred_check
      _
    $region27: #{tpu_custom_call.1} parent=1 // pred_check_branch
      %76 = sbr.rel (0) target = $region29
    $region28: #{tpu_custom_call.1} parent=1 // pred_region
      %77 = dma.done [#allocation6], 1024
    $region29: #{tpu_custom_call.1} parent=1 // pred_fallthru
      _
    // Predicated region
    $region30: #{tpu_custom_call.1} parent=1 // pred_check
      _
    $region31: #{tpu_custom_call.1} parent=1 // pred_check_branch
      %79 = sbr.rel (0) target = $region33
    $region32: #{tpu_custom_call.1} parent=1 // pred_region
      %80 = dma.done [#allocation9], 8192
    $region33: #{tpu_custom_call.1} parent=1 // pred_fallthru
      _
    // Predicated region
    $region34: #{tpu_custom_call.1} parent=1 // pred_check
      _
    $region35: #{tpu_custom_call.1} parent=1 // pred_check_branch
      %82 = sbr.rel (0) target = $region37
    $region36: #{tpu_custom_call.1} parent=1 // pred_region
      %83 = dma.done [#allocation9], 16384
    $region37: #{tpu_custom_call.1} parent=1 // pred_fallthru
      _
    // Predicated region
    $region38: #{tpu_custom_call.1} parent=1 // pred_check
      _
    $region39: #{tpu_custom_call.1} parent=1 // pred_check_branch
      %85 = sbr.rel (0) target = $region41
    $region40: #{tpu_custom_call.1} parent=1 // pred_region
      %86 = dma.done [#allocation12], 128
    $region41: #{tpu_custom_call.1} parent=1 // pred_fallthru
      _
    // Predicated region
    $region42: #{tpu_custom_call.1} parent=1 // pred_check
      _
    $region43: #{tpu_custom_call.1} parent=1 // pred_check_branch
      %88 = sbr.rel (0) target = $region45
    $region44: #{tpu_custom_call.1} parent=1 // pred_region
      %89 = dma.done [#allocation12], 4096
    $region45: #{tpu_custom_call.1} parent=1 // pred_fallthru
      _
    %p91 = scmp.eq.s32.totalorder 0, 0
    // Predicated region
    $region46: #{tpu_custom_call.1} parent=1 // pred_check
      %p92 = pneg %p91
    $region47: #{tpu_custom_call.1} parent=1 // pred_check_branch
      %94 = sbr.rel (%p92) target = $region49
    $region48: #{tpu_custom_call.1} parent=1 // pred_region
      %95 = vst [vmem:[#allocation2] sm:$0xff] 0.0
      %96 = vst [vmem:[#allocation2 + $0x8] sm:$0xff] 0.0
      %97 = vst [vmem:[#allocation2 + $0x10] sm:$0xff] 0.0
      %98 = vst [vmem:[#allocation2 + $0x18] sm:$0xff] 0.0
      %99 = vst [vmem:[#allocation3] sm:$0xff] 0.0
      %100 = vst [vmem:[#allocation3 + $0x8] sm:$0xff] 0.0
      %101 = vst [vmem:[#allocation3 + $0x10] sm:$0xff] 0.0
      %102 = vst [vmem:[#allocation3 + $0x18] sm:$0xff] 0.0
    $region49: #{tpu_custom_call.1} parent=1 // pred_fallthru
      _
    %v103 = vld [vmem:[#allocation5] sm:$0xf]
    %v104 = vld [vmem:[#allocation5 + $0x4] sm:$0xf]
    %v105 = vld [vmem:[#allocation5 + $0x8] sm:$0xf]
    %v106 = vld [vmem:[#allocation5 + $0xc] sm:$0xf]
    %v107 = vld [vmem:[#allocation5 + $0x10] sm:$0xf]
    %v108 = vld [vmem:[#allocation5 + $0x14] sm:$0xf]
    %v109 = vld [vmem:[#allocation5 + $0x18] sm:$0xf]
    %v110 = vld [vmem:[#allocation5 + $0x1c] sm:$0xf]
    %v111 = vld [vmem:[#allocation5 + $0x20] sm:$0xf]
    %v112 = vld [vmem:[#allocation5 + $0x24] sm:$0xf]
    %v113 = vld [vmem:[#allocation5 + $0x28] sm:$0xf]
    %v114 = vld [vmem:[#allocation5 + $0x2c] sm:$0xf]
    %v115 = vld [vmem:[#allocation5 + $0x30] sm:$0xf]
    %v116 = vld [vmem:[#allocation5 + $0x34] sm:$0xf]
    %v117 = vld [vmem:[#allocation5 + $0x38] sm:$0xf]
    %v118 = vld [vmem:[#allocation5 + $0x3c] sm:$0xf]
    %v119 = vld [vmem:[#allocation8] sm:$0xff]
    %v120 = vld [vmem:[#allocation8 + $0x8] sm:$0xff]
    %v121 = vld [vmem:[#allocation8 + $0x10] sm:$0xff]
    %v122 = vld [vmem:[#allocation8 + $0x18] sm:$0xff]
    %v123 = vld [vmem:[#allocation8 + $0x20] sm:$0xff]
    %v124 = vld [vmem:[#allocation8 + $0x28] sm:$0xff]
    %v125 = vld [vmem:[#allocation8 + $0x30] sm:$0xff]
    %v126 = vld [vmem:[#allocation8 + $0x38] sm:$0xff]
    %v127 = vld [vmem:[#allocation8 + $0x40] sm:$0xff]
    %v128 = vld [vmem:[#allocation8 + $0x48] sm:$0xff]
    %v129 = vld [vmem:[#allocation8 + $0x50] sm:$0xff]
    %v130 = vld [vmem:[#allocation8 + $0x58] sm:$0xff]
    %v131 = vld [vmem:[#allocation8 + $0x60] sm:$0xff]
    %v132 = vld [vmem:[#allocation8 + $0x68] sm:$0xff]
    %v133 = vld [vmem:[#allocation8 + $0x70] sm:$0xff]
    %v134 = vld [vmem:[#allocation8 + $0x78] sm:$0xff]
    %v135 = vld [vmem:[#allocation8 + $0x80] sm:$0xff]
    %v136 = vld [vmem:[#allocation8 + $0x88] sm:$0xff]
    %v137 = vld [vmem:[#allocation8 + $0x90] sm:$0xff]
    %v138 = vld [vmem:[#allocation8 + $0x98] sm:$0xff]
    %v139 = vld [vmem:[#allocation8 + $0xa0] sm:$0xff]
    %v140 = vld [vmem:[#allocation8 + $0xa8] sm:$0xff]
    %v141 = vld [vmem:[#allocation8 + $0xb0] sm:$0xff]
    %v142 = vld [vmem:[#allocation8 + $0xb8] sm:$0xff]
    %v143 = vld [vmem:[#allocation8 + $0xc0] sm:$0xff]
    %v144 = vld [vmem:[#allocation8 + $0xc8] sm:$0xff]
    %v145 = vld [vmem:[#allocation8 + $0xd0] sm:$0xff]
    %v146 = vld [vmem:[#allocation8 + $0xd8] sm:$0xff]
    %v147 = vld [vmem:[#allocation8 + $0xe0] sm:$0xff]
    %v148 = vld [vmem:[#allocation8 + $0xe8] sm:$0xff]
    %v149 = vld [vmem:[#allocation8 + $0xf0] sm:$0xff]
    %v150 = vld [vmem:[#allocation8 + $0xf8] sm:$0xff]
    %v151 = vld [vmem:[#allocation8 + $0x100] sm:$0xff]
    %v152 = vld [vmem:[#allocation8 + $0x108] sm:$0xff]
    %v153 = vld [vmem:[#allocation8 + $0x110] sm:$0xff]
    %v154 = vld [vmem:[#allocation8 + $0x118] sm:$0xff]
    %v155 = vld [vmem:[#allocation8 + $0x120] sm:$0xff]
    %v156 = vld [vmem:[#allocation8 + $0x128] sm:$0xff]
    %v157 = vld [vmem:[#allocation8 + $0x130] sm:$0xff]
    %v158 = vld [vmem:[#allocation8 + $0x138] sm:$0xff]
    %v159 = vld [vmem:[#allocation8 + $0x140] sm:$0xff]
    %v160 = vld [vmem:[#allocation8 + $0x148] sm:$0xff]
    %v161 = vld [vmem:[#allocation8 + $0x150] sm:$0xff]
    %v162 = vld [vmem:[#allocation8 + $0x158] sm:$0xff]
    %v163 = vld [vmem:[#allocation8 + $0x160] sm:$0xff]
    %v164 = vld [vmem:[#allocation8 + $0x168] sm:$0xff]
    %v165 = vld [vmem:[#allocation8 + $0x170] sm:$0xff]
    %v166 = vld [vmem:[#allocation8 + $0x178] sm:$0xff]
    %v167 = vld [vmem:[#allocation8 + $0x180] sm:$0xff]
    %v168 = vld [vmem:[#allocation8 + $0x188] sm:$0xff]
    %v169 = vld [vmem:[#allocation8 + $0x190] sm:$0xff]
    %v170 = vld [vmem:[#allocation8 + $0x198] sm:$0xff]
    %v171 = vld [vmem:[#allocation8 + $0x1a0] sm:$0xff]
    %v172 = vld [vmem:[#allocation8 + $0x1a8] sm:$0xff]
    %v173 = vld [vmem:[#allocation8 + $0x1b0] sm:$0xff]
    %v174 = vld [vmem:[#allocation8 + $0x1b8] sm:$0xff]
    %v175 = vld [vmem:[#allocation8 + $0x1c0] sm:$0xff]
    %v176 = vld [vmem:[#allocation8 + $0x1c8] sm:$0xff]
    %v177 = vld [vmem:[#allocation8 + $0x1d0] sm:$0xff]
    %v178 = vld [vmem:[#allocation8 + $0x1d8] sm:$0xff]
    %v179 = vld [vmem:[#allocation8 + $0x1e0] sm:$0xff]
    %v180 = vld [vmem:[#allocation8 + $0x1e8] sm:$0xff]
    %v181 = vld [vmem:[#allocation8 + $0x1f0] sm:$0xff]
    %v182 = vld [vmem:[#allocation8 + $0x1f8] sm:$0xff]
    %v183 = vld [vmem:[#allocation11] sm:$0xff]
    %v185 = vlaneseq
    %v186 = vshrl.u32 %v185, 7
    %v187 = vsub.s32 0, %v186
    %v188 = vrot.slane %v183, %v187
    %v189 = vlaneseq
    %v190 = vshrl.u32 %v189, 7
    %v191 = vsub.s32 1, %v190
    %v192 = vrot.slane %v183, %v191
    %v193 = vlaneseq
    %v194 = vshrl.u32 %v193, 7
    %v195 = vsub.s32 2, %v194
    %v196 = vrot.slane %v183, %v195
    %v197 = vlaneseq
    %v198 = vshrl.u32 %v197, 7
    %v199 = vsub.s32 3, %v198
    %v200 = vrot.slane %v183, %v199
    %v201 = vlaneseq
    %v202 = vshrl.u32 %v201, 7
    %v203 = vsub.s32 4, %v202
    %v204 = vrot.slane %v183, %v203
    %v205 = vlaneseq
    %v206 = vshrl.u32 %v205, 7
    %v207 = vsub.s32 5, %v206
    %v208 = vrot.slane %v183, %v207
    %v209 = vlaneseq
    %v210 = vshrl.u32 %v209, 7
    %v211 = vsub.s32 6, %v210
    %v212 = vrot.slane %v183, %v211
    %v213 = vlaneseq
    %v214 = vshrl.u32 %v213, 7
    %v215 = vsub.s32 7, %v214
    %v216 = vrot.slane %v183, %v215
    %v241 = vunpack.c.l.b16 %v103
    %v242 = vunpack.c.l.b16 %v104
    %v243 = vunpack.c.l.b16 %v105
    %v244 = vunpack.c.l.b16 %v106
    %v245 = vunpack.c.l.b16 %v107
    %v246 = vunpack.c.l.b16 %v108
    %v247 = vunpack.c.l.b16 %v109
    %v248 = vunpack.c.l.b16 %v110
    %v249 = vunpack.c.l.b16 %v111
    %v250 = vunpack.c.l.b16 %v112
    %v251 = vunpack.c.l.b16 %v113
    %v252 = vunpack.c.l.b16 %v114
    %v253 = vunpack.c.l.b16 %v115
    %v254 = vunpack.c.l.b16 %v116
    %v255 = vunpack.c.l.b16 %v117
    %v256 = vunpack.c.l.b16 %v118
    %v257 = vpack.c.b16 %v242, %v241
    %v258 = vpack.c.b16 %v244, %v243
    %v259 = vpack.c.b16 %v246, %v245
    %v260 = vpack.c.b16 %v248, %v247
    %v261 = vpack.c.b16 %v250, %v249
    %v262 = vpack.c.b16 %v252, %v251
    %v263 = vpack.c.b16 %v254, %v253
    %v264 = vpack.c.b16 %v256, %v255
    %v337 = vunpack.c.l.b16 %v119
    %v338 = vunpack.c.h.b16 %v119
    %v339 = vunpack.c.l.b16 %v120
    %v340 = vunpack.c.h.b16 %v120
    %v341 = vunpack.c.l.b16 %v121
    %v342 = vunpack.c.h.b16 %v121
    %v343 = vunpack.c.l.b16 %v122
    %v344 = vunpack.c.h.b16 %v122
    %v345 = vunpack.c.l.b16 %v123
    %v346 = vunpack.c.h.b16 %v123
    %v347 = vunpack.c.l.b16 %v124
    %v348 = vunpack.c.h.b16 %v124
    %v349 = vunpack.c.l.b16 %v125
    %v350 = vunpack.c.h.b16 %v125
    %v351 = vunpack.c.l.b16 %v126
    %v352 = vunpack.c.h.b16 %v126
    %v353 = vunpack.c.l.b16 %v127
    %v354 = vunpack.c.h.b16 %v127
    %v355 = vunpack.c.l.b16 %v128
    %v356 = vunpack.c.h.b16 %v128
    %v357 = vunpack.c.l.b16 %v129
    %v358 = vunpack.c.h.b16 %v129
    %v359 = vunpack.c.l.b16 %v130
    %v360 = vunpack.c.h.b16 %v130
    %v361 = vunpack.c.l.b16 %v131
    %v362 = vunpack.c.h.b16 %v131
    %v363 = vunpack.c.l.b16 %v132
    %v364 = vunpack.c.h.b16 %v132
    %v365 = vunpack.c.l.b16 %v133
    %v366 = vunpack.c.h.b16 %v133
    %v367 = vunpack.c.l.b16 %v134
    %v368 = vunpack.c.h.b16 %v134
    %v369 = vunpack.c.l.b16 %v135
    %v370 = vunpack.c.h.b16 %v135
    %v371 = vunpack.c.l.b16 %v136
    %v372 = vunpack.c.h.b16 %v136
    %v373 = vunpack.c.l.b16 %v137
    %v374 = vunpack.c.h.b16 %v137
    %v375 = vunpack.c.l.b16 %v138
    %v376 = vunpack.c.h.b16 %v138
    %v377 = vunpack.c.l.b16 %v139
    %v378 = vunpack.c.h.b16 %v139
    %v379 = vunpack.c.l.b16 %v140
    %v380 = vunpack.c.h.b16 %v140
    %v381 = vunpack.c.l.b16 %v141
    %v382 = vunpack.c.h.b16 %v141
    %v383 = vunpack.c.l.b16 %v142
    %v384 = vunpack.c.h.b16 %v142
    %v385 = vunpack.c.l.b16 %v143
    %v386 = vunpack.c.h.b16 %v143
    %v387 = vunpack.c.l.b16 %v144
    %v388 = vunpack.c.h.b16 %v144
    %v389 = vunpack.c.l.b16 %v145
    %v390 = vunpack.c.h.b16 %v145
    %v391 = vunpack.c.l.b16 %v146
    %v392 = vunpack.c.h.b16 %v146
    %v393 = vunpack.c.l.b16 %v147
    %v394 = vunpack.c.h.b16 %v147
    %v395 = vunpack.c.l.b16 %v148
    %v396 = vunpack.c.h.b16 %v148
    %v397 = vunpack.c.l.b16 %v149
    %v398 = vunpack.c.h.b16 %v149
    %v399 = vunpack.c.l.b16 %v150
    %v400 = vunpack.c.h.b16 %v150
    %v401 = vunpack.c.l.b16 %v151
    %v402 = vunpack.c.h.b16 %v151
    %v403 = vunpack.c.l.b16 %v152
    %v404 = vunpack.c.h.b16 %v152
    %v405 = vunpack.c.l.b16 %v153
    %v406 = vunpack.c.h.b16 %v153
    %v407 = vunpack.c.l.b16 %v154
    %v408 = vunpack.c.h.b16 %v154
    %v409 = vunpack.c.l.b16 %v155
    %v410 = vunpack.c.h.b16 %v155
    %v411 = vunpack.c.l.b16 %v156
    %v412 = vunpack.c.h.b16 %v156
    %v413 = vunpack.c.l.b16 %v157
    %v414 = vunpack.c.h.b16 %v157
    %v415 = vunpack.c.l.b16 %v158
    %v416 = vunpack.c.h.b16 %v158
    %v417 = vunpack.c.l.b16 %v159
    %v418 = vunpack.c.h.b16 %v159
    %v419 = vunpack.c.l.b16 %v160
    %v420 = vunpack.c.h.b16 %v160
    %v421 = vunpack.c.l.b16 %v161
    %v422 = vunpack.c.h.b16 %v161
    %v423 = vunpack.c.l.b16 %v162
    %v424 = vunpack.c.h.b16 %v162
    %v425 = vunpack.c.l.b16 %v163
    %v426 = vunpack.c.h.b16 %v163
    %v427 = vunpack.c.l.b16 %v164
    %v428 = vunpack.c.h.b16 %v164
    %v429 = vunpack.c.l.b16 %v165
    %v430 = vunpack.c.h.b16 %v165
    %v431 = vunpack.c.l.b16 %v166
    %v432 = vunpack.c.h.b16 %v166
    %v433 = vunpack.c.l.b16 %v167
    %v434 = vunpack.c.h.b16 %v167
    %v435 = vunpack.c.l.b16 %v168
    %v436 = vunpack.c.h.b16 %v168
    %v437 = vunpack.c.l.b16 %v169
    %v438 = vunpack.c.h.b16 %v169
    %v439 = vunpack.c.l.b16 %v170
    %v440 = vunpack.c.h.b16 %v170
    %v441 = vunpack.c.l.b16 %v171
    %v442 = vunpack.c.h.b16 %v171
    %v443 = vunpack.c.l.b16 %v172
    %v444 = vunpack.c.h.b16 %v172
    %v445 = vunpack.c.l.b16 %v173
    %v446 = vunpack.c.h.b16 %v173
    %v447 = vunpack.c.l.b16 %v174
    %v448 = vunpack.c.h.b16 %v174
    %v449 = vunpack.c.l.b16 %v175
    %v450 = vunpack.c.h.b16 %v175
    %v451 = vunpack.c.l.b16 %v176
    %v452 = vunpack.c.h.b16 %v176
    %v453 = vunpack.c.l.b16 %v177
    %v454 = vunpack.c.h.b16 %v177
    %v455 = vunpack.c.l.b16 %v178
    %v456 = vunpack.c.h.b16 %v178
    %v457 = vunpack.c.l.b16 %v179
    %v458 = vunpack.c.h.b16 %v179
    %v459 = vunpack.c.l.b16 %v180
    %v460 = vunpack.c.h.b16 %v180
    %v461 = vunpack.c.l.b16 %v181
    %v462 = vunpack.c.h.b16 %v181
    %v463 = vunpack.c.l.b16 %v182
    %v464 = vunpack.c.h.b16 %v182
    %v465 = vpack.c.b16 %v345, %v337
    %v466 = vpack.c.b16 %v346, %v338
    %v467 = vpack.c.b16 %v347, %v339
    %v468 = vpack.c.b16 %v348, %v340
    %v469 = vpack.c.b16 %v349, %v341
    %v470 = vpack.c.b16 %v350, %v342
    %v471 = vpack.c.b16 %v351, %v343
    %v472 = vpack.c.b16 %v352, %v344
    %v473 = vpack.c.b16 %v361, %v353
    %v474 = vpack.c.b16 %v362, %v354
    %v475 = vpack.c.b16 %v363, %v355
    %v476 = vpack.c.b16 %v364, %v356
    %v477 = vpack.c.b16 %v365, %v357
    %v478 = vpack.c.b16 %v366, %v358
    %v479 = vpack.c.b16 %v367, %v359
    %v480 = vpack.c.b16 %v368, %v360
    %v481 = vpack.c.b16 %v377, %v369
    %v482 = vpack.c.b16 %v378, %v370
    %v483 = vpack.c.b16 %v379, %v371
    %v484 = vpack.c.b16 %v380, %v372
    %v485 = vpack.c.b16 %v381, %v373
    %v486 = vpack.c.b16 %v382, %v374
    %v487 = vpack.c.b16 %v383, %v375
    %v488 = vpack.c.b16 %v384, %v376
    %v489 = vpack.c.b16 %v393, %v385
    %v490 = vpack.c.b16 %v394, %v386
    %v491 = vpack.c.b16 %v395, %v387
    %v492 = vpack.c.b16 %v396, %v388
    %v493 = vpack.c.b16 %v397, %v389
    %v494 = vpack.c.b16 %v398, %v390
    %v495 = vpack.c.b16 %v399, %v391
    %v496 = vpack.c.b16 %v400, %v392
    %v497 = vpack.c.b16 %v409, %v401
    %v498 = vpack.c.b16 %v410, %v402
    %v499 = vpack.c.b16 %v411, %v403
    %v500 = vpack.c.b16 %v412, %v404
    %v501 = vpack.c.b16 %v413, %v405
    %v502 = vpack.c.b16 %v414, %v406
    %v503 = vpack.c.b16 %v415, %v407
    %v504 = vpack.c.b16 %v416, %v408
    %v505 = vpack.c.b16 %v425, %v417
    %v506 = vpack.c.b16 %v426, %v418
    %v507 = vpack.c.b16 %v427, %v419
    %v508 = vpack.c.b16 %v428, %v420
    %v509 = vpack.c.b16 %v429, %v421
    %v510 = vpack.c.b16 %v430, %v422
    %v511 = vpack.c.b16 %v431, %v423
    %v512 = vpack.c.b16 %v432, %v424
    %v513 = vpack.c.b16 %v441, %v433
    %v514 = vpack.c.b16 %v442, %v434
    %v515 = vpack.c.b16 %v443, %v435
    %v516 = vpack.c.b16 %v444, %v436
    %v517 = vpack.c.b16 %v445, %v437
    %v518 = vpack.c.b16 %v446, %v438
    %v519 = vpack.c.b16 %v447, %v439
    %v520 = vpack.c.b16 %v448, %v440
    %v521 = vpack.c.b16 %v457, %v449
    %v522 = vpack.c.b16 %v458, %v450
    %v523 = vpack.c.b16 %v459, %v451
    %v524 = vpack.c.b16 %v460, %v452
    %v525 = vpack.c.b16 %v461, %v453
    %v526 = vpack.c.b16 %v462, %v454
    %v527 = vpack.c.b16 %v463, %v455
    %v528 = vpack.c.b16 %v464, %v456
    %593 = vmatprep.subr.bf16.mxu0 %v522
    %594 = vmatpush1.bf16.msra.mxu0 %v521
    %595 = vmatprep.subr.bf16.mxu0 %v514
    %596 = vmatpush1.bf16.msra.mxu0 %v513
    %597 = vmatprep.subr.bf16.mxu0 %v506
    %598 = vmatpush1.bf16.msra.mxu0 %v505
    %599 = vmatprep.subr.bf16.mxu0 %v498
    %600 = vmatpush1.bf16.msra.mxu0 %v497
    %601 = vmatprep.subr.bf16.mxu0 %v490
    %602 = vmatpush1.bf16.msra.mxu0 %v489
    %603 = vmatprep.subr.bf16.mxu0 %v482
    %604 = vmatpush1.bf16.msra.mxu0 %v481
    %605 = vmatprep.subr.bf16.mxu0 %v474
    %606 = vmatpush1.bf16.msra.mxu0 %v473
    %607 = vmatprep.subr.bf16.mxu0 %v466
    %608 = vmatpush1.bf16.msra.mxu0 %v465
    %609 = vmatprep.subr.bf16.mxu0 0
    %610 = vmatpush2.bf16.msra.mxu0 0
    %611 = vmatprep.subr.bf16.mxu0 0
    %612 = vmatpush2.bf16.msra.mxu0 0
    %613 = vmatprep.subr.bf16.mxu0 0
    %614 = vmatpush2.bf16.msra.mxu0 0
    %615 = vmatprep.subr.bf16.mxu0 0
    %616 = vmatpush2.bf16.msra.mxu0 0
    %617 = vmatprep.subr.bf16.mxu0 0
    %618 = vmatpush2.bf16.msra.mxu0 0
    %619 = vmatprep.subr.bf16.mxu0 0
    %620 = vmatpush2.bf16.msra.mxu0 0
    %621 = vmatprep.subr.bf16.mxu0 0
    %622 = vmatpush2.bf16.msra.mxu0 0
    %623 = vmatprep.subr.bf16.mxu0 0
    %624 = vmatpush2.bf16.msra.mxu0 0
    %625 = vmatprep.mubr.bf16.mxu0 0
    %626 = vmatmul.mubr.bf16.gmra.mxu0 %v257
    %v627 = vpop.f32.mrf.mxu0
    %v628 = vadd.f32 %v188, %v627
    %v629 = vpop.f32.mrf.mxu0
    %v630 = vadd.f32 %v192, %v629
    %v631 = vpop.f32.mrf.mxu0
    %v632 = vadd.f32 %v188, %v631
    %v633 = vpop.f32.mrf.mxu0
    %v634 = vadd.f32 %v192, %v633
    %635 = vmatprep.mubr.bf16.mxu0 0
    %636 = vmatmul.mubr.bf16.gmra.mxu0 %v258
    %v637 = vpop.f32.mrf.mxu0
    %v638 = vadd.f32 %v188, %v637
    %v639 = vpop.f32.mrf.mxu0
    %v640 = vadd.f32 %v192, %v639
    %v641 = vpop.f32.mrf.mxu0
    %v642 = vadd.f32 %v188, %v641
    %v643 = vpop.f32.mrf.mxu0
    %v644 = vadd.f32 %v192, %v643
    %645 = vmatprep.mubr.bf16.mxu0 0
    %646 = vmatmul.mubr.bf16.gmra.mxu0 %v259
    %v647 = vpop.f32.mrf.mxu0
    %v648 = vadd.f32 %v188, %v647
    %v649 = vpop.f32.mrf.mxu0
    %v650 = vadd.f32 %v192, %v649
    %v651 = vpop.f32.mrf.mxu0
    %v652 = vadd.f32 %v188, %v651
    %v653 = vpop.f32.mrf.mxu0
    %v654 = vadd.f32 %v192, %v653
    %655 = vmatprep.mubr.bf16.mxu0 0
    %656 = vmatmul.mubr.bf16.gmra.mxu0 %v260
    %v657 = vpop.f32.mrf.mxu0
    %v658 = vadd.f32 %v188, %v657
    %v659 = vpop.f32.mrf.mxu0
    %v660 = vadd.f32 %v192, %v659
    %v661 = vpop.f32.mrf.mxu0
    %v662 = vadd.f32 %v188, %v661
    %v663 = vpop.f32.mrf.mxu0
    %v664 = vadd.f32 %v192, %v663
    %665 = vmatprep.mubr.bf16.mxu0 0
    %666 = vmatmul.mubr.bf16.gmra.mxu0 %v261
    %v667 = vpop.f32.mrf.mxu0
    %v668 = vadd.f32 %v188, %v667
    %v669 = vpop.f32.mrf.mxu0
    %v670 = vadd.f32 %v192, %v669
    %v671 = vpop.f32.mrf.mxu0
    %v672 = vadd.f32 %v188, %v671
    %v673 = vpop.f32.mrf.mxu0
    %v674 = vadd.f32 %v192, %v673
    %675 = vmatprep.mubr.bf16.mxu0 0
    %676 = vmatmul.mubr.bf16.gmra.mxu0 %v262
    %v677 = vpop.f32.mrf.mxu0
    %v678 = vadd.f32 %v188, %v677
    %v679 = vpop.f32.mrf.mxu0
    %v680 = vadd.f32 %v192, %v679
    %v681 = vpop.f32.mrf.mxu0
    %v682 = vadd.f32 %v188, %v681
    %v683 = vpop.f32.mrf.mxu0
    %v684 = vadd.f32 %v192, %v683
    %685 = vmatprep.mubr.bf16.mxu0 0
    %686 = vmatmul.mubr.bf16.gmra.mxu0 %v263
    %v687 = vpop.f32.mrf.mxu0
    %v688 = vadd.f32 %v188, %v687
    %v689 = vpop.f32.mrf.mxu0
    %v690 = vadd.f32 %v192, %v689
    %v691 = vpop.f32.mrf.mxu0
    %v692 = vadd.f32 %v188, %v691
    %v693 = vpop.f32.mrf.mxu0
    %v694 = vadd.f32 %v192, %v693
    %695 = vmatprep.mubr.bf16.mxu0 0
    %696 = vmatmul.mubr.bf16.gmra.mxu0 %v264
    %v697 = vpop.f32.mrf.mxu0
    %v698 = vadd.f32 %v188, %v697
    %v699 = vpop.f32.mrf.mxu0
    %v700 = vadd.f32 %v192, %v699
    %v701 = vpop.f32.mrf.mxu0
    %v702 = vadd.f32 %v188, %v701
    %v703 = vpop.f32.mrf.mxu0
    %v704 = vadd.f32 %v192, %v703
    %705 = vdwg.mxu0
    %706 = vmatprep.subr.bf16.mxu0 %v524
    %707 = vmatpush1.bf16.msra.mxu0 %v523
    %708 = vmatprep.subr.bf16.mxu0 %v516
    %709 = vmatpush1.bf16.msra.mxu0 %v515
    %710 = vmatprep.subr.bf16.mxu0 %v508
    %711 = vmatpush1.bf16.msra.mxu0 %v507
    %712 = vmatprep.subr.bf16.mxu0 %v500
    %713 = vmatpush1.bf16.msra.mxu0 %v499
    %714 = vmatprep.subr.bf16.mxu0 %v492
    %715 = vmatpush1.bf16.msra.mxu0 %v491
    %716 = vmatprep.subr.bf16.mxu0 %v484
    %717 = vmatpush1.bf16.msra.mxu0 %v483
    %718 = vmatprep.subr.bf16.mxu0 %v476
    %719 = vmatpush1.bf16.msra.mxu0 %v475
    %720 = vmatprep.subr.bf16.mxu0 %v468
    %721 = vmatpush1.bf16.msra.mxu0 %v467
    %722 = vmatprep.subr.bf16.mxu0 0
    %723 = vmatpush2.bf16.msra.mxu0 0
    %724 = vmatprep.subr.bf16.mxu0 0
    %725 = vmatpush2.bf16.msra.mxu0 0
    %726 = vmatprep.subr.bf16.mxu0 0
    %727 = vmatpush2.bf16.msra.mxu0 0
    %728 = vmatprep.subr.bf16.mxu0 0
    %729 = vmatpush2.bf16.msra.mxu0 0
    %730 = vmatprep.subr.bf16.mxu0 0
    %731 = vmatpush2.bf16.msra.mxu0 0
    %732 = vmatprep.subr.bf16.mxu0 0
    %733 = vmatpush2.bf16.msra.mxu0 0
    %734 = vmatprep.subr.bf16.mxu0 0
    %735 = vmatpush2.bf16.msra.mxu0 0
    %736 = vmatprep.subr.bf16.mxu0 0
    %737 = vmatpush2.bf16.msra.mxu0 0
    %738 = vmatprep.mubr.bf16.mxu0 0
    %739 = vmatmul.mubr.bf16.gmra.mxu0 %v257
    %v740 = vpop.f32.mrf.mxu0
    %v741 = vadd.f32 %v196, %v740
    %v742 = vpop.f32.mrf.mxu0
    %v743 = vadd.f32 %v200, %v742
    %v744 = vpop.f32.mrf.mxu0
    %v745 = vadd.f32 %v196, %v744
    %v746 = vpop.f32.mrf.mxu0
    %v747 = vadd.f32 %v200, %v746
    %748 = vmatprep.mubr.bf16.mxu0 0
    %749 = vmatmul.mubr.bf16.gmra.mxu0 %v258
    %v750 = vpop.f32.mrf.mxu0
    %v751 = vadd.f32 %v196, %v750
    %v752 = vpop.f32.mrf.mxu0
    %v753 = vadd.f32 %v200, %v752
    %v754 = vpop.f32.mrf.mxu0
    %v755 = vadd.f32 %v196, %v754
    %v756 = vpop.f32.mrf.mxu0
    %v757 = vadd.f32 %v200, %v756
    %758 = vmatprep.mubr.bf16.mxu0 0
    %759 = vmatmul.mubr.bf16.gmra.mxu0 %v259
    %v760 = vpop.f32.mrf.mxu0
    %v761 = vadd.f32 %v196, %v760
    %v762 = vpop.f32.mrf.mxu0
    %v763 = vadd.f32 %v200, %v762
    %v764 = vpop.f32.mrf.mxu0
    %v765 = vadd.f32 %v196, %v764
    %v766 = vpop.f32.mrf.mxu0
    %v767 = vadd.f32 %v200, %v766
    %768 = vmatprep.mubr.bf16.mxu0 0
    %769 = vmatmul.mubr.bf16.gmra.mxu0 %v260
    %v770 = vpop.f32.mrf.mxu0
    %v771 = vadd.f32 %v196, %v770
    %v772 = vpop.f32.mrf.mxu0
    %v773 = vadd.f32 %v200, %v772
    %v774 = vpop.f32.mrf.mxu0
    %v775 = vadd.f32 %v196, %v774
    %v776 = vpop.f32.mrf.mxu0
    %v777 = vadd.f32 %v200, %v776
    %778 = vmatprep.mubr.bf16.mxu0 0
    %779 = vmatmul.mubr.bf16.gmra.mxu0 %v261
    %v780 = vpop.f32.mrf.mxu0
    %v781 = vadd.f32 %v196, %v780
    %v782 = vpop.f32.mrf.mxu0
    %v783 = vadd.f32 %v200, %v782
    %v784 = vpop.f32.mrf.mxu0
    %v785 = vadd.f32 %v196, %v784
    %v786 = vpop.f32.mrf.mxu0
    %v787 = vadd.f32 %v200, %v786
    %788 = vmatprep.mubr.bf16.mxu0 0
    %789 = vmatmul.mubr.bf16.gmra.mxu0 %v262
    %v790 = vpop.f32.mrf.mxu0
    %v791 = vadd.f32 %v196, %v790
    %v792 = vpop.f32.mrf.mxu0
    %v793 = vadd.f32 %v200, %v792
    %v794 = vpop.f32.mrf.mxu0
    %v795 = vadd.f32 %v196, %v794
    %v796 = vpop.f32.mrf.mxu0
    %v797 = vadd.f32 %v200, %v796
    %798 = vmatprep.mubr.bf16.mxu0 0
    %799 = vmatmul.mubr.bf16.gmra.mxu0 %v263
    %v800 = vpop.f32.mrf.mxu0
    %v801 = vadd.f32 %v196, %v800
    %v802 = vpop.f32.mrf.mxu0
    %v803 = vadd.f32 %v200, %v802
    %v804 = vpop.f32.mrf.mxu0
    %v805 = vadd.f32 %v196, %v804
    %v806 = vpop.f32.mrf.mxu0
    %v807 = vadd.f32 %v200, %v806
    %808 = vmatprep.mubr.bf16.mxu0 0
    %809 = vmatmul.mubr.bf16.gmra.mxu0 %v264
    %v810 = vpop.f32.mrf.mxu0
    %v811 = vadd.f32 %v196, %v810
    %v812 = vpop.f32.mrf.mxu0
    %v813 = vadd.f32 %v200, %v812
    %v814 = vpop.f32.mrf.mxu0
    %v815 = vadd.f32 %v196, %v814
    %v816 = vpop.f32.mrf.mxu0
    %v817 = vadd.f32 %v200, %v816
    %818 = vdwg.mxu0
    %819 = vmatprep.subr.bf16.mxu0 %v526
    %820 = vmatpush1.bf16.msra.mxu0 %v525
    %821 = vmatprep.subr.bf16.mxu0 %v518
    %822 = vmatpush1.bf16.msra.mxu0 %v517
    %823 = vmatprep.subr.bf16.mxu0 %v510
    %824 = vmatpush1.bf16.msra.mxu0 %v509
    %825 = vmatprep.subr.bf16.mxu0 %v502
    %826 = vmatpush1.bf16.msra.mxu0 %v501
    %827 = vmatprep.subr.bf16.mxu0 %v494
    %828 = vmatpush1.bf16.msra.mxu0 %v493
    %829 = vmatprep.subr.bf16.mxu0 %v486
    %830 = vmatpush1.bf16.msra.mxu0 %v485
    %831 = vmatprep.subr.bf16.mxu0 %v478
    %832 = vmatpush1.bf16.msra.mxu0 %v477
    %833 = vmatprep.subr.bf16.mxu0 %v470
    %834 = vmatpush1.bf16.msra.mxu0 %v469
    %835 = vmatprep.subr.bf16.mxu0 0
    %836 = vmatpush2.bf16.msra.mxu0 0
    %837 = vmatprep.subr.bf16.mxu0 0
    %838 = vmatpush2.bf16.msra.mxu0 0
    %839 = vmatprep.subr.bf16.mxu0 0
    %840 = vmatpush2.bf16.msra.mxu0 0
    %841 = vmatprep.subr.bf16.mxu0 0
    %842 = vmatpush2.bf16.msra.mxu0 0
    %843 = vmatprep.subr.bf16.mxu0 0
    %844 = vmatpush2.bf16.msra.mxu0 0
    %845 = vmatprep.subr.bf16.mxu0 0
    %846 = vmatpush2.bf16.msra.mxu0 0
    %847 = vmatprep.subr.bf16.mxu0 0
    %848 = vmatpush2.bf16.msra.mxu0 0
    %849 = vmatprep.subr.bf16.mxu0 0
    %850 = vmatpush2.bf16.msra.mxu0 0
    %851 = vmatprep.mubr.bf16.mxu0 0
    %852 = vmatmul.mubr.bf16.gmra.mxu0 %v257
    %v853 = vpop.f32.mrf.mxu0
    %v854 = vadd.f32 %v204, %v853
    %v855 = vpop.f32.mrf.mxu0
    %v856 = vadd.f32 %v208, %v855
    %v857 = vpop.f32.mrf.mxu0
    %v858 = vadd.f32 %v204, %v857
    %v859 = vpop.f32.mrf.mxu0
    %v860 = vadd.f32 %v208, %v859
    %861 = vmatprep.mubr.bf16.mxu0 0
    %862 = vmatmul.mubr.bf16.gmra.mxu0 %v258
    %v863 = vpop.f32.mrf.mxu0
    %v864 = vadd.f32 %v204, %v863
    %v865 = vpop.f32.mrf.mxu0
    %v866 = vadd.f32 %v208, %v865
    %v867 = vpop.f32.mrf.mxu0
    %v868 = vadd.f32 %v204, %v867
    %v869 = vpop.f32.mrf.mxu0
    %v870 = vadd.f32 %v208, %v869
    %871 = vmatprep.mubr.bf16.mxu0 0
    %872 = vmatmul.mubr.bf16.gmra.mxu0 %v259
    %v873 = vpop.f32.mrf.mxu0
    %v874 = vadd.f32 %v204, %v873
    %v875 = vpop.f32.mrf.mxu0
    %v876 = vadd.f32 %v208, %v875
    %v877 = vpop.f32.mrf.mxu0
    %v878 = vadd.f32 %v204, %v877
    %v879 = vpop.f32.mrf.mxu0
    %v880 = vadd.f32 %v208, %v879
    %881 = vmatprep.mubr.bf16.mxu0 0
    %882 = vmatmul.mubr.bf16.gmra.mxu0 %v260
    %v883 = vpop.f32.mrf.mxu0
    %v884 = vadd.f32 %v204, %v883
    %v885 = vpop.f32.mrf.mxu0
    %v886 = vadd.f32 %v208, %v885
    %v887 = vpop.f32.mrf.mxu0
    %v888 = vadd.f32 %v204, %v887
    %v889 = vpop.f32.mrf.mxu0
    %v890 = vadd.f32 %v208, %v889
    %891 = vmatprep.mubr.bf16.mxu0 0
    %892 = vmatmul.mubr.bf16.gmra.mxu0 %v261
    %v893 = vpop.f32.mrf.mxu0
    %v894 = vadd.f32 %v204, %v893
    %v895 = vpop.f32.mrf.mxu0
    %v896 = vadd.f32 %v208, %v895
    %v897 = vpop.f32.mrf.mxu0
    %v898 = vadd.f32 %v204, %v897
    %v899 = vpop.f32.mrf.mxu0
    %v900 = vadd.f32 %v208, %v899
    %901 = vmatprep.mubr.bf16.mxu0 0
    %902 = vmatmul.mubr.bf16.gmra.mxu0 %v262
    %v903 = vpop.f32.mrf.mxu0
    %v904 = vadd.f32 %v204, %v903
    %v905 = vpop.f32.mrf.mxu0
    %v906 = vadd.f32 %v208, %v905
    %v907 = vpop.f32.mrf.mxu0
    %v908 = vadd.f32 %v204, %v907
    %v909 = vpop.f32.mrf.mxu0
    %v910 = vadd.f32 %v208, %v909
    %911 = vmatprep.mubr.bf16.mxu0 0
    %912 = vmatmul.mubr.bf16.gmra.mxu0 %v263
    %v913 = vpop.f32.mrf.mxu0
    %v914 = vadd.f32 %v204, %v913
    %v915 = vpop.f32.mrf.mxu0
    %v916 = vadd.f32 %v208, %v915
    %v917 = vpop.f32.mrf.mxu0
    %v918 = vadd.f32 %v204, %v917
    %v919 = vpop.f32.mrf.mxu0
    %v920 = vadd.f32 %v208, %v919
    %921 = vmatprep.mubr.bf16.mxu0 0
    %922 = vmatmul.mubr.bf16.gmra.mxu0 %v264
    %v923 = vpop.f32.mrf.mxu0
    %v924 = vadd.f32 %v204, %v923
    %v925 = vpop.f32.mrf.mxu0
    %v926 = vadd.f32 %v208, %v925
    %v927 = vpop.f32.mrf.mxu0
    %v928 = vadd.f32 %v204, %v927
    %v929 = vpop.f32.mrf.mxu0
    %v930 = vadd.f32 %v208, %v929
    %931 = vdwg.mxu0
    %932 = vmatprep.subr.bf16.mxu0 %v528
    %933 = vmatpush1.bf16.msra.mxu0 %v527
    %934 = vmatprep.subr.bf16.mxu0 %v520
    %935 = vmatpush1.bf16.msra.mxu0 %v519
    %936 = vmatprep.subr.bf16.mxu0 %v512
    %937 = vmatpush1.bf16.msra.mxu0 %v511
    %938 = vmatprep.subr.bf16.mxu0 %v504
    %939 = vmatpush1.bf16.msra.mxu0 %v503
    %940 = vmatprep.subr.bf16.mxu0 %v496
    %941 = vmatpush1.bf16.msra.mxu0 %v495
    %942 = vmatprep.subr.bf16.mxu0 %v488
    %943 = vmatpush1.bf16.msra.mxu0 %v487
    %944 = vmatprep.subr.bf16.mxu0 %v480
    %945 = vmatpush1.bf16.msra.mxu0 %v479
    %946 = vmatprep.subr.bf16.mxu0 %v472
    %947 = vmatpush1.bf16.msra.mxu0 %v471
    %948 = vmatprep.subr.bf16.mxu0 0
    %949 = vmatpush2.bf16.msra.mxu0 0
    %950 = vmatprep.subr.bf16.mxu0 0
    %951 = vmatpush2.bf16.msra.mxu0 0
    %952 = vmatprep.subr.bf16.mxu0 0
    %953 = vmatpush2.bf16.msra.mxu0 0
    %954 = vmatprep.subr.bf16.mxu0 0
    %955 = vmatpush2.bf16.msra.mxu0 0
    %956 = vmatprep.subr.bf16.mxu0 0
    %957 = vmatpush2.bf16.msra.mxu0 0
    %958 = vmatprep.subr.bf16.mxu0 0
    %959 = vmatpush2.bf16.msra.mxu0 0
    %960 = vmatprep.subr.bf16.mxu0 0
    %961 = vmatpush2.bf16.msra.mxu0 0
    %962 = vmatprep.subr.bf16.mxu0 0
    %963 = vmatpush2.bf16.msra.mxu0 0
    %964 = vmatprep.mubr.bf16.mxu0 0
    %965 = vmatmul.mubr.bf16.gmra.mxu0 %v257
    %v966 = vpop.f32.mrf.mxu0
    %v967 = vadd.f32 %v212, %v966
    %v968 = vpop.f32.mrf.mxu0
    %v969 = vadd.f32 %v216, %v968
    %v970 = vpop.f32.mrf.mxu0
    %v971 = vadd.f32 %v212, %v970
    %v972 = vpop.f32.mrf.mxu0
    %v973 = vadd.f32 %v216, %v972
    %974 = vmatprep.mubr.bf16.mxu0 0
    %975 = vmatmul.mubr.bf16.gmra.mxu0 %v258
    %v976 = vpop.f32.mrf.mxu0
    %v977 = vadd.f32 %v212, %v976
    %v978 = vpop.f32.mrf.mxu0
    %v979 = vadd.f32 %v216, %v978
    %v980 = vpop.f32.mrf.mxu0
    %v981 = vadd.f32 %v212, %v980
    %v982 = vpop.f32.mrf.mxu0
    %v983 = vadd.f32 %v216, %v982
    %984 = vmatprep.mubr.bf16.mxu0 0
    %985 = vmatmul.mubr.bf16.gmra.mxu0 %v259
    %v986 = vpop.f32.mrf.mxu0
    %v987 = vadd.f32 %v212, %v986
    %v988 = vpop.f32.mrf.mxu0
    %v989 = vadd.f32 %v216, %v988
    %v990 = vpop.f32.mrf.mxu0
    %v991 = vadd.f32 %v212, %v990
    %v992 = vpop.f32.mrf.mxu0
    %v993 = vadd.f32 %v216, %v992
    %994 = vmatprep.mubr.bf16.mxu0 0
    %995 = vmatmul.mubr.bf16.gmra.mxu0 %v260
    %v996 = vpop.f32.mrf.mxu0
    %v997 = vadd.f32 %v212, %v996
    %v998 = vpop.f32.mrf.mxu0
    %v999 = vadd.f32 %v216, %v998
    %v1000 = vpop.f32.mrf.mxu0
    %v1001 = vadd.f32 %v212, %v1000
    %v1002 = vpop.f32.mrf.mxu0
    %v1003 = vadd.f32 %v216, %v1002
    %1004 = vmatprep.mubr.bf16.mxu0 0
    %1005 = vmatmul.mubr.bf16.gmra.mxu0 %v261
    %v1006 = vpop.f32.mrf.mxu0
    %v1007 = vadd.f32 %v212, %v1006
    %v1008 = vpop.f32.mrf.mxu0
    %v1009 = vadd.f32 %v216, %v1008
    %v1010 = vpop.f32.mrf.mxu0
    %v1011 = vadd.f32 %v212, %v1010
    %v1012 = vpop.f32.mrf.mxu0
    %v1013 = vadd.f32 %v216, %v1012
    %1014 = vmatprep.mubr.bf16.mxu0 0
    %1015 = vmatmul.mubr.bf16.gmra.mxu0 %v262
    %v1016 = vpop.f32.mrf.mxu0
    %v1017 = vadd.f32 %v212, %v1016
    %v1018 = vpop.f32.mrf.mxu0
    %v1019 = vadd.f32 %v216, %v1018
    %v1020 = vpop.f32.mrf.mxu0
    %v1021 = vadd.f32 %v212, %v1020
    %v1022 = vpop.f32.mrf.mxu0
    %v1023 = vadd.f32 %v216, %v1022
    %1024 = vmatprep.mubr.bf16.mxu0 0
    %1025 = vmatmul.mubr.bf16.gmra.mxu0 %v263
    %v1026 = vpop.f32.mrf.mxu0
    %v1027 = vadd.f32 %v212, %v1026
    %v1028 = vpop.f32.mrf.mxu0
    %v1029 = vadd.f32 %v216, %v1028
    %v1030 = vpop.f32.mrf.mxu0
    %v1031 = vadd.f32 %v212, %v1030
    %v1032 = vpop.f32.mrf.mxu0
    %v1033 = vadd.f32 %v216, %v1032
    %1034 = vmatprep.mubr.bf16.mxu0 0
    %1035 = vmatmul.mubr.bf16.gmra.mxu0 %v264
    %v1036 = vpop.f32.mrf.mxu0
    %v1037 = vadd.f32 %v212, %v1036
    %v1038 = vpop.f32.mrf.mxu0
    %v1039 = vadd.f32 %v216, %v1038
    %v1040 = vpop.f32.mrf.mxu0
    %v1041 = vadd.f32 %v212, %v1040
    %v1042 = vpop.f32.mrf.mxu0
    %v1043 = vadd.f32 %v216, %v1042
    %1044 = vdwg.mxu0
    %1045 = vst [vmem:[#allocation4] sm:$0xff] %v628
    %1046 = vst [vmem:[#allocation4 + $0x8] sm:$0xff] %v630
    %1047 = vst [vmem:[#allocation4 + $0x10] sm:$0xff] %v741
    %1048 = vst [vmem:[#allocation4 + $0x18] sm:$0xff] %v743
    %1049 = vst [vmem:[#allocation4 + $0x20] sm:$0xff] %v854
    %1050 = vst [vmem:[#allocation4 + $0x28] sm:$0xff] %v856
    %1051 = vst [vmem:[#allocation4 + $0x30] sm:$0xff] %v967
    %1052 = vst [vmem:[#allocation4 + $0x38] sm:$0xff] %v969
    %1053 = vst [vmem:[#allocation4 + $0x40] sm:$0xff] %v632
    %1054 = vst [vmem:[#allocation4 + $0x48] sm:$0xff] %v634
    %1055 = vst [vmem:[#allocation4 + $0x50] sm:$0xff] %v745
    %1056 = vst [vmem:[#allocation4 + $0x58] sm:$0xff] %v747
    %1057 = vst [vmem:[#allocation4 + $0x60] sm:$0xff] %v858
    %1058 = vst [vmem:[#allocation4 + $0x68] sm:$0xff] %v860
    %1059 = vst [vmem:[#allocation4 + $0x70] sm:$0xff] %v971
    %1060 = vst [vmem:[#allocation4 + $0x78] sm:$0xff] %v973
    %1061 = vst [vmem:[#allocation4 + $0x80] sm:$0xff] %v638
    %1062 = vst [vmem:[#allocation4 + $0x88] sm:$0xff] %v640
    %1063 = vst [vmem:[#allocation4 + $0x90] sm:$0xff] %v751
    %1064 = vst [vmem:[#allocation4 + $0x98] sm:$0xff] %v753
    %1065 = vst [vmem:[#allocation4 + $0xa0] sm:$0xff] %v864
    %1066 = vst [vmem:[#allocation4 + $0xa8] sm:$0xff] %v866
    %1067 = vst [vmem:[#allocation4 + $0xb0] sm:$0xff] %v977
    %1068 = vst [vmem:[#allocation4 + $0xb8] sm:$0xff] %v979
    %1069 = vst [vmem:[#allocation4 + $0xc0] sm:$0xff] %v642
    %1070 = vst [vmem:[#allocation4 + $0xc8] sm:$0xff] %v644
    %1071 = vst [vmem:[#allocation4 + $0xd0] sm:$0xff] %v755
    %1072 = vst [vmem:[#allocation4 + $0xd8] sm:$0xff] %v757
    %1073 = vst [vmem:[#allocation4 + $0xe0] sm:$0xff] %v868
    %1074 = vst [vmem:[#allocation4 + $0xe8] sm:$0xff] %v870
    %1075 = vst [vmem:[#allocation4 + $0xf0] sm:$0xff] %v981
    %1076 = vst [vmem:[#allocation4 + $0xf8] sm:$0xff] %v983
    %1077 = vst [vmem:[#allocation4 + $0x100] sm:$0xff] %v648
    %1078 = vst [vmem:[#allocation4 + $0x108] sm:$0xff] %v650
    %1079 = vst [vmem:[#allocation4 + $0x110] sm:$0xff] %v761
    %1080 = vst [vmem:[#allocation4 + $0x118] sm:$0xff] %v763
    %1081 = vst [vmem:[#allocation4 + $0x120] sm:$0xff] %v874
    %1082 = vst [vmem:[#allocation4 + $0x128] sm:$0xff] %v876
    %1083 = vst [vmem:[#allocation4 + $0x130] sm:$0xff] %v987
    %1084 = vst [vmem:[#allocation4 + $0x138] sm:$0xff] %v989
    %1085 = vst [vmem:[#allocation4 + $0x140] sm:$0xff] %v652
    %1086 = vst [vmem:[#allocation4 + $0x148] sm:$0xff] %v654
    %1087 = vst [vmem:[#allocation4 + $0x150] sm:$0xff] %v765
    %1088 = vst [vmem:[#allocation4 + $0x158] sm:$0xff] %v767
    %1089 = vst [vmem:[#allocation4 + $0x160] sm:$0xff] %v878
    %1090 = vst [vmem:[#allocation4 + $0x168] sm:$0xff] %v880
    %1091 = vst [vmem:[#allocation4 + $0x170] sm:$0xff] %v991
    %1092 = vst [vmem:[#allocation4 + $0x178] sm:$0xff] %v993
    %1093 = vst [vmem:[#allocation4 + $0x180] sm:$0xff] %v658
    %1094 = vst [vmem:[#allocation4 + $0x188] sm:$0xff] %v660
    %1095 = vst [vmem:[#allocation4 + $0x190] sm:$0xff] %v771
    %1096 = vst [vmem:[#allocation4 + $0x198] sm:$0xff] %v773
    %1097 = vst [vmem:[#allocation4 + $0x1a0] sm:$0xff] %v884
    %1098 = vst [vmem:[#allocation4 + $0x1a8] sm:$0xff] %v886
    %1099 = vst [vmem:[#allocation4 + $0x1b0] sm:$0xff] %v997
    %1100 = vst [vmem:[#allocation4 + $0x1b8] sm:$0xff] %v999
    %1101 = vst [vmem:[#allocation4 + $0x1c0] sm:$0xff] %v662
    %1102 = vst [vmem:[#allocation4 + $0x1c8] sm:$0xff] %v664
    %1103 = vst [vmem:[#allocation4 + $0x1d0] sm:$0xff] %v775
    %1104 = vst [vmem:[#allocation4 + $0x1d8] sm:$0xff] %v777
    %1105 = vst [vmem:[#allocation4 + $0x1e0] sm:$0xff] %v888
    %1106 = vst [vmem:[#allocation4 + $0x1e8] sm:$0xff] %v890
    %1107 = vst [vmem:[#allocation4 + $0x1f0] sm:$0xff] %v1001
    %1108 = vst [vmem:[#allocation4 + $0x1f8] sm:$0xff] %v1003
    %1109 = vst [vmem:[#allocation4 + $0x200] sm:$0xff] %v668
    %1110 = vst [vmem:[#allocation4 + $0x208] sm:$0xff] %v670
    %1111 = vst [vmem:[#allocation4 + $0x210] sm:$0xff] %v781
    %1112 = vst [vmem:[#allocation4 + $0x218] sm:$0xff] %v783
    %1113 = vst [vmem:[#allocation4 + $0x220] sm:$0xff] %v894
    %1114 = vst [vmem:[#allocation4 + $0x228] sm:$0xff] %v896
    %1115 = vst [vmem:[#allocation4 + $0x230] sm:$0xff] %v1007
    %1116 = vst [vmem:[#allocation4 + $0x238] sm:$0xff] %v1009
    %1117 = vst [vmem:[#allocation4 + $0x240] sm:$0xff] %v672
    %1118 = vst [vmem:[#allocation4 + $0x248] sm:$0xff] %v674
    %1119 = vst [vmem:[#allocation4 + $0x250] sm:$0xff] %v785
    %1120 = vst [vmem:[#allocation4 + $0x258] sm:$0xff] %v787
    %1121 = vst [vmem:[#allocation4 + $0x260] sm:$0xff] %v898
    %1122 = vst [vmem:[#allocation4 + $0x268] sm:$0xff] %v900
    %1123 = vst [vmem:[#allocation4 + $0x270] sm:$0xff] %v1011
    %1124 = vst [vmem:[#allocation4 + $0x278] sm:$0xff] %v1013
    %1125 = vst [vmem:[#allocation4 + $0x280] sm:$0xff] %v678
    %1126 = vst [vmem:[#allocation4 + $0x288] sm:$0xff] %v680
    %1127 = vst [vmem:[#allocation4 + $0x290] sm:$0xff] %v791
    %1128 = vst [vmem:[#allocation4 + $0x298] sm:$0xff] %v793
    %1129 = vst [vmem:[#allocation4 + $0x2a0] sm:$0xff] %v904
    %1130 = vst [vmem:[#allocation4 + $0x2a8] sm:$0xff] %v906
    %1131 = vst [vmem:[#allocation4 + $0x2b0] sm:$0xff] %v1017
    %1132 = vst [vmem:[#allocation4 + $0x2b8] sm:$0xff] %v1019
    %1133 = vst [vmem:[#allocation4 + $0x2c0] sm:$0xff] %v682
    %1134 = vst [vmem:[#allocation4 + $0x2c8] sm:$0xff] %v684
    %1135 = vst [vmem:[#allocation4 + $0x2d0] sm:$0xff] %v795
    %1136 = vst [vmem:[#allocation4 + $0x2d8] sm:$0xff] %v797
    %1137 = vst [vmem:[#allocation4 + $0x2e0] sm:$0xff] %v908
    %1138 = vst [vmem:[#allocation4 + $0x2e8] sm:$0xff] %v910
    %1139 = vst [vmem:[#allocation4 + $0x2f0] sm:$0xff] %v1021
    %1140 = vst [vmem:[#allocation4 + $0x2f8] sm:$0xff] %v1023
    %1141 = vst [vmem:[#allocation4 + $0x300] sm:$0xff] %v688
    %1142 = vst [vmem:[#allocation4 + $0x308] sm:$0xff] %v690
    %1143 = vst [vmem:[#allocation4 + $0x310] sm:$0xff] %v801
    %1144 = vst [vmem:[#allocation4 + $0x318] sm:$0xff] %v803
    %1145 = vst [vmem:[#allocation4 + $0x320] sm:$0xff] %v914
    %1146 = vst [vmem:[#allocation4 + $0x328] sm:$0xff] %v916
    %1147 = vst [vmem:[#allocation4 + $0x330] sm:$0xff] %v1027
    %1148 = vst [vmem:[#allocation4 + $0x338] sm:$0xff] %v1029
    %1149 = vst [vmem:[#allocation4 + $0x340] sm:$0xff] %v692
    %1150 = vst [vmem:[#allocation4 + $0x348] sm:$0xff] %v694
    %1151 = vst [vmem:[#allocation4 + $0x350] sm:$0xff] %v805
    %1152 = vst [vmem:[#allocation4 + $0x358] sm:$0xff] %v807
    %1153 = vst [vmem:[#allocation4 + $0x360] sm:$0xff] %v918
    %1154 = vst [vmem:[#allocation4 + $0x368] sm:$0xff] %v920
    %1155 = vst [vmem:[#allocation4 + $0x370] sm:$0xff] %v1031
    %1156 = vst [vmem:[#allocation4 + $0x378] sm:$0xff] %v1033
    %1157 = vst [vmem:[#allocation4 + $0x380] sm:$0xff] %v698
    %1158 = vst [vmem:[#allocation4 + $0x388] sm:$0xff] %v700
    %1159 = vst [vmem:[#allocation4 + $0x390] sm:$0xff] %v811
    %1160 = vst [vmem:[#allocation4 + $0x398] sm:$0xff] %v813
    %1161 = vst [vmem:[#allocation4 + $0x3a0] sm:$0xff] %v924
    %1162 = vst [vmem:[#allocation4 + $0x3a8] sm:$0xff] %v926
    %1163 = vst [vmem:[#allocation4 + $0x3b0] sm:$0xff] %v1037
    %1164 = vst [vmem:[#allocation4 + $0x3b8] sm:$0xff] %v1039
    %1165 = vst [vmem:[#allocation4 + $0x3c0] sm:$0xff] %v702
    %1166 = vst [vmem:[#allocation4 + $0x3c8] sm:$0xff] %v704
    %1167 = vst [vmem:[#allocation4 + $0x3d0] sm:$0xff] %v815
    %1168 = vst [vmem:[#allocation4 + $0x3d8] sm:$0xff] %v817
    %1169 = vst [vmem:[#allocation4 + $0x3e0] sm:$0xff] %v928
    %1170 = vst [vmem:[#allocation4 + $0x3e8] sm:$0xff] %v930
    %1171 = vst [vmem:[#allocation4 + $0x3f0] sm:$0xff] %v1041
    %1172 = vst [vmem:[#allocation4 + $0x3f8] sm:$0xff] %v1043
    %v1173 = vld [vmem:[#allocation2] sm:$0xff]
    %v1174 = vld [vmem:[#allocation2 + $0x8] sm:$0xff]
    %v1175 = vld [vmem:[#allocation2 + $0x10] sm:$0xff]
    %v1176 = vld [vmem:[#allocation2 + $0x18] sm:$0xff]
    %v1177 = vld [vmem:[#allocation3] sm:$0xff]
    %v1178 = vld [vmem:[#allocation3 + $0x8] sm:$0xff]
    %v1179 = vld [vmem:[#allocation3 + $0x10] sm:$0xff]
    %v1180 = vld [vmem:[#allocation3 + $0x18] sm:$0xff]
    %s1181 = smul.u32 0, 8
    %s1182 = smul.addr %s1181, 8
    %s1183 = scalar_lea.vmem [#allocation4], %s1182
    %v1184 = vld [vmem:[%s1183] sm:$0xff]
    %v1185 = vld [vmem:[%s1183 + $0x8] sm:$0xff]
    %v1186 = vld [vmem:[%s1183 + $0x10] sm:$0xff]
    %v1187 = vld [vmem:[%s1183 + $0x18] sm:$0xff]
    %v1188 = vld [vmem:[%s1183 + $0x20] sm:$0xff]
    %v1189 = vld [vmem:[%s1183 + $0x28] sm:$0xff]
    %v1190 = vld [vmem:[%s1183 + $0x30] sm:$0xff]
    %v1191 = vld [vmem:[%s1183 + $0x38] sm:$0xff]
    %v1192 = vld [vmem:[%s1183 + $0x40] sm:$0xff]
    %v1193 = vld [vmem:[%s1183 + $0x48] sm:$0xff]
    %v1194 = vld [vmem:[%s1183 + $0x50] sm:$0xff]
    %v1195 = vld [vmem:[%s1183 + $0x58] sm:$0xff]
    %v1196 = vld [vmem:[%s1183 + $0x60] sm:$0xff]
    %v1197 = vld [vmem:[%s1183 + $0x68] sm:$0xff]
    %v1198 = vld [vmem:[%s1183 + $0x70] sm:$0xff]
    %v1199 = vld [vmem:[%s1183 + $0x78] sm:$0xff]
    %v1200 = vpack.c.bf16 %v1175, %v1173
    %v1201 = vpack.c.bf16 %v1176, %v1174
    %v1202 = vld [vmem:[#allocation10] sm:$0xff]
    %v1203 = vld [vmem:[#allocation10 + $0x8] sm:$0xff]
    %v1204 = vld [vmem:[#allocation10 + $0x10] sm:$0xff]
    %v1205 = vld [vmem:[#allocation10 + $0x18] sm:$0xff]
    %v1206 = vld [vmem:[#allocation10 + $0x20] sm:$0xff]
    %v1207 = vld [vmem:[#allocation10 + $0x28] sm:$0xff]
    %v1208 = vld [vmem:[#allocation10 + $0x30] sm:$0xff]
    %v1209 = vld [vmem:[#allocation10 + $0x38] sm:$0xff]
    %v1210 = vld [vmem:[#allocation10 + $0x40] sm:$0xff]
    %v1211 = vld [vmem:[#allocation10 + $0x48] sm:$0xff]
    %v1212 = vld [vmem:[#allocation10 + $0x50] sm:$0xff]
    %v1213 = vld [vmem:[#allocation10 + $0x58] sm:$0xff]
    %v1214 = vld [vmem:[#allocation10 + $0x60] sm:$0xff]
    %v1215 = vld [vmem:[#allocation10 + $0x68] sm:$0xff]
    %v1216 = vld [vmem:[#allocation10 + $0x70] sm:$0xff]
    %v1217 = vld [vmem:[#allocation10 + $0x78] sm:$0xff]
    %v1218 = vld [vmem:[#allocation10 + $0x80] sm:$0xff]
    %v1219 = vld [vmem:[#allocation10 + $0x88] sm:$0xff]
    %v1220 = vld [vmem:[#allocation10 + $0x90] sm:$0xff]
    %v1221 = vld [vmem:[#allocation10 + $0x98] sm:$0xff]
    %v1222 = vld [vmem:[#allocation10 + $0xa0] sm:$0xff]
    %v1223 = vld [vmem:[#allocation10 + $0xa8] sm:$0xff]
    %v1224 = vld [vmem:[#allocation10 + $0xb0] sm:$0xff]
    %v1225 = vld [vmem:[#allocation10 + $0xb8] sm:$0xff]
    %v1226 = vld [vmem:[#allocation10 + $0xc0] sm:$0xff]
    %v1227 = vld [vmem:[#allocation10 + $0xc8] sm:$0xff]
    %v1228 = vld [vmem:[#allocation10 + $0xd0] sm:$0xff]
    %v1229 = vld [vmem:[#allocation10 + $0xd8] sm:$0xff]
    %v1230 = vld [vmem:[#allocation10 + $0xe0] sm:$0xff]
    %v1231 = vld [vmem:[#allocation10 + $0xe8] sm:$0xff]
    %v1232 = vld [vmem:[#allocation10 + $0xf0] sm:$0xff]
    %v1233 = vld [vmem:[#allocation10 + $0xf8] sm:$0xff]
    %v1234 = vld [vmem:[#allocation10 + $0x100] sm:$0xff]
    %v1235 = vld [vmem:[#allocation10 + $0x108] sm:$0xff]
    %v1236 = vld [vmem:[#allocation10 + $0x110] sm:$0xff]
    %v1237 = vld [vmem:[#allocation10 + $0x118] sm:$0xff]
    %v1238 = vld [vmem:[#allocation10 + $0x120] sm:$0xff]
    %v1239 = vld [vmem:[#allocation10 + $0x128] sm:$0xff]
    %v1240 = vld [vmem:[#allocation10 + $0x130] sm:$0xff]
    %v1241 = vld [vmem:[#allocation10 + $0x138] sm:$0xff]
    %v1242 = vld [vmem:[#allocation10 + $0x140] sm:$0xff]
    %v1243 = vld [vmem:[#allocation10 + $0x148] sm:$0xff]
    %v1244 = vld [vmem:[#allocation10 + $0x150] sm:$0xff]
    %v1245 = vld [vmem:[#allocation10 + $0x158] sm:$0xff]
    %v1246 = vld [vmem:[#allocation10 + $0x160] sm:$0xff]
    %v1247 = vld [vmem:[#allocation10 + $0x168] sm:$0xff]
    %v1248 = vld [vmem:[#allocation10 + $0x170] sm:$0xff]
    %v1249 = vld [vmem:[#allocation10 + $0x178] sm:$0xff]
    %v1250 = vld [vmem:[#allocation10 + $0x180] sm:$0xff]
    %v1251 = vld [vmem:[#allocation10 + $0x188] sm:$0xff]
    %v1252 = vld [vmem:[#allocation10 + $0x190] sm:$0xff]
    %v1253 = vld [vmem:[#allocation10 + $0x198] sm:$0xff]
    %v1254 = vld [vmem:[#allocation10 + $0x1a0] sm:$0xff]
    %v1255 = vld [vmem:[#allocation10 + $0x1a8] sm:$0xff]
    %v1256 = vld [vmem:[#allocation10 + $0x1b0] sm:$0xff]
    %v1257 = vld [vmem:[#allocation10 + $0x1b8] sm:$0xff]
    %v1258 = vld [vmem:[#allocation10 + $0x1c0] sm:$0xff]
    %v1259 = vld [vmem:[#allocation10 + $0x1c8] sm:$0xff]
    %v1260 = vld [vmem:[#allocation10 + $0x1d0] sm:$0xff]
    %v1261 = vld [vmem:[#allocation10 + $0x1d8] sm:$0xff]
    %v1262 = vld [vmem:[#allocation10 + $0x1e0] sm:$0xff]
    %v1263 = vld [vmem:[#allocation10 + $0x1e8] sm:$0xff]
    %v1264 = vld [vmem:[#allocation10 + $0x1f0] sm:$0xff]
    %v1265 = vld [vmem:[#allocation10 + $0x1f8] sm:$0xff]
    %v1266 = vld [vmem:[#allocation10 + $0x200] sm:$0xff]
    %v1267 = vld [vmem:[#allocation10 + $0x208] sm:$0xff]
    %v1268 = vld [vmem:[#allocation10 + $0x210] sm:$0xff]
    %v1269 = vld [vmem:[#allocation10 + $0x218] sm:$0xff]
    %v1270 = vld [vmem:[#allocation10 + $0x220] sm:$0xff]
    %v1271 = vld [vmem:[#allocation10 + $0x228] sm:$0xff]
    %v1272 = vld [vmem:[#allocation10 + $0x230] sm:$0xff]
    %v1273 = vld [vmem:[#allocation10 + $0x238] sm:$0xff]
    %v1274 = vld [vmem:[#allocation10 + $0x240] sm:$0xff]
    %v1275 = vld [vmem:[#allocation10 + $0x248] sm:$0xff]
    %v1276 = vld [vmem:[#allocation10 + $0x250] sm:$0xff]
    %v1277 = vld [vmem:[#allocation10 + $0x258] sm:$0xff]
    %v1278 = vld [vmem:[#allocation10 + $0x260] sm:$0xff]
    %v1279 = vld [vmem:[#allocation10 + $0x268] sm:$0xff]
    %v1280 = vld [vmem:[#allocation10 + $0x270] sm:$0xff]
    %v1281 = vld [vmem:[#allocation10 + $0x278] sm:$0xff]
    %v1282 = vld [vmem:[#allocation10 + $0x280] sm:$0xff]
    %v1283 = vld [vmem:[#allocation10 + $0x288] sm:$0xff]
    %v1284 = vld [vmem:[#allocation10 + $0x290] sm:$0xff]
    %v1285 = vld [vmem:[#allocation10 + $0x298] sm:$0xff]
    %v1286 = vld [vmem:[#allocation10 + $0x2a0] sm:$0xff]
    %v1287 = vld [vmem:[#allocation10 + $0x2a8] sm:$0xff]
    %v1288 = vld [vmem:[#allocation10 + $0x2b0] sm:$0xff]
    %v1289 = vld [vmem:[#allocation10 + $0x2b8] sm:$0xff]
    %v1290 = vld [vmem:[#allocation10 + $0x2c0] sm:$0xff]
    %v1291 = vld [vmem:[#allocation10 + $0x2c8] sm:$0xff]
    %v1292 = vld [vmem:[#allocation10 + $0x2d0] sm:$0xff]
    %v1293 = vld [vmem:[#allocation10 + $0x2d8] sm:$0xff]
    %v1294 = vld [vmem:[#allocation10 + $0x2e0] sm:$0xff]
    %v1295 = vld [vmem:[#allocation10 + $0x2e8] sm:$0xff]
    %v1296 = vld [vmem:[#allocation10 + $0x2f0] sm:$0xff]
    %v1297 = vld [vmem:[#allocation10 + $0x2f8] sm:$0xff]
    %v1298 = vld [vmem:[#allocation10 + $0x300] sm:$0xff]
    %v1299 = vld [vmem:[#allocation10 + $0x308] sm:$0xff]
    %v1300 = vld [vmem:[#allocation10 + $0x310] sm:$0xff]
    %v1301 = vld [vmem:[#allocation10 + $0x318] sm:$0xff]
    %v1302 = vld [vmem:[#allocation10 + $0x320] sm:$0xff]
    %v1303 = vld [vmem:[#allocation10 + $0x328] sm:$0xff]
    %v1304 = vld [vmem:[#allocation10 + $0x330] sm:$0xff]
    %v1305 = vld [vmem:[#allocation10 + $0x338] sm:$0xff]
    %v1306 = vld [vmem:[#allocation10 + $0x340] sm:$0xff]
    %v1307 = vld [vmem:[#allocation10 + $0x348] sm:$0xff]
    %v1308 = vld [vmem:[#allocation10 + $0x350] sm:$0xff]
    %v1309 = vld [vmem:[#allocation10 + $0x358] sm:$0xff]
    %v1310 = vld [vmem:[#allocation10 + $0x360] sm:$0xff]
    %v1311 = vld [vmem:[#allocation10 + $0x368] sm:$0xff]
    %v1312 = vld [vmem:[#allocation10 + $0x370] sm:$0xff]
    %v1313 = vld [vmem:[#allocation10 + $0x378] sm:$0xff]
    %v1314 = vld [vmem:[#allocation10 + $0x380] sm:$0xff]
    %v1315 = vld [vmem:[#allocation10 + $0x388] sm:$0xff]
    %v1316 = vld [vmem:[#allocation10 + $0x390] sm:$0xff]
    %v1317 = vld [vmem:[#allocation10 + $0x398] sm:$0xff]
    %v1318 = vld [vmem:[#allocation10 + $0x3a0] sm:$0xff]
    %v1319 = vld [vmem:[#allocation10 + $0x3a8] sm:$0xff]
    %v1320 = vld [vmem:[#allocation10 + $0x3b0] sm:$0xff]
    %v1321 = vld [vmem:[#allocation10 + $0x3b8] sm:$0xff]
    %v1322 = vld [vmem:[#allocation10 + $0x3c0] sm:$0xff]
    %v1323 = vld [vmem:[#allocation10 + $0x3c8] sm:$0xff]
    %v1324 = vld [vmem:[#allocation10 + $0x3d0] sm:$0xff]
    %v1325 = vld [vmem:[#allocation10 + $0x3d8] sm:$0xff]
    %v1326 = vld [vmem:[#allocation10 + $0x3e0] sm:$0xff]
    %v1327 = vld [vmem:[#allocation10 + $0x3e8] sm:$0xff]
    %v1328 = vld [vmem:[#allocation10 + $0x3f0] sm:$0xff]
    %v1329 = vld [vmem:[#allocation10 + $0x3f8] sm:$0xff]
    %v1458 = vunpack.c.l.b16 %v1202
    %v1459 = vunpack.c.h.b16 %v1202
    %v1460 = vunpack.c.l.b16 %v1203
    %v1461 = vunpack.c.h.b16 %v1203
    %v1462 = vunpack.c.l.b16 %v1204
    %v1463 = vunpack.c.h.b16 %v1204
    %v1464 = vunpack.c.l.b16 %v1205
    %v1465 = vunpack.c.h.b16 %v1205
    %v1466 = vunpack.c.l.b16 %v1206
    %v1467 = vunpack.c.h.b16 %v1206
    %v1468 = vunpack.c.l.b16 %v1207
    %v1469 = vunpack.c.h.b16 %v1207
    %v1470 = vunpack.c.l.b16 %v1208
    %v1471 = vunpack.c.h.b16 %v1208
    %v1472 = vunpack.c.l.b16 %v1209
    %v1473 = vunpack.c.h.b16 %v1209
    %v1474 = vunpack.c.l.b16 %v1210
    %v1475 = vunpack.c.h.b16 %v1210
    %v1476 = vunpack.c.l.b16 %v1211
    %v1477 = vunpack.c.h.b16 %v1211
    %v1478 = vunpack.c.l.b16 %v1212
    %v1479 = vunpack.c.h.b16 %v1212
    %v1480 = vunpack.c.l.b16 %v1213
    %v1481 = vunpack.c.h.b16 %v1213
    %v1482 = vunpack.c.l.b16 %v1214
    %v1483 = vunpack.c.h.b16 %v1214
    %v1484 = vunpack.c.l.b16 %v1215
    %v1485 = vunpack.c.h.b16 %v1215
    %v1486 = vunpack.c.l.b16 %v1216
    %v1487 = vunpack.c.h.b16 %v1216
    %v1488 = vunpack.c.l.b16 %v1217
    %v1489 = vunpack.c.h.b16 %v1217
    %v1490 = vunpack.c.l.b16 %v1218
    %v1491 = vunpack.c.h.b16 %v1218
    %v1492 = vunpack.c.l.b16 %v1219
    %v1493 = vunpack.c.h.b16 %v1219
    %v1494 = vunpack.c.l.b16 %v1220
    %v1495 = vunpack.c.h.b16 %v1220
    %v1496 = vunpack.c.l.b16 %v1221
    %v1497 = vunpack.c.h.b16 %v1221
    %v1498 = vunpack.c.l.b16 %v1222
    %v1499 = vunpack.c.h.b16 %v1222
    %v1500 = vunpack.c.l.b16 %v1223
    %v1501 = vunpack.c.h.b16 %v1223
    %v1502 = vunpack.c.l.b16 %v1224
    %v1503 = vunpack.c.h.b16 %v1224
    %v1504 = vunpack.c.l.b16 %v1225
    %v1505 = vunpack.c.h.b16 %v1225
    %v1506 = vunpack.c.l.b16 %v1226
    %v1507 = vunpack.c.h.b16 %v1226
    %v1508 = vunpack.c.l.b16 %v1227
    %v1509 = vunpack.c.h.b16 %v1227
    %v1510 = vunpack.c.l.b16 %v1228
    %v1511 = vunpack.c.h.b16 %v1228
    %v1512 = vunpack.c.l.b16 %v1229
    %v1513 = vunpack.c.h.b16 %v1229
    %v1514 = vunpack.c.l.b16 %v1230
    %v1515 = vunpack.c.h.b16 %v1230
    %v1516 = vunpack.c.l.b16 %v1231
    %v1517 = vunpack.c.h.b16 %v1231
    %v1518 = vunpack.c.l.b16 %v1232
    %v1519 = vunpack.c.h.b16 %v1232
    %v1520 = vunpack.c.l.b16 %v1233
    %v1521 = vunpack.c.h.b16 %v1233
    %v1522 = vunpack.c.l.b16 %v1234
    %v1523 = vunpack.c.h.b16 %v1234
    %v1524 = vunpack.c.l.b16 %v1235
    %v1525 = vunpack.c.h.b16 %v1235
    %v1526 = vunpack.c.l.b16 %v1236
    %v1527 = vunpack.c.h.b16 %v1236
    %v1528 = vunpack.c.l.b16 %v1237
    %v1529 = vunpack.c.h.b16 %v1237
    %v1530 = vunpack.c.l.b16 %v1238
    %v1531 = vunpack.c.h.b16 %v1238
    %v1532 = vunpack.c.l.b16 %v1239
    %v1533 = vunpack.c.h.b16 %v1239
    %v1534 = vunpack.c.l.b16 %v1240
    %v1535 = vunpack.c.h.b16 %v1240
    %v1536 = vunpack.c.l.b16 %v1241
    %v1537 = vunpack.c.h.b16 %v1241
    %v1538 = vunpack.c.l.b16 %v1242
    %v1539 = vunpack.c.h.b16 %v1242
    %v1540 = vunpack.c.l.b16 %v1243
    %v1541 = vunpack.c.h.b16 %v1243
    %v1542 = vunpack.c.l.b16 %v1244
    %v1543 = vunpack.c.h.b16 %v1244
    %v1544 = vunpack.c.l.b16 %v1245
    %v1545 = vunpack.c.h.b16 %v1245
    %v1546 = vunpack.c.l.b16 %v1246
    %v1547 = vunpack.c.h.b16 %v1246
    %v1548 = vunpack.c.l.b16 %v1247
    %v1549 = vunpack.c.h.b16 %v1247
    %v1550 = vunpack.c.l.b16 %v1248
    %v1551 = vunpack.c.h.b16 %v1248
    %v1552 = vunpack.c.l.b16 %v1249
    %v1553 = vunpack.c.h.b16 %v1249
    %v1554 = vunpack.c.l.b16 %v1250
    %v1555 = vunpack.c.h.b16 %v1250
    %v1556 = vunpack.c.l.b16 %v1251
    %v1557 = vunpack.c.h.b16 %v1251
    %v1558 = vunpack.c.l.b16 %v1252
    %v1559 = vunpack.c.h.b16 %v1252
    %v1560 = vunpack.c.l.b16 %v1253
    %v1561 = vunpack.c.h.b16 %v1253
    %v1562 = vunpack.c.l.b16 %v1254
    %v1563 = vunpack.c.h.b16 %v1254
    %v1564 = vunpack.c.l.b16 %v1255
    %v1565 = vunpack.c.h.b16 %v1255
    %v1566 = vunpack.c.l.b16 %v1256
    %v1567 = vunpack.c.h.b16 %v1256
    %v1568 = vunpack.c.l.b16 %v1257
    %v1569 = vunpack.c.h.b16 %v1257
    %v1570 = vunpack.c.l.b16 %v1258
    %v1571 = vunpack.c.h.b16 %v1258
    %v1572 = vunpack.c.l.b16 %v1259
    %v1573 = vunpack.c.h.b16 %v1259
    %v1574 = vunpack.c.l.b16 %v1260
    %v1575 = vunpack.c.h.b16 %v1260
    %v1576 = vunpack.c.l.b16 %v1261
    %v1577 = vunpack.c.h.b16 %v1261
    %v1578 = vunpack.c.l.b16 %v1262
    %v1579 = vunpack.c.h.b16 %v1262
    %v1580 = vunpack.c.l.b16 %v1263
    %v1581 = vunpack.c.h.b16 %v1263
    %v1582 = vunpack.c.l.b16 %v1264
    %v1583 = vunpack.c.h.b16 %v1264
    %v1584 = vunpack.c.l.b16 %v1265
    %v1585 = vunpack.c.h.b16 %v1265
    %v1586 = vunpack.c.l.b16 %v1266
    %v1587 = vunpack.c.h.b16 %v1266
    %v1588 = vunpack.c.l.b16 %v1267
    %v1589 = vunpack.c.h.b16 %v1267
    %v1590 = vunpack.c.l.b16 %v1268
    %v1591 = vunpack.c.h.b16 %v1268
    %v1592 = vunpack.c.l.b16 %v1269
    %v1593 = vunpack.c.h.b16 %v1269
    %v1594 = vunpack.c.l.b16 %v1270
    %v1595 = vunpack.c.h.b16 %v1270
    %v1596 = vunpack.c.l.b16 %v1271
    %v1597 = vunpack.c.h.b16 %v1271
    %v1598 = vunpack.c.l.b16 %v1272
    %v1599 = vunpack.c.h.b16 %v1272
    %v1600 = vunpack.c.l.b16 %v1273
    %v1601 = vunpack.c.h.b16 %v1273
    %v1602 = vunpack.c.l.b16 %v1274
    %v1603 = vunpack.c.h.b16 %v1274
    %v1604 = vunpack.c.l.b16 %v1275
    %v1605 = vunpack.c.h.b16 %v1275
    %v1606 = vunpack.c.l.b16 %v1276
    %v1607 = vunpack.c.h.b16 %v1276
    %v1608 = vunpack.c.l.b16 %v1277
    %v1609 = vunpack.c.h.b16 %v1277
    %v1610 = vunpack.c.l.b16 %v1278
    %v1611 = vunpack.c.h.b16 %v1278
    %v1612 = vunpack.c.l.b16 %v1279
    %v1613 = vunpack.c.h.b16 %v1279
    %v1614 = vunpack.c.l.b16 %v1280
    %v1615 = vunpack.c.h.b16 %v1280
    %v1616 = vunpack.c.l.b16 %v1281
    %v1617 = vunpack.c.h.b16 %v1281
    %v1618 = vunpack.c.l.b16 %v1282
    %v1619 = vunpack.c.h.b16 %v1282
    %v1620 = vunpack.c.l.b16 %v1283
    %v1621 = vunpack.c.h.b16 %v1283
    %v1622 = vunpack.c.l.b16 %v1284
    %v1623 = vunpack.c.h.b16 %v1284
    %v1624 = vunpack.c.l.b16 %v1285
    %v1625 = vunpack.c.h.b16 %v1285
    %v1626 = vunpack.c.l.b16 %v1286
    %v1627 = vunpack.c.h.b16 %v1286
    %v1628 = vunpack.c.l.b16 %v1287
    %v1629 = vunpack.c.h.b16 %v1287
    %v1630 = vunpack.c.l.b16 %v1288
    %v1631 = vunpack.c.h.b16 %v1288
    %v1632 = vunpack.c.l.b16 %v1289
    %v1633 = vunpack.c.h.b16 %v1289
    %v1634 = vunpack.c.l.b16 %v1290
    %v1635 = vunpack.c.h.b16 %v1290
    %v1636 = vunpack.c.l.b16 %v1291
    %v1637 = vunpack.c.h.b16 %v1291
    %v1638 = vunpack.c.l.b16 %v1292
    %v1639 = vunpack.c.h.b16 %v1292
    %v1640 = vunpack.c.l.b16 %v1293
    %v1641 = vunpack.c.h.b16 %v1293
    %v1642 = vunpack.c.l.b16 %v1294
    %v1643 = vunpack.c.h.b16 %v1294
    %v1644 = vunpack.c.l.b16 %v1295
    %v1645 = vunpack.c.h.b16 %v1295
    %v1646 = vunpack.c.l.b16 %v1296
    %v1647 = vunpack.c.h.b16 %v1296
    %v1648 = vunpack.c.l.b16 %v1297
    %v1649 = vunpack.c.h.b16 %v1297
    %v1650 = vunpack.c.l.b16 %v1298
    %v1651 = vunpack.c.h.b16 %v1298
    %v1652 = vunpack.c.l.b16 %v1299
    %v1653 = vunpack.c.h.b16 %v1299
    %v1654 = vunpack.c.l.b16 %v1300
    %v1655 = vunpack.c.h.b16 %v1300
    %v1656 = vunpack.c.l.b16 %v1301
    %v1657 = vunpack.c.h.b16 %v1301
    %v1658 = vunpack.c.l.b16 %v1302
    %v1659 = vunpack.c.h.b16 %v1302
    %v1660 = vunpack.c.l.b16 %v1303
    %v1661 = vunpack.c.h.b16 %v1303
    %v1662 = vunpack.c.l.b16 %v1304
    %v1663 = vunpack.c.h.b16 %v1304
    %v1664 = vunpack.c.l.b16 %v1305
    %v1665 = vunpack.c.h.b16 %v1305
    %v1666 = vunpack.c.l.b16 %v1306
    %v1667 = vunpack.c.h.b16 %v1306
    %v1668 = vunpack.c.l.b16 %v1307
    %v1669 = vunpack.c.h.b16 %v1307
    %v1670 = vunpack.c.l.b16 %v1308
    %v1671 = vunpack.c.h.b16 %v1308
    %v1672 = vunpack.c.l.b16 %v1309
    %v1673 = vunpack.c.h.b16 %v1309
    %v1674 = vunpack.c.l.b16 %v1310
    %v1675 = vunpack.c.h.b16 %v1310
    %v1676 = vunpack.c.l.b16 %v1311
    %v1677 = vunpack.c.h.b16 %v1311
    %v1678 = vunpack.c.l.b16 %v1312
    %v1679 = vunpack.c.h.b16 %v1312
    %v1680 = vunpack.c.l.b16 %v1313
    %v1681 = vunpack.c.h.b16 %v1313
    %v1682 = vunpack.c.l.b16 %v1314
    %v1683 = vunpack.c.h.b16 %v1314
    %v1684 = vunpack.c.l.b16 %v1315
    %v1685 = vunpack.c.h.b16 %v1315
    %v1686 = vunpack.c.l.b16 %v1316
    %v1687 = vunpack.c.h.b16 %v1316
    %v1688 = vunpack.c.l.b16 %v1317
    %v1689 = vunpack.c.h.b16 %v1317
    %v1690 = vunpack.c.l.b16 %v1318
    %v1691 = vunpack.c.h.b16 %v1318
    %v1692 = vunpack.c.l.b16 %v1319
    %v1693 = vunpack.c.h.b16 %v1319
    %v1694 = vunpack.c.l.b16 %v1320
    %v1695 = vunpack.c.h.b16 %v1320
    %v1696 = vunpack.c.l.b16 %v1321
    %v1697 = vunpack.c.h.b16 %v1321
    %v1698 = vunpack.c.l.b16 %v1322
    %v1699 = vunpack.c.h.b16 %v1322
    %v1700 = vunpack.c.l.b16 %v1323
    %v1701 = vunpack.c.h.b16 %v1323
    %v1702 = vunpack.c.l.b16 %v1324
    %v1703 = vunpack.c.h.b16 %v1324
    %v1704 = vunpack.c.l.b16 %v1325
    %v1705 = vunpack.c.h.b16 %v1325
    %v1706 = vunpack.c.l.b16 %v1326
    %v1707 = vunpack.c.h.b16 %v1326
    %v1708 = vunpack.c.l.b16 %v1327
    %v1709 = vunpack.c.h.b16 %v1327
    %v1710 = vunpack.c.l.b16 %v1328
    %v1711 = vunpack.c.h.b16 %v1328
    %v1712 = vunpack.c.l.b16 %v1329
    %v1713 = vunpack.c.h.b16 %v1329
    %v1714 = vpack.c.b16 %v1466, %v1458
    %v1715 = vpack.c.b16 %v1467, %v1459
    %v1716 = vpack.c.b16 %v1468, %v1460
    %v1717 = vpack.c.b16 %v1469, %v1461
    %v1718 = vpack.c.b16 %v1470, %v1462
    %v1719 = vpack.c.b16 %v1471, %v1463
    %v1720 = vpack.c.b16 %v1472, %v1464
    %v1721 = vpack.c.b16 %v1473, %v1465
    %v1722 = vpack.c.b16 %v1482, %v1474
    %v1723 = vpack.c.b16 %v1483, %v1475
    %v1724 = vpack.c.b16 %v1484, %v1476
    %v1725 = vpack.c.b16 %v1485, %v1477
    %v1726 = vpack.c.b16 %v1486, %v1478
    %v1727 = vpack.c.b16 %v1487, %v1479
    %v1728 = vpack.c.b16 %v1488, %v1480
    %v1729 = vpack.c.b16 %v1489, %v1481
    %v1730 = vpack.c.b16 %v1498, %v1490
    %v1731 = vpack.c.b16 %v1499, %v1491
    %v1732 = vpack.c.b16 %v1500, %v1492
    %v1733 = vpack.c.b16 %v1501, %v1493
    %v1734 = vpack.c.b16 %v1502, %v1494
    %v1735 = vpack.c.b16 %v1503, %v1495
    %v1736 = vpack.c.b16 %v1504, %v1496
    %v1737 = vpack.c.b16 %v1505, %v1497
    %v1738 = vpack.c.b16 %v1514, %v1506
    %v1739 = vpack.c.b16 %v1515, %v1507
    %v1740 = vpack.c.b16 %v1516, %v1508
    %v1741 = vpack.c.b16 %v1517, %v1509
    %v1742 = vpack.c.b16 %v1518, %v1510
    %v1743 = vpack.c.b16 %v1519, %v1511
    %v1744 = vpack.c.b16 %v1520, %v1512
    %v1745 = vpack.c.b16 %v1521, %v1513
    %v1746 = vpack.c.b16 %v1530, %v1522
    %v1747 = vpack.c.b16 %v1531, %v1523
    %v1748 = vpack.c.b16 %v1532, %v1524
    %v1749 = vpack.c.b16 %v1533, %v1525
    %v1750 = vpack.c.b16 %v1534, %v1526
    %v1751 = vpack.c.b16 %v1535, %v1527
    %v1752 = vpack.c.b16 %v1536, %v1528
    %v1753 = vpack.c.b16 %v1537, %v1529
    %v1754 = vpack.c.b16 %v1546, %v1538
    %v1755 = vpack.c.b16 %v1547, %v1539
    %v1756 = vpack.c.b16 %v1548, %v1540
    %v1757 = vpack.c.b16 %v1549, %v1541
    %v1758 = vpack.c.b16 %v1550, %v1542
    %v1759 = vpack.c.b16 %v1551, %v1543
    %v1760 = vpack.c.b16 %v1552, %v1544
    %v1761 = vpack.c.b16 %v1553, %v1545
    %v1762 = vpack.c.b16 %v1562, %v1554
    %v1763 = vpack.c.b16 %v1563, %v1555
    %v1764 = vpack.c.b16 %v1564, %v1556
    %v1765 = vpack.c.b16 %v1565, %v1557
    %v1766 = vpack.c.b16 %v1566, %v1558
    %v1767 = vpack.c.b16 %v1567, %v1559
    %v1768 = vpack.c.b16 %v1568, %v1560
    %v1769 = vpack.c.b16 %v1569, %v1561
    %v1770 = vpack.c.b16 %v1578, %v1570
    %v1771 = vpack.c.b16 %v1579, %v1571
    %v1772 = vpack.c.b16 %v1580, %v1572
    %v1773 = vpack.c.b16 %v1581, %v1573
    %v1774 = vpack.c.b16 %v1582, %v1574
    %v1775 = vpack.c.b16 %v1583, %v1575
    %v1776 = vpack.c.b16 %v1584, %v1576
    %v1777 = vpack.c.b16 %v1585, %v1577
    %v1778 = vpack.c.b16 %v1594, %v1586
    %v1779 = vpack.c.b16 %v1595, %v1587
    %v1780 = vpack.c.b16 %v1596, %v1588
    %v1781 = vpack.c.b16 %v1597, %v1589
    %v1782 = vpack.c.b16 %v1598, %v1590
    %v1783 = vpack.c.b16 %v1599, %v1591
    %v1784 = vpack.c.b16 %v1600, %v1592
    %v1785 = vpack.c.b16 %v1601, %v1593
    %v1786 = vpack.c.b16 %v1610, %v1602
    %v1787 = vpack.c.b16 %v1611, %v1603
    %v1788 = vpack.c.b16 %v1612, %v1604
    %v1789 = vpack.c.b16 %v1613, %v1605
    %v1790 = vpack.c.b16 %v1614, %v1606
    %v1791 = vpack.c.b16 %v1615, %v1607
    %v1792 = vpack.c.b16 %v1616, %v1608
    %v1793 = vpack.c.b16 %v1617, %v1609
    %v1794 = vpack.c.b16 %v1626, %v1618
    %v1795 = vpack.c.b16 %v1627, %v1619
    %v1796 = vpack.c.b16 %v1628, %v1620
    %v1797 = vpack.c.b16 %v1629, %v1621
    %v1798 = vpack.c.b16 %v1630, %v1622
    %v1799 = vpack.c.b16 %v1631, %v1623
    %v1800 = vpack.c.b16 %v1632, %v1624
    %v1801 = vpack.c.b16 %v1633, %v1625
    %v1802 = vpack.c.b16 %v1642, %v1634
    %v1803 = vpack.c.b16 %v1643, %v1635
    %v1804 = vpack.c.b16 %v1644, %v1636
    %v1805 = vpack.c.b16 %v1645, %v1637
    %v1806 = vpack.c.b16 %v1646, %v1638
    %v1807 = vpack.c.b16 %v1647, %v1639
    %v1808 = vpack.c.b16 %v1648, %v1640
    %v1809 = vpack.c.b16 %v1649, %v1641
    %v1810 = vpack.c.b16 %v1658, %v1650
    %v1811 = vpack.c.b16 %v1659, %v1651
    %v1812 = vpack.c.b16 %v1660, %v1652
    %v1813 = vpack.c.b16 %v1661, %v1653
    %v1814 = vpack.c.b16 %v1662, %v1654
    %v1815 = vpack.c.b16 %v1663, %v1655
    %v1816 = vpack.c.b16 %v1664, %v1656
    %v1817 = vpack.c.b16 %v1665, %v1657
    %v1818 = vpack.c.b16 %v1674, %v1666
    %v1819 = vpack.c.b16 %v1675, %v1667
    %v1820 = vpack.c.b16 %v1676, %v1668
    %v1821 = vpack.c.b16 %v1677, %v1669
    %v1822 = vpack.c.b16 %v1678, %v1670
    %v1823 = vpack.c.b16 %v1679, %v1671
    %v1824 = vpack.c.b16 %v1680, %v1672
    %v1825 = vpack.c.b16 %v1681, %v1673
    %v1826 = vpack.c.b16 %v1690, %v1682
    %v1827 = vpack.c.b16 %v1691, %v1683
    %v1828 = vpack.c.b16 %v1692, %v1684
    %v1829 = vpack.c.b16 %v1693, %v1685
    %v1830 = vpack.c.b16 %v1694, %v1686
    %v1831 = vpack.c.b16 %v1695, %v1687
    %v1832 = vpack.c.b16 %v1696, %v1688
    %v1833 = vpack.c.b16 %v1697, %v1689
    %v1834 = vpack.c.b16 %v1706, %v1698
    %v1835 = vpack.c.b16 %v1707, %v1699
    %v1836 = vpack.c.b16 %v1708, %v1700
    %v1837 = vpack.c.b16 %v1709, %v1701
    %v1838 = vpack.c.b16 %v1710, %v1702
    %v1839 = vpack.c.b16 %v1711, %v1703
    %v1840 = vpack.c.b16 %v1712, %v1704
    %v1841 = vpack.c.b16 %v1713, %v1705
    %1970 = vmatprep.subr.bf16.mxu0 %v1771
    %1971 = vmatpush1.bf16.msra.mxu0 %v1770
    %1972 = vmatprep.subr.bf16.mxu0 %v1763
    %1973 = vmatpush1.bf16.msra.mxu0 %v1762
    %1974 = vmatprep.subr.bf16.mxu0 %v1755
    %1975 = vmatpush1.bf16.msra.mxu0 %v1754
    %1976 = vmatprep.subr.bf16.mxu0 %v1747
    %1977 = vmatpush1.bf16.msra.mxu0 %v1746
    %1978 = vmatprep.subr.bf16.mxu0 %v1739
    %1979 = vmatpush1.bf16.msra.mxu0 %v1738
    %1980 = vmatprep.subr.bf16.mxu0 %v1731
    %1981 = vmatpush1.bf16.msra.mxu0 %v1730
    %1982 = vmatprep.subr.bf16.mxu0 %v1723
    %1983 = vmatpush1.bf16.msra.mxu0 %v1722
    %1984 = vmatprep.subr.bf16.mxu0 %v1715
    %1985 = vmatpush1.bf16.msra.mxu0 %v1714
    %1986 = vmatprep.subr.bf16.mxu0 %v1835
    %1987 = vmatpush2.bf16.msra.mxu0 %v1834
    %1988 = vmatprep.subr.bf16.mxu0 %v1827
    %1989 = vmatpush2.bf16.msra.mxu0 %v1826
    %1990 = vmatprep.subr.bf16.mxu0 %v1819
    %1991 = vmatpush2.bf16.msra.mxu0 %v1818
    %1992 = vmatprep.subr.bf16.mxu0 %v1811
    %1993 = vmatpush2.bf16.msra.mxu0 %v1810
    %1994 = vmatprep.subr.bf16.mxu0 %v1803
    %1995 = vmatpush2.bf16.msra.mxu0 %v1802
    %1996 = vmatprep.subr.bf16.mxu0 %v1795
    %1997 = vmatpush2.bf16.msra.mxu0 %v1794
    %1998 = vmatprep.subr.bf16.mxu0 %v1787
    %1999 = vmatpush2.bf16.msra.mxu0 %v1786
    %2000 = vmatprep.subr.bf16.mxu0 %v1779
    %2001 = vmatpush2.bf16.msra.mxu0 %v1778
    %2002 = vmatprep.mubr.bf16.mxu0 %v1201
    %2003 = vmatmul.mubr.bf16.gmra.mxu0 %v1200
    %v2004 = vpop.f32.mrf.mxu0
    %v2005 = vadd.f32 0.0, %v2004
    %v2006 = vpop.f32.mrf.mxu0
    %v2007 = vadd.f32 0.0, %v2006
    %v2008 = vpop.f32.mrf.mxu0
    %v2009 = vadd.f32 0.0, %v2008
    %v2010 = vpop.f32.mrf.mxu0
    %v2011 = vadd.f32 0.0, %v2010
    %2012 = vdwg.mxu0
    %2013 = vmatprep.subr.bf16.mxu0 %v1773
    %2014 = vmatpush1.bf16.msra.mxu0 %v1772
    %2015 = vmatprep.subr.bf16.mxu0 %v1765
    %2016 = vmatpush1.bf16.msra.mxu0 %v1764
    %2017 = vmatprep.subr.bf16.mxu0 %v1757
    %2018 = vmatpush1.bf16.msra.mxu0 %v1756
    %2019 = vmatprep.subr.bf16.mxu0 %v1749
    %2020 = vmatpush1.bf16.msra.mxu0 %v1748
    %2021 = vmatprep.subr.bf16.mxu0 %v1741
    %2022 = vmatpush1.bf16.msra.mxu0 %v1740
    %2023 = vmatprep.subr.bf16.mxu0 %v1733
    %2024 = vmatpush1.bf16.msra.mxu0 %v1732
    %2025 = vmatprep.subr.bf16.mxu0 %v1725
    %2026 = vmatpush1.bf16.msra.mxu0 %v1724
    %2027 = vmatprep.subr.bf16.mxu0 %v1717
    %2028 = vmatpush1.bf16.msra.mxu0 %v1716
    %2029 = vmatprep.subr.bf16.mxu0 %v1837
    %2030 = vmatpush2.bf16.msra.mxu0 %v1836
    %2031 = vmatprep.subr.bf16.mxu0 %v1829
    %2032 = vmatpush2.bf16.msra.mxu0 %v1828
    %2033 = vmatprep.subr.bf16.mxu0 %v1821
    %2034 = vmatpush2.bf16.msra.mxu0 %v1820
    %2035 = vmatprep.subr.bf16.mxu0 %v1813
    %2036 = vmatpush2.bf16.msra.mxu0 %v1812
    %2037 = vmatprep.subr.bf16.mxu0 %v1805
    %2038 = vmatpush2.bf16.msra.mxu0 %v1804
    %2039 = vmatprep.subr.bf16.mxu0 %v1797
    %2040 = vmatpush2.bf16.msra.mxu0 %v1796
    %2041 = vmatprep.subr.bf16.mxu0 %v1789
    %2042 = vmatpush2.bf16.msra.mxu0 %v1788
    %2043 = vmatprep.subr.bf16.mxu0 %v1781
    %2044 = vmatpush2.bf16.msra.mxu0 %v1780
    %2045 = vmatprep.mubr.bf16.mxu0 %v1201
    %2046 = vmatmul.mubr.bf16.gmra.mxu0 %v1200
    %v2047 = vpop.f32.mrf.mxu0
    %v2048 = vadd.f32 0.0, %v2047
    %v2049 = vpop.f32.mrf.mxu0
    %v2050 = vadd.f32 0.0, %v2049
    %v2051 = vpop.f32.mrf.mxu0
    %v2052 = vadd.f32 0.0, %v2051
    %v2053 = vpop.f32.mrf.mxu0
    %v2054 = vadd.f32 0.0, %v2053
    %2055 = vdwg.mxu0
    %2056 = vmatprep.subr.bf16.mxu0 %v1775
    %2057 = vmatpush1.bf16.msra.mxu0 %v1774
    %2058 = vmatprep.subr.bf16.mxu0 %v1767
    %2059 = vmatpush1.bf16.msra.mxu0 %v1766
    %2060 = vmatprep.subr.bf16.mxu0 %v1759
    %2061 = vmatpush1.bf16.msra.mxu0 %v1758
    %2062 = vmatprep.subr.bf16.mxu0 %v1751
    %2063 = vmatpush1.bf16.msra.mxu0 %v1750
    %2064 = vmatprep.subr.bf16.mxu0 %v1743
    %2065 = vmatpush1.bf16.msra.mxu0 %v1742
    %2066 = vmatprep.subr.bf16.mxu0 %v1735
    %2067 = vmatpush1.bf16.msra.mxu0 %v1734
    %2068 = vmatprep.subr.bf16.mxu0 %v1727
    %2069 = vmatpush1.bf16.msra.mxu0 %v1726
    %2070 = vmatprep.subr.bf16.mxu0 %v1719
    %2071 = vmatpush1.bf16.msra.mxu0 %v1718
    %2072 = vmatprep.subr.bf16.mxu0 %v1839
    %2073 = vmatpush2.bf16.msra.mxu0 %v1838
    %2074 = vmatprep.subr.bf16.mxu0 %v1831
    %2075 = vmatpush2.bf16.msra.mxu0 %v1830
    %2076 = vmatprep.subr.bf16.mxu0 %v1823
    %2077 = vmatpush2.bf16.msra.mxu0 %v1822
    %2078 = vmatprep.subr.bf16.mxu0 %v1815
    %2079 = vmatpush2.bf16.msra.mxu0 %v1814
    %2080 = vmatprep.subr.bf16.mxu0 %v1807
    %2081 = vmatpush2.bf16.msra.mxu0 %v1806
    %2082 = vmatprep.subr.bf16.mxu0 %v1799
    %2083 = vmatpush2.bf16.msra.mxu0 %v1798
    %2084 = vmatprep.subr.bf16.mxu0 %v1791
    %2085 = vmatpush2.bf16.msra.mxu0 %v1790
    %2086 = vmatprep.subr.bf16.mxu0 %v1783
    %2087 = vmatpush2.bf16.msra.mxu0 %v1782
    %2088 = vmatprep.mubr.bf16.mxu0 %v1201
    %2089 = vmatmul.mubr.bf16.gmra.mxu0 %v1200
    %v2090 = vpop.f32.mrf.mxu0
    %v2091 = vadd.f32 0.0, %v2090
    %v2092 = vpop.f32.mrf.mxu0
    %v2093 = vadd.f32 0.0, %v2092
    %v2094 = vpop.f32.mrf.mxu0
    %v2095 = vadd.f32 0.0, %v2094
    %v2096 = vpop.f32.mrf.mxu0
    %v2097 = vadd.f32 0.0, %v2096
    %2098 = vdwg.mxu0
    %2099 = vmatprep.subr.bf16.mxu0 %v1777
    %2100 = vmatpush1.bf16.msra.mxu0 %v1776
    %2101 = vmatprep.subr.bf16.mxu0 %v1769
    %2102 = vmatpush1.bf16.msra.mxu0 %v1768
    %2103 = vmatprep.subr.bf16.mxu0 %v1761
    %2104 = vmatpush1.bf16.msra.mxu0 %v1760
    %2105 = vmatprep.subr.bf16.mxu0 %v1753
    %2106 = vmatpush1.bf16.msra.mxu0 %v1752
    %2107 = vmatprep.subr.bf16.mxu0 %v1745
    %2108 = vmatpush1.bf16.msra.mxu0 %v1744
    %2109 = vmatprep.subr.bf16.mxu0 %v1737
    %2110 = vmatpush1.bf16.msra.mxu0 %v1736
    %2111 = vmatprep.subr.bf16.mxu0 %v1729
    %2112 = vmatpush1.bf16.msra.mxu0 %v1728
    %2113 = vmatprep.subr.bf16.mxu0 %v1721
    %2114 = vmatpush1.bf16.msra.mxu0 %v1720
    %2115 = vmatprep.subr.bf16.mxu0 %v1841
    %2116 = vmatpush2.bf16.msra.mxu0 %v1840
    %2117 = vmatprep.subr.bf16.mxu0 %v1833
    %2118 = vmatpush2.bf16.msra.mxu0 %v1832
    %2119 = vmatprep.subr.bf16.mxu0 %v1825
    %2120 = vmatpush2.bf16.msra.mxu0 %v1824
    %2121 = vmatprep.subr.bf16.mxu0 %v1817
    %2122 = vmatpush2.bf16.msra.mxu0 %v1816
    %2123 = vmatprep.subr.bf16.mxu0 %v1809
    %2124 = vmatpush2.bf16.msra.mxu0 %v1808
    %2125 = vmatprep.subr.bf16.mxu0 %v1801
    %2126 = vmatpush2.bf16.msra.mxu0 %v1800
    %2127 = vmatprep.subr.bf16.mxu0 %v1793
    %2128 = vmatpush2.bf16.msra.mxu0 %v1792
    %2129 = vmatprep.subr.bf16.mxu0 %v1785
    %2130 = vmatpush2.bf16.msra.mxu0 %v1784
    %2131 = vmatprep.mubr.bf16.mxu0 %v1201
    %2132 = vmatmul.mubr.bf16.gmra.mxu0 %v1200
    %v2133 = vpop.f32.mrf.mxu0
    %v2134 = vadd.f32 0.0, %v2133
    %v2135 = vpop.f32.mrf.mxu0
    %v2136 = vadd.f32 0.0, %v2135
    %v2137 = vpop.f32.mrf.mxu0
    %v2138 = vadd.f32 0.0, %v2137
    %v2139 = vpop.f32.mrf.mxu0
    %v2140 = vadd.f32 0.0, %v2139
    %2141 = vdwg.mxu0
    %v2142 = vadd.f32 %v1184, %v2005
    %v2143 = vadd.f32 %v1185, %v2007
    %v2144 = vadd.f32 %v1186, %v2048
    %v2145 = vadd.f32 %v1187, %v2050
    %v2146 = vadd.f32 %v1188, %v2091
    %v2147 = vadd.f32 %v1189, %v2093
    %v2148 = vadd.f32 %v1190, %v2134
    %v2149 = vadd.f32 %v1191, %v2136
    %v2150 = vadd.f32 %v1192, %v2009
    %v2151 = vadd.f32 %v1193, %v2011
    %v2152 = vadd.f32 %v1194, %v2052
    %v2153 = vadd.f32 %v1195, %v2054
    %v2154 = vadd.f32 %v1196, %v2095
    %v2155 = vadd.f32 %v1197, %v2097
    %v2156 = vadd.f32 %v1198, %v2138
    %v2157 = vadd.f32 %v1199, %v2140
    %v2158 = vxor.u32 %v2142, 2147483648
    %v2159 = vxor.u32 %v2143, 2147483648
    %v2160 = vxor.u32 %v2150, 2147483648
    %v2161 = vxor.u32 %v2151, 2147483648
    %v2162 = vmul.f32 %v2158, 1.442695
    %v2163 = vpow.pop %v2162
    %v2164 = vmul.f32 %v2159, 1.442695
    %v2165 = vpow.pop %v2164
    %v2166 = vmul.f32 %v2160, 1.442695
    %v2167 = vpow.pop %v2166
    %v2168 = vmul.f32 %v2161, 1.442695
    %v2169 = vpow.pop %v2168
    %v2170 = vadd.f32 %v2163, 1.0
    %v2171 = vadd.f32 %v2165, 1.0
    %v2172 = vadd.f32 %v2167, 1.0
    %v2173 = vadd.f32 %v2169, 1.0
    %v2174 = vrcp.pop %v2170
    %v2175 = vmul.f32 1.0, %v2174
    %v2176 = vrcp.pop %v2171
    %v2177 = vmul.f32 1.0, %v2176
    %v2178 = vrcp.pop %v2172
    %v2179 = vmul.f32 1.0, %v2178
    %v2180 = vrcp.pop %v2173
    %v2181 = vmul.f32 1.0, %v2180
    %v2182 = vxor.u32 %v2144, 2147483648
    %v2183 = vxor.u32 %v2145, 2147483648
    %v2184 = vxor.u32 %v2152, 2147483648
    %v2185 = vxor.u32 %v2153, 2147483648
    %v2186 = vmul.f32 %v2182, 1.442695
    %v2187 = vpow.pop %v2186
    %v2188 = vmul.f32 %v2183, 1.442695
    %v2189 = vpow.pop %v2188
    %v2190 = vmul.f32 %v2184, 1.442695
    %v2191 = vpow.pop %v2190
    %v2192 = vmul.f32 %v2185, 1.442695
    %v2193 = vpow.pop %v2192
    %v2194 = vadd.f32 %v2187, 1.0
    %v2195 = vadd.f32 %v2189, 1.0
    %v2196 = vadd.f32 %v2191, 1.0
    %v2197 = vadd.f32 %v2193, 1.0
    %v2198 = vrcp.pop %v2194
    %v2199 = vmul.f32 1.0, %v2198
    %v2200 = vrcp.pop %v2195
    %v2201 = vmul.f32 1.0, %v2200
    %v2202 = vrcp.pop %v2196
    %v2203 = vmul.f32 1.0, %v2202
    %v2204 = vrcp.pop %v2197
    %v2205 = vmul.f32 1.0, %v2204
    %v2206 = vtanh.pop %v2146
    %v2207 = vtanh.pop %v2147
    %v2208 = vtanh.pop %v2154
    %v2209 = vtanh.pop %v2155
    %v2210 = vxor.u32 %v2148, 2147483648
    %v2211 = vxor.u32 %v2149, 2147483648
    %v2212 = vxor.u32 %v2156, 2147483648
    %v2213 = vxor.u32 %v2157, 2147483648
    %v2214 = vmul.f32 %v2210, 1.442695
    %v2215 = vpow.pop %v2214
    %v2216 = vmul.f32 %v2211, 1.442695
    %v2217 = vpow.pop %v2216
    %v2218 = vmul.f32 %v2212, 1.442695
    %v2219 = vpow.pop %v2218
    %v2220 = vmul.f32 %v2213, 1.442695
    %v2221 = vpow.pop %v2220
    %v2222 = vadd.f32 %v2215, 1.0
    %v2223 = vadd.f32 %v2217, 1.0
    %v2224 = vadd.f32 %v2219, 1.0
    %v2225 = vadd.f32 %v2221, 1.0
    %v2226 = vrcp.pop %v2222
    %v2227 = vmul.f32 1.0, %v2226
    %v2228 = vrcp.pop %v2223
    %v2229 = vmul.f32 1.0, %v2228
    %v2230 = vrcp.pop %v2224
    %v2231 = vmul.f32 1.0, %v2230
    %v2232 = vrcp.pop %v2225
    %v2233 = vmul.f32 1.0, %v2232
    %v2234 = vmul.f32 %v2199, %v1177
    %v2235 = vmul.f32 %v2201, %v1178
    %v2236 = vmul.f32 %v2203, %v1179
    %v2237 = vmul.f32 %v2205, %v1180
    %v2238 = vmul.f32 %v2175, %v2206
    %v2239 = vmul.f32 %v2177, %v2207
    %v2240 = vmul.f32 %v2179, %v2208
    %v2241 = vmul.f32 %v2181, %v2209
    %v2242 = vadd.f32 %v2234, %v2238
    %v2243 = vadd.f32 %v2235, %v2239
    %v2244 = vadd.f32 %v2236, %v2240
    %v2245 = vadd.f32 %v2237, %v2241
    %v2246 = vtanh.pop %v2242
    %v2247 = vtanh.pop %v2243
    %v2248 = vtanh.pop %v2244
    %v2249 = vtanh.pop %v2245
    %v2250 = vmul.f32 %v2227, %v2246
    %v2251 = vmul.f32 %v2229, %v2247
    %v2252 = vmul.f32 %v2231, %v2248
    %v2253 = vmul.f32 %v2233, %v2249
    %s2254 = smul.u32 2, 8
    %s2255 = smul.addr %s2254, 8
    %s2256 = scalar_lea.vmem [#allocation4], %s2255
    %v2257 = vld [vmem:[%s2256] sm:$0xff]
    %v2258 = vld [vmem:[%s2256 + $0x8] sm:$0xff]
    %v2259 = vld [vmem:[%s2256 + $0x10] sm:$0xff]
    %v2260 = vld [vmem:[%s2256 + $0x18] sm:$0xff]
    %v2261 = vld [vmem:[%s2256 + $0x20] sm:$0xff]
    %v2262 = vld [vmem:[%s2256 + $0x28] sm:$0xff]
    %v2263 = vld [vmem:[%s2256 + $0x30] sm:$0xff]
    %v2264 = vld [vmem:[%s2256 + $0x38] sm:$0xff]
    %v2265 = vld [vmem:[%s2256 + $0x40] sm:$0xff]
    %v2266 = vld [vmem:[%s2256 + $0x48] sm:$0xff]
    %v2267 = vld [vmem:[%s2256 + $0x50] sm:$0xff]
    %v2268 = vld [vmem:[%s2256 + $0x58] sm:$0xff]
    %v2269 = vld [vmem:[%s2256 + $0x60] sm:$0xff]
    %v2270 = vld [vmem:[%s2256 + $0x68] sm:$0xff]
    %v2271 = vld [vmem:[%s2256 + $0x70] sm:$0xff]
    %v2272 = vld [vmem:[%s2256 + $0x78] sm:$0xff]
    %v2273 = vpack.c.bf16 %v2252, %v2250
    %v2274 = vpack.c.bf16 %v2253, %v2251
    %2275 = vmatprep.subr.bf16.mxu0 %v1771
    %2276 = vmatpush1.bf16.msra.mxu0 %v1770
    %2277 = vmatprep.subr.bf16.mxu0 %v1763
    %2278 = vmatpush1.bf16.msra.mxu0 %v1762
    %2279 = vmatprep.subr.bf16.mxu0 %v1755
    %2280 = vmatpush1.bf16.msra.mxu0 %v1754
    %2281 = vmatprep.subr.bf16.mxu0 %v1747
    %2282 = vmatpush1.bf16.msra.mxu0 %v1746
    %2283 = vmatprep.subr.bf16.mxu0 %v1739
    %2284 = vmatpush1.bf16.msra.mxu0 %v1738
    %2285 = vmatprep.subr.bf16.mxu0 %v1731
    %2286 = vmatpush1.bf16.msra.mxu0 %v1730
    %2287 = vmatprep.subr.bf16.mxu0 %v1723
    %2288 = vmatpush1.bf16.msra.mxu0 %v1722
    %2289 = vmatprep.subr.bf16.mxu0 %v1715
    %2290 = vmatpush1.bf16.msra.mxu0 %v1714
    %2291 = vmatprep.subr.bf16.mxu0 %v1835
    %2292 = vmatpush2.bf16.msra.mxu0 %v1834
    %2293 = vmatprep.subr.bf16.mxu0 %v1827
    %2294 = vmatpush2.bf16.msra.mxu0 %v1826
    %2295 = vmatprep.subr.bf16.mxu0 %v1819
    %2296 = vmatpush2.bf16.msra.mxu0 %v1818
    %2297 = vmatprep.subr.bf16.mxu0 %v1811
    %2298 = vmatpush2.bf16.msra.mxu0 %v1810
    %2299 = vmatprep.subr.bf16.mxu0 %v1803
    %2300 = vmatpush2.bf16.msra.mxu0 %v1802
    %2301 = vmatprep.subr.bf16.mxu0 %v1795
    %2302 = vmatpush2.bf16.msra.mxu0 %v1794
    %2303 = vmatprep.subr.bf16.mxu0 %v1787
    %2304 = vmatpush2.bf16.msra.mxu0 %v1786
    %2305 = vmatprep.subr.bf16.mxu0 %v1779
    %2306 = vmatpush2.bf16.msra.mxu0 %v1778
    %2307 = vmatprep.mubr.bf16.mxu0 %v2274
    %2308 = vmatmul.mubr.bf16.gmra.mxu0 %v2273
    %v2309 = vpop.f32.mrf.mxu0
    %v2310 = vadd.f32 0.0, %v2309
    %v2311 = vpop.f32.mrf.mxu0
    %v2312 = vadd.f32 0.0, %v2311
    %v2313 = vpop.f32.mrf.mxu0
    %v2314 = vadd.f32 0.0, %v2313
    %v2315 = vpop.f32.mrf.mxu0
    %v2316 = vadd.f32 0.0, %v2315
    %2317 = vdwg.mxu0
    %2318 = vmatprep.subr.bf16.mxu0 %v1773
    %2319 = vmatpush1.bf16.msra.mxu0 %v1772
    %2320 = vmatprep.subr.bf16.mxu0 %v1765
    %2321 = vmatpush1.bf16.msra.mxu0 %v1764
    %2322 = vmatprep.subr.bf16.mxu0 %v1757
    %2323 = vmatpush1.bf16.msra.mxu0 %v1756
    %2324 = vmatprep.subr.bf16.mxu0 %v1749
    %2325 = vmatpush1.bf16.msra.mxu0 %v1748
    %2326 = vmatprep.subr.bf16.mxu0 %v1741
    %2327 = vmatpush1.bf16.msra.mxu0 %v1740
    %2328 = vmatprep.subr.bf16.mxu0 %v1733
    %2329 = vmatpush1.bf16.msra.mxu0 %v1732
    %2330 = vmatprep.subr.bf16.mxu0 %v1725
    %2331 = vmatpush1.bf16.msra.mxu0 %v1724
    %2332 = vmatprep.subr.bf16.mxu0 %v1717
    %2333 = vmatpush1.bf16.msra.mxu0 %v1716
    %2334 = vmatprep.subr.bf16.mxu0 %v1837
    %2335 = vmatpush2.bf16.msra.mxu0 %v1836
    %2336 = vmatprep.subr.bf16.mxu0 %v1829
    %2337 = vmatpush2.bf16.msra.mxu0 %v1828
    %2338 = vmatprep.subr.bf16.mxu0 %v1821
    %2339 = vmatpush2.bf16.msra.mxu0 %v1820
    %2340 = vmatprep.subr.bf16.mxu0 %v1813
    %2341 = vmatpush2.bf16.msra.mxu0 %v1812
    %2342 = vmatprep.subr.bf16.mxu0 %v1805
    %2343 = vmatpush2.bf16.msra.mxu0 %v1804
    %2344 = vmatprep.subr.bf16.mxu0 %v1797
    %2345 = vmatpush2.bf16.msra.mxu0 %v1796
    %2346 = vmatprep.subr.bf16.mxu0 %v1789
    %2347 = vmatpush2.bf16.msra.mxu0 %v1788
    %2348 = vmatprep.subr.bf16.mxu0 %v1781
    %2349 = vmatpush2.bf16.msra.mxu0 %v1780
    %2350 = vmatprep.mubr.bf16.mxu0 %v2274
    %2351 = vmatmul.mubr.bf16.gmra.mxu0 %v2273
    %v2352 = vpop.f32.mrf.mxu0
    %v2353 = vadd.f32 0.0, %v2352
    %v2354 = vpop.f32.mrf.mxu0
    %v2355 = vadd.f32 0.0, %v2354
    %v2356 = vpop.f32.mrf.mxu0
    %v2357 = vadd.f32 0.0, %v2356
    %v2358 = vpop.f32.mrf.mxu0
    %v2359 = vadd.f32 0.0, %v2358
    %2360 = vdwg.mxu0
    %2361 = vmatprep.subr.bf16.mxu0 %v1775
    %2362 = vmatpush1.bf16.msra.mxu0 %v1774
    %2363 = vmatprep.subr.bf16.mxu0 %v1767
    %2364 = vmatpush1.bf16.msra.mxu0 %v1766
    %2365 = vmatprep.subr.bf16.mxu0 %v1759
    %2366 = vmatpush1.bf16.msra.mxu0 %v1758
    %2367 = vmatprep.subr.bf16.mxu0 %v1751
    %2368 = vmatpush1.bf16.msra.mxu0 %v1750
    %2369 = vmatprep.subr.bf16.mxu0 %v1743
    %2370 = vmatpush1.bf16.msra.mxu0 %v1742
    %2371 = vmatprep.subr.bf16.mxu0 %v1735
    %2372 = vmatpush1.bf16.msra.mxu0 %v1734
    %2373 = vmatprep.subr.bf16.mxu0 %v1727
    %2374 = vmatpush1.bf16.msra.mxu0 %v1726
    %2375 = vmatprep.subr.bf16.mxu0 %v1719
    %2376 = vmatpush1.bf16.msra.mxu0 %v1718
    %2377 = vmatprep.subr.bf16.mxu0 %v1839
    %2378 = vmatpush2.bf16.msra.mxu0 %v1838
    %2379 = vmatprep.subr.bf16.mxu0 %v1831
    %2380 = vmatpush2.bf16.msra.mxu0 %v1830
    %2381 = vmatprep.subr.bf16.mxu0 %v1823
    %2382 = vmatpush2.bf16.msra.mxu0 %v1822
    %2383 = vmatprep.subr.bf16.mxu0 %v1815
    %2384 = vmatpush2.bf16.msra.mxu0 %v1814
    %2385 = vmatprep.subr.bf16.mxu0 %v1807
    %2386 = vmatpush2.bf16.msra.mxu0 %v1806
    %2387 = vmatprep.subr.bf16.mxu0 %v1799
    %2388 = vmatpush2.bf16.msra.mxu0 %v1798
    %2389 = vmatprep.subr.bf16.mxu0 %v1791
    %2390 = vmatpush2.bf16.msra.mxu0 %v1790
    %2391 = vmatprep.subr.bf16.mxu0 %v1783
    %2392 = vmatpush2.bf16.msra.mxu0 %v1782
    %2393 = vmatprep.mubr.bf16.mxu0 %v2274
    %2394 = vmatmul.mubr.bf16.gmra.mxu0 %v2273
    %v2395 = vpop.f32.mrf.mxu0
    %v2396 = vadd.f32 0.0, %v2395
    %v2397 = vpop.f32.mrf.mxu0
    %v2398 = vadd.f32 0.0, %v2397
    %v2399 = vpop.f32.mrf.mxu0
    %v2400 = vadd.f32 0.0, %v2399
    %v2401 = vpop.f32.mrf.mxu0
    %v2402 = vadd.f32 0.0, %v2401
    %2403 = vdwg.mxu0
    %2404 = vmatprep.subr.bf16.mxu0 %v1777
    %2405 = vmatpush1.bf16.msra.mxu0 %v1776
    %2406 = vmatprep.subr.bf16.mxu0 %v1769
    %2407 = vmatpush1.bf16.msra.mxu0 %v1768
    %2408 = vmatprep.subr.bf16.mxu0 %v1761
    %2409 = vmatpush1.bf16.msra.mxu0 %v1760
    %2410 = vmatprep.subr.bf16.mxu0 %v1753
    %2411 = vmatpush1.bf16.msra.mxu0 %v1752
    %2412 = vmatprep.subr.bf16.mxu0 %v1745
    %2413 = vmatpush1.bf16.msra.mxu0 %v1744
    %2414 = vmatprep.subr.bf16.mxu0 %v1737
    %2415 = vmatpush1.bf16.msra.mxu0 %v1736
    %2416 = vmatprep.subr.bf16.mxu0 %v1729
    %2417 = vmatpush1.bf16.msra.mxu0 %v1728
    %2418 = vmatprep.subr.bf16.mxu0 %v1721
    %2419 = vmatpush1.bf16.msra.mxu0 %v1720
    %2420 = vmatprep.subr.bf16.mxu0 %v1841
    %2421 = vmatpush2.bf16.msra.mxu0 %v1840
    %2422 = vmatprep.subr.bf16.mxu0 %v1833
    %2423 = vmatpush2.bf16.msra.mxu0 %v1832
    %2424 = vmatprep.subr.bf16.mxu0 %v1825
    %2425 = vmatpush2.bf16.msra.mxu0 %v1824
    %2426 = vmatprep.subr.bf16.mxu0 %v1817
    %2427 = vmatpush2.bf16.msra.mxu0 %v1816
    %2428 = vmatprep.subr.bf16.mxu0 %v1809
    %2429 = vmatpush2.bf16.msra.mxu0 %v1808
    %2430 = vmatprep.subr.bf16.mxu0 %v1801
    %2431 = vmatpush2.bf16.msra.mxu0 %v1800
    %2432 = vmatprep.subr.bf16.mxu0 %v1793
    %2433 = vmatpush2.bf16.msra.mxu0 %v1792
    %2434 = vmatprep.subr.bf16.mxu0 %v1785
    %2435 = vmatpush2.bf16.msra.mxu0 %v1784
    %2436 = vmatprep.mubr.bf16.mxu0 %v2274
    %2437 = vmatmul.mubr.bf16.gmra.mxu0 %v2273
    %v2438 = vpop.f32.mrf.mxu0
    %v2439 = vadd.f32 0.0, %v2438
    %v2440 = vpop.f32.mrf.mxu0
    %v2441 = vadd.f32 0.0, %v2440
    %v2442 = vpop.f32.mrf.mxu0
    %v2443 = vadd.f32 0.0, %v2442
    %v2444 = vpop.f32.mrf.mxu0
    %v2445 = vadd.f32 0.0, %v2444
    %2446 = vdwg.mxu0
    %v2447 = vadd.f32 %v2257, %v2310
    %v2448 = vadd.f32 %v2258, %v2312
    %v2449 = vadd.f32 %v2259, %v2353
    %v2450 = vadd.f32 %v2260, %v2355
    %v2451 = vadd.f32 %v2261, %v2396
    %v2452 = vadd.f32 %v2262, %v2398
    %v2453 = vadd.f32 %v2263, %v2439
    %v2454 = vadd.f32 %v2264, %v2441
    %v2455 = vadd.f32 %v2265, %v2314
    %v2456 = vadd.f32 %v2266, %v2316
    %v2457 = vadd.f32 %v2267, %v2357
    %v2458 = vadd.f32 %v2268, %v2359
    %v2459 = vadd.f32 %v2269, %v2400
    %v2460 = vadd.f32 %v2270, %v2402
    %v2461 = vadd.f32 %v2271, %v2443
    %v2462 = vadd.f32 %v2272, %v2445
    %v2463 = vxor.u32 %v2447, 2147483648
    %v2464 = vxor.u32 %v2448, 2147483648
    %v2465 = vxor.u32 %v2455, 2147483648
    %v2466 = vxor.u32 %v2456, 2147483648
    %v2467 = vmul.f32 %v2463, 1.442695
    %v2468 = vpow.pop %v2467
    %v2469 = vmul.f32 %v2464, 1.442695
    %v2470 = vpow.pop %v2469
    %v2471 = vmul.f32 %v2465, 1.442695
    %v2472 = vpow.pop %v2471
    %v2473 = vmul.f32 %v2466, 1.442695
    %v2474 = vpow.pop %v2473
    %v2475 = vadd.f32 %v2468, 1.0
    %v2476 = vadd.f32 %v2470, 1.0
    %v2477 = vadd.f32 %v2472, 1.0
    %v2478 = vadd.f32 %v2474, 1.0
    %v2479 = vrcp.pop %v2475
    %v2480 = vmul.f32 1.0, %v2479
    %v2481 = vrcp.pop %v2476
    %v2482 = vmul.f32 1.0, %v2481
    %v2483 = vrcp.pop %v2477
    %v2484 = vmul.f32 1.0, %v2483
    %v2485 = vrcp.pop %v2478
    %v2486 = vmul.f32 1.0, %v2485
    %v2487 = vxor.u32 %v2449, 2147483648
    %v2488 = vxor.u32 %v2450, 2147483648
    %v2489 = vxor.u32 %v2457, 2147483648
    %v2490 = vxor.u32 %v2458, 2147483648
    %v2491 = vmul.f32 %v2487, 1.442695
    %v2492 = vpow.pop %v2491
    %v2493 = vmul.f32 %v2488, 1.442695
    %v2494 = vpow.pop %v2493
    %v2495 = vmul.f32 %v2489, 1.442695
    %v2496 = vpow.pop %v2495
    %v2497 = vmul.f32 %v2490, 1.442695
    %v2498 = vpow.pop %v2497
    %v2499 = vadd.f32 %v2492, 1.0
    %v2500 = vadd.f32 %v2494, 1.0
    %v2501 = vadd.f32 %v2496, 1.0
    %v2502 = vadd.f32 %v2498, 1.0
    %v2503 = vrcp.pop %v2499
    %v2504 = vmul.f32 1.0, %v2503
    %v2505 = vrcp.pop %v2500
    %v2506 = vmul.f32 1.0, %v2505
    %v2507 = vrcp.pop %v2501
    %v2508 = vmul.f32 1.0, %v2507
    %v2509 = vrcp.pop %v2502
    %v2510 = vmul.f32 1.0, %v2509
    %v2511 = vtanh.pop %v2451
    %v2512 = vtanh.pop %v2452
    %v2513 = vtanh.pop %v2459
    %v2514 = vtanh.pop %v2460
    %v2515 = vxor.u32 %v2453, 2147483648
    %v2516 = vxor.u32 %v2454, 2147483648
    %v2517 = vxor.u32 %v2461, 2147483648
    %v2518 = vxor.u32 %v2462, 2147483648
    %v2519 = vmul.f32 %v2515, 1.442695
    %v2520 = vpow.pop %v2519
    %v2521 = vmul.f32 %v2516, 1.442695
    %v2522 = vpow.pop %v2521
    %v2523 = vmul.f32 %v2517, 1.442695
    %v2524 = vpow.pop %v2523
    %v2525 = vmul.f32 %v2518, 1.442695
    %v2526 = vpow.pop %v2525
    %v2527 = vadd.f32 %v2520, 1.0
    %v2528 = vadd.f32 %v2522, 1.0
    %v2529 = vadd.f32 %v2524, 1.0
    %v2530 = vadd.f32 %v2526, 1.0
    %v2531 = vrcp.pop %v2527
    %v2532 = vmul.f32 1.0, %v2531
    %v2533 = vrcp.pop %v2528
    %v2534 = vmul.f32 1.0, %v2533
    %v2535 = vrcp.pop %v2529
    %v2536 = vmul.f32 1.0, %v2535
    %v2537 = vrcp.pop %v2530
    %v2538 = vmul.f32 1.0, %v2537
    %v2539 = vmul.f32 %v2504, %v2242
    %v2540 = vmul.f32 %v2506, %v2243
    %v2541 = vmul.f32 %v2508, %v2244
    %v2542 = vmul.f32 %v2510, %v2245
    %v2543 = vmul.f32 %v2480, %v2511
    %v2544 = vmul.f32 %v2482, %v2512
    %v2545 = vmul.f32 %v2484, %v2513
    %v2546 = vmul.f32 %v2486, %v2514
    %v2547 = vadd.f32 %v2539, %v2543
    %v2548 = vadd.f32 %v2540, %v2544
    %v2549 = vadd.f32 %v2541, %v2545
    %v2550 = vadd.f32 %v2542, %v2546
    %v2551 = vtanh.pop %v2547
    %v2552 = vtanh.pop %v2548
    %v2553 = vtanh.pop %v2549
    %v2554 = vtanh.pop %v2550
    %v2555 = vmul.f32 %v2532, %v2551
    %v2556 = vmul.f32 %v2534, %v2552
    %v2557 = vmul.f32 %v2536, %v2553
    %v2558 = vmul.f32 %v2538, %v2554
    %s2559 = smul.u32 4, 8
    %s2560 = smul.addr %s2559, 8
    %s2561 = scalar_lea.vmem [#allocation4], %s2560
    %v2562 = vld [vmem:[%s2561] sm:$0xff]
    %v2563 = vld [vmem:[%s2561 + $0x8] sm:$0xff]
    %v2564 = vld [vmem:[%s2561 + $0x10] sm:$0xff]
    %v2565 = vld [vmem:[%s2561 + $0x18] sm:$0xff]
    %v2566 = vld [vmem:[%s2561 + $0x20] sm:$0xff]
    %v2567 = vld [vmem:[%s2561 + $0x28] sm:$0xff]
    %v2568 = vld [vmem:[%s2561 + $0x30] sm:$0xff]
    %v2569 = vld [vmem:[%s2561 + $0x38] sm:$0xff]
    %v2570 = vld [vmem:[%s2561 + $0x40] sm:$0xff]
    %v2571 = vld [vmem:[%s2561 + $0x48] sm:$0xff]
    %v2572 = vld [vmem:[%s2561 + $0x50] sm:$0xff]
    %v2573 = vld [vmem:[%s2561 + $0x58] sm:$0xff]
    %v2574 = vld [vmem:[%s2561 + $0x60] sm:$0xff]
    %v2575 = vld [vmem:[%s2561 + $0x68] sm:$0xff]
    %v2576 = vld [vmem:[%s2561 + $0x70] sm:$0xff]
    %v2577 = vld [vmem:[%s2561 + $0x78] sm:$0xff]
    %v2578 = vpack.c.bf16 %v2557, %v2555
    %v2579 = vpack.c.bf16 %v2558, %v2556
    %2580 = vmatprep.subr.bf16.mxu0 %v1771
    %2581 = vmatpush1.bf16.msra.mxu0 %v1770
    %2582 = vmatprep.subr.bf16.mxu0 %v1763
    %2583 = vmatpush1.bf16.msra.mxu0 %v1762
    %2584 = vmatprep.subr.bf16.mxu0 %v1755
    %2585 = vmatpush1.bf16.msra.mxu0 %v1754
    %2586 = vmatprep.subr.bf16.mxu0 %v1747
    %2587 = vmatpush1.bf16.msra.mxu0 %v1746
    %2588 = vmatprep.subr.bf16.mxu0 %v1739
    %2589 = vmatpush1.bf16.msra.mxu0 %v1738
    %2590 = vmatprep.subr.bf16.mxu0 %v1731
    %2591 = vmatpush1.bf16.msra.mxu0 %v1730
    %2592 = vmatprep.subr.bf16.mxu0 %v1723
    %2593 = vmatpush1.bf16.msra.mxu0 %v1722
    %2594 = vmatprep.subr.bf16.mxu0 %v1715
    %2595 = vmatpush1.bf16.msra.mxu0 %v1714
    %2596 = vmatprep.subr.bf16.mxu0 %v1835
    %2597 = vmatpush2.bf16.msra.mxu0 %v1834
    %2598 = vmatprep.subr.bf16.mxu0 %v1827
    %2599 = vmatpush2.bf16.msra.mxu0 %v1826
    %2600 = vmatprep.subr.bf16.mxu0 %v1819
    %2601 = vmatpush2.bf16.msra.mxu0 %v1818
    %2602 = vmatprep.subr.bf16.mxu0 %v1811
    %2603 = vmatpush2.bf16.msra.mxu0 %v1810
    %2604 = vmatprep.subr.bf16.mxu0 %v1803
    %2605 = vmatpush2.bf16.msra.mxu0 %v1802
    %2606 = vmatprep.subr.bf16.mxu0 %v1795
    %2607 = vmatpush2.bf16.msra.mxu0 %v1794
    %2608 = vmatprep.subr.bf16.mxu0 %v1787
    %2609 = vmatpush2.bf16.msra.mxu0 %v1786
    %2610 = vmatprep.subr.bf16.mxu0 %v1779
    %2611 = vmatpush2.bf16.msra.mxu0 %v1778
    %2612 = vmatprep.mubr.bf16.mxu0 %v2579
    %2613 = vmatmul.mubr.bf16.gmra.mxu0 %v2578
    %v2614 = vpop.f32.mrf.mxu0
    %v2615 = vadd.f32 0.0, %v2614
    %v2616 = vpop.f32.mrf.mxu0
    %v2617 = vadd.f32 0.0, %v2616
    %v2618 = vpop.f32.mrf.mxu0
    %v2619 = vadd.f32 0.0, %v2618
    %v2620 = vpop.f32.mrf.mxu0
    %v2621 = vadd.f32 0.0, %v2620
    %2622 = vdwg.mxu0
    %2623 = vmatprep.subr.bf16.mxu0 %v1773
    %2624 = vmatpush1.bf16.msra.mxu0 %v1772
    %2625 = vmatprep.subr.bf16.mxu0 %v1765
    %2626 = vmatpush1.bf16.msra.mxu0 %v1764
    %2627 = vmatprep.subr.bf16.mxu0 %v1757
    %2628 = vmatpush1.bf16.msra.mxu0 %v1756
    %2629 = vmatprep.subr.bf16.mxu0 %v1749
    %2630 = vmatpush1.bf16.msra.mxu0 %v1748
    %2631 = vmatprep.subr.bf16.mxu0 %v1741
    %2632 = vmatpush1.bf16.msra.mxu0 %v1740
    %2633 = vmatprep.subr.bf16.mxu0 %v1733
    %2634 = vmatpush1.bf16.msra.mxu0 %v1732
    %2635 = vmatprep.subr.bf16.mxu0 %v1725
    %2636 = vmatpush1.bf16.msra.mxu0 %v1724
    %2637 = vmatprep.subr.bf16.mxu0 %v1717
    %2638 = vmatpush1.bf16.msra.mxu0 %v1716
    %2639 = vmatprep.subr.bf16.mxu0 %v1837
    %2640 = vmatpush2.bf16.msra.mxu0 %v1836
    %2641 = vmatprep.subr.bf16.mxu0 %v1829
    %2642 = vmatpush2.bf16.msra.mxu0 %v1828
    %2643 = vmatprep.subr.bf16.mxu0 %v1821
    %2644 = vmatpush2.bf16.msra.mxu0 %v1820
    %2645 = vmatprep.subr.bf16.mxu0 %v1813
    %2646 = vmatpush2.bf16.msra.mxu0 %v1812
    %2647 = vmatprep.subr.bf16.mxu0 %v1805
    %2648 = vmatpush2.bf16.msra.mxu0 %v1804
    %2649 = vmatprep.subr.bf16.mxu0 %v1797
    %2650 = vmatpush2.bf16.msra.mxu0 %v1796
    %2651 = vmatprep.subr.bf16.mxu0 %v1789
    %2652 = vmatpush2.bf16.msra.mxu0 %v1788
    %2653 = vmatprep.subr.bf16.mxu0 %v1781
    %2654 = vmatpush2.bf16.msra.mxu0 %v1780
    %2655 = vmatprep.mubr.bf16.mxu0 %v2579
    %2656 = vmatmul.mubr.bf16.gmra.mxu0 %v2578
    %v2657 = vpop.f32.mrf.mxu0
    %v2658 = vadd.f32 0.0, %v2657
    %v2659 = vpop.f32.mrf.mxu0
    %v2660 = vadd.f32 0.0, %v2659
    %v2661 = vpop.f32.mrf.mxu0
    %v2662 = vadd.f32 0.0, %v2661
    %v2663 = vpop.f32.mrf.mxu0
    %v2664 = vadd.f32 0.0, %v2663
    %2665 = vdwg.mxu0
    %2666 = vmatprep.subr.bf16.mxu0 %v1775
    %2667 = vmatpush1.bf16.msra.mxu0 %v1774
    %2668 = vmatprep.subr.bf16.mxu0 %v1767
    %2669 = vmatpush1.bf16.msra.mxu0 %v1766
    %2670 = vmatprep.subr.bf16.mxu0 %v1759
    %2671 = vmatpush1.bf16.msra.mxu0 %v1758
    %2672 = vmatprep.subr.bf16.mxu0 %v1751
    %2673 = vmatpush1.bf16.msra.mxu0 %v1750
    %2674 = vmatprep.subr.bf16.mxu0 %v1743
    %2675 = vmatpush1.bf16.msra.mxu0 %v1742
    %2676 = vmatprep.subr.bf16.mxu0 %v1735
    %2677 = vmatpush1.bf16.msra.mxu0 %v1734
    %2678 = vmatprep.subr.bf16.mxu0 %v1727
    %2679 = vmatpush1.bf16.msra.mxu0 %v1726
    %2680 = vmatprep.subr.bf16.mxu0 %v1719
    %2681 = vmatpush1.bf16.msra.mxu0 %v1718
    %2682 = vmatprep.subr.bf16.mxu0 %v1839
    %2683 = vmatpush2.bf16.msra.mxu0 %v1838
    %2684 = vmatprep.subr.bf16.mxu0 %v1831
    %2685 = vmatpush2.bf16.msra.mxu0 %v1830
    %2686 = vmatprep.subr.bf16.mxu0 %v1823
    %2687 = vmatpush2.bf16.msra.mxu0 %v1822
    %2688 = vmatprep.subr.bf16.mxu0 %v1815
    %2689 = vmatpush2.bf16.msra.mxu0 %v1814
    %2690 = vmatprep.subr.bf16.mxu0 %v1807
    %2691 = vmatpush2.bf16.msra.mxu0 %v1806
    %2692 = vmatprep.subr.bf16.mxu0 %v1799
    %2693 = vmatpush2.bf16.msra.mxu0 %v1798
    %2694 = vmatprep.subr.bf16.mxu0 %v1791
    %2695 = vmatpush2.bf16.msra.mxu0 %v1790
    %2696 = vmatprep.subr.bf16.mxu0 %v1783
    %2697 = vmatpush2.bf16.msra.mxu0 %v1782
    %2698 = vmatprep.mubr.bf16.mxu0 %v2579
    %2699 = vmatmul.mubr.bf16.gmra.mxu0 %v2578
    %v2700 = vpop.f32.mrf.mxu0
    %v2701 = vadd.f32 0.0, %v2700
    %v2702 = vpop.f32.mrf.mxu0
    %v2703 = vadd.f32 0.0, %v2702
    %v2704 = vpop.f32.mrf.mxu0
    %v2705 = vadd.f32 0.0, %v2704
    %v2706 = vpop.f32.mrf.mxu0
    %v2707 = vadd.f32 0.0, %v2706
    %2708 = vdwg.mxu0
    %2709 = vmatprep.subr.bf16.mxu0 %v1777
    %2710 = vmatpush1.bf16.msra.mxu0 %v1776
    %2711 = vmatprep.subr.bf16.mxu0 %v1769
    %2712 = vmatpush1.bf16.msra.mxu0 %v1768
    %2713 = vmatprep.subr.bf16.mxu0 %v1761
    %2714 = vmatpush1.bf16.msra.mxu0 %v1760
    %2715 = vmatprep.subr.bf16.mxu0 %v1753
    %2716 = vmatpush1.bf16.msra.mxu0 %v1752
    %2717 = vmatprep.subr.bf16.mxu0 %v1745
    %2718 = vmatpush1.bf16.msra.mxu0 %v1744
    %2719 = vmatprep.subr.bf16.mxu0 %v1737
    %2720 = vmatpush1.bf16.msra.mxu0 %v1736
    %2721 = vmatprep.subr.bf16.mxu0 %v1729
    %2722 = vmatpush1.bf16.msra.mxu0 %v1728
    %2723 = vmatprep.subr.bf16.mxu0 %v1721
    %2724 = vmatpush1.bf16.msra.mxu0 %v1720
    %2725 = vmatprep.subr.bf16.mxu0 %v1841
    %2726 = vmatpush2.bf16.msra.mxu0 %v1840
    %2727 = vmatprep.subr.bf16.mxu0 %v1833
    %2728 = vmatpush2.bf16.msra.mxu0 %v1832
    %2729 = vmatprep.subr.bf16.mxu0 %v1825
    %2730 = vmatpush2.bf16.msra.mxu0 %v1824
    %2731 = vmatprep.subr.bf16.mxu0 %v1817
    %2732 = vmatpush2.bf16.msra.mxu0 %v1816
    %2733 = vmatprep.subr.bf16.mxu0 %v1809
    %2734 = vmatpush2.bf16.msra.mxu0 %v1808
    %2735 = vmatprep.subr.bf16.mxu0 %v1801
    %2736 = vmatpush2.bf16.msra.mxu0 %v1800
    %2737 = vmatprep.subr.bf16.mxu0 %v1793
    %2738 = vmatpush2.bf16.msra.mxu0 %v1792
    %2739 = vmatprep.subr.bf16.mxu0 %v1785
    %2740 = vmatpush2.bf16.msra.mxu0 %v1784
    %2741 = vmatprep.mubr.bf16.mxu0 %v2579
    %2742 = vmatmul.mubr.bf16.gmra.mxu0 %v2578
    %v2743 = vpop.f32.mrf.mxu0
    %v2744 = vadd.f32 0.0, %v2743
    %v2745 = vpop.f32.mrf.mxu0
    %v2746 = vadd.f32 0.0, %v2745
    %v2747 = vpop.f32.mrf.mxu0
    %v2748 = vadd.f32 0.0, %v2747
    %v2749 = vpop.f32.mrf.mxu0
    %v2750 = vadd.f32 0.0, %v2749
    %2751 = vdwg.mxu0
    %v2752 = vadd.f32 %v2562, %v2615
    %v2753 = vadd.f32 %v2563, %v2617
    %v2754 = vadd.f32 %v2564, %v2658
    %v2755 = vadd.f32 %v2565, %v2660
    %v2756 = vadd.f32 %v2566, %v2701
    %v2757 = vadd.f32 %v2567, %v2703
    %v2758 = vadd.f32 %v2568, %v2744
    %v2759 = vadd.f32 %v2569, %v2746
    %v2760 = vadd.f32 %v2570, %v2619
    %v2761 = vadd.f32 %v2571, %v2621
    %v2762 = vadd.f32 %v2572, %v2662
    %v2763 = vadd.f32 %v2573, %v2664
    %v2764 = vadd.f32 %v2574, %v2705
    %v2765 = vadd.f32 %v2575, %v2707
    %v2766 = vadd.f32 %v2576, %v2748
    %v2767 = vadd.f32 %v2577, %v2750
    %v2768 = vxor.u32 %v2752, 2147483648
    %v2769 = vxor.u32 %v2753, 2147483648
    %v2770 = vxor.u32 %v2760, 2147483648
    %v2771 = vxor.u32 %v2761, 2147483648
    %v2772 = vmul.f32 %v2768, 1.442695
    %v2773 = vpow.pop %v2772
    %v2774 = vmul.f32 %v2769, 1.442695
    %v2775 = vpow.pop %v2774
    %v2776 = vmul.f32 %v2770, 1.442695
    %v2777 = vpow.pop %v2776
    %v2778 = vmul.f32 %v2771, 1.442695
    %v2779 = vpow.pop %v2778
    %v2780 = vadd.f32 %v2773, 1.0
    %v2781 = vadd.f32 %v2775, 1.0
    %v2782 = vadd.f32 %v2777, 1.0
    %v2783 = vadd.f32 %v2779, 1.0
    %v2784 = vrcp.pop %v2780
    %v2785 = vmul.f32 1.0, %v2784
    %v2786 = vrcp.pop %v2781
    %v2787 = vmul.f32 1.0, %v2786
    %v2788 = vrcp.pop %v2782
    %v2789 = vmul.f32 1.0, %v2788
    %v2790 = vrcp.pop %v2783
    %v2791 = vmul.f32 1.0, %v2790
    %v2792 = vxor.u32 %v2754, 2147483648
    %v2793 = vxor.u32 %v2755, 2147483648
    %v2794 = vxor.u32 %v2762, 2147483648
    %v2795 = vxor.u32 %v2763, 2147483648
    %v2796 = vmul.f32 %v2792, 1.442695
    %v2797 = vpow.pop %v2796
    %v2798 = vmul.f32 %v2793, 1.442695
    %v2799 = vpow.pop %v2798
    %v2800 = vmul.f32 %v2794, 1.442695
    %v2801 = vpow.pop %v2800
    %v2802 = vmul.f32 %v2795, 1.442695
    %v2803 = vpow.pop %v2802
    %v2804 = vadd.f32 %v2797, 1.0
    %v2805 = vadd.f32 %v2799, 1.0
    %v2806 = vadd.f32 %v2801, 1.0
    %v2807 = vadd.f32 %v2803, 1.0
    %v2808 = vrcp.pop %v2804
    %v2809 = vmul.f32 1.0, %v2808
    %v2810 = vrcp.pop %v2805
    %v2811 = vmul.f32 1.0, %v2810
    %v2812 = vrcp.pop %v2806
    %v2813 = vmul.f32 1.0, %v2812
    %v2814 = vrcp.pop %v2807
    %v2815 = vmul.f32 1.0, %v2814
    %v2816 = vtanh.pop %v2756
    %v2817 = vtanh.pop %v2757
    %v2818 = vtanh.pop %v2764
    %v2819 = vtanh.pop %v2765
    %v2820 = vxor.u32 %v2758, 2147483648
    %v2821 = vxor.u32 %v2759, 2147483648
    %v2822 = vxor.u32 %v2766, 2147483648
    %v2823 = vxor.u32 %v2767, 2147483648
    %v2824 = vmul.f32 %v2820, 1.442695
    %v2825 = vpow.pop %v2824
    %v2826 = vmul.f32 %v2821, 1.442695
    %v2827 = vpow.pop %v2826
    %v2828 = vmul.f32 %v2822, 1.442695
    %v2829 = vpow.pop %v2828
    %v2830 = vmul.f32 %v2823, 1.442695
    %v2831 = vpow.pop %v2830
    %v2832 = vadd.f32 %v2825, 1.0
    %v2833 = vadd.f32 %v2827, 1.0
    %v2834 = vadd.f32 %v2829, 1.0
    %v2835 = vadd.f32 %v2831, 1.0
    %v2836 = vrcp.pop %v2832
    %v2837 = vmul.f32 1.0, %v2836
    %v2838 = vrcp.pop %v2833
    %v2839 = vmul.f32 1.0, %v2838
    %v2840 = vrcp.pop %v2834
    %v2841 = vmul.f32 1.0, %v2840
    %v2842 = vrcp.pop %v2835
    %v2843 = vmul.f32 1.0, %v2842
    %v2844 = vmul.f32 %v2809, %v2547
    %v2845 = vmul.f32 %v2811, %v2548
    %v2846 = vmul.f32 %v2813, %v2549
    %v2847 = vmul.f32 %v2815, %v2550
    %v2848 = vmul.f32 %v2785, %v2816
    %v2849 = vmul.f32 %v2787, %v2817
    %v2850 = vmul.f32 %v2789, %v2818
    %v2851 = vmul.f32 %v2791, %v2819
    %v2852 = vadd.f32 %v2844, %v2848
    %v2853 = vadd.f32 %v2845, %v2849
    %v2854 = vadd.f32 %v2846, %v2850
    %v2855 = vadd.f32 %v2847, %v2851
    %v2856 = vtanh.pop %v2852
    %v2857 = vtanh.pop %v2853
    %v2858 = vtanh.pop %v2854
    %v2859 = vtanh.pop %v2855
    %v2860 = vmul.f32 %v2837, %v2856
    %v2861 = vmul.f32 %v2839, %v2857
    %v2862 = vmul.f32 %v2841, %v2858
    %v2863 = vmul.f32 %v2843, %v2859
    %s2864 = smul.u32 6, 8
    %s2865 = smul.addr %s2864, 8
    %s2866 = scalar_lea.vmem [#allocation4], %s2865
    %v2867 = vld [vmem:[%s2866] sm:$0xff]
    %v2868 = vld [vmem:[%s2866 + $0x8] sm:$0xff]
    %v2869 = vld [vmem:[%s2866 + $0x10] sm:$0xff]
    %v2870 = vld [vmem:[%s2866 + $0x18] sm:$0xff]
    %v2871 = vld [vmem:[%s2866 + $0x20] sm:$0xff]
    %v2872 = vld [vmem:[%s2866 + $0x28] sm:$0xff]
    %v2873 = vld [vmem:[%s2866 + $0x30] sm:$0xff]
    %v2874 = vld [vmem:[%s2866 + $0x38] sm:$0xff]
    %v2875 = vld [vmem:[%s2866 + $0x40] sm:$0xff]
    %v2876 = vld [vmem:[%s2866 + $0x48] sm:$0xff]
    %v2877 = vld [vmem:[%s2866 + $0x50] sm:$0xff]
    %v2878 = vld [vmem:[%s2866 + $0x58] sm:$0xff]
    %v2879 = vld [vmem:[%s2866 + $0x60] sm:$0xff]
    %v2880 = vld [vmem:[%s2866 + $0x68] sm:$0xff]
    %v2881 = vld [vmem:[%s2866 + $0x70] sm:$0xff]
    %v2882 = vld [vmem:[%s2866 + $0x78] sm:$0xff]
    %v2883 = vpack.c.bf16 %v2862, %v2860
    %v2884 = vpack.c.bf16 %v2863, %v2861
    %2885 = vmatprep.subr.bf16.mxu0 %v1771
    %2886 = vmatpush1.bf16.msra.mxu0 %v1770
    %2887 = vmatprep.subr.bf16.mxu0 %v1763
    %2888 = vmatpush1.bf16.msra.mxu0 %v1762
    %2889 = vmatprep.subr.bf16.mxu0 %v1755
    %2890 = vmatpush1.bf16.msra.mxu0 %v1754
    %2891 = vmatprep.subr.bf16.mxu0 %v1747
    %2892 = vmatpush1.bf16.msra.mxu0 %v1746
    %2893 = vmatprep.subr.bf16.mxu0 %v1739
    %2894 = vmatpush1.bf16.msra.mxu0 %v1738
    %2895 = vmatprep.subr.bf16.mxu0 %v1731
    %2896 = vmatpush1.bf16.msra.mxu0 %v1730
    %2897 = vmatprep.subr.bf16.mxu0 %v1723
    %2898 = vmatpush1.bf16.msra.mxu0 %v1722
    %2899 = vmatprep.subr.bf16.mxu0 %v1715
    %2900 = vmatpush1.bf16.msra.mxu0 %v1714
    %2901 = vmatprep.subr.bf16.mxu0 %v1835
    %2902 = vmatpush2.bf16.msra.mxu0 %v1834
    %2903 = vmatprep.subr.bf16.mxu0 %v1827
    %2904 = vmatpush2.bf16.msra.mxu0 %v1826
    %2905 = vmatprep.subr.bf16.mxu0 %v1819
    %2906 = vmatpush2.bf16.msra.mxu0 %v1818
    %2907 = vmatprep.subr.bf16.mxu0 %v1811
    %2908 = vmatpush2.bf16.msra.mxu0 %v1810
    %2909 = vmatprep.subr.bf16.mxu0 %v1803
    %2910 = vmatpush2.bf16.msra.mxu0 %v1802
    %2911 = vmatprep.subr.bf16.mxu0 %v1795
    %2912 = vmatpush2.bf16.msra.mxu0 %v1794
    %2913 = vmatprep.subr.bf16.mxu0 %v1787
    %2914 = vmatpush2.bf16.msra.mxu0 %v1786
    %2915 = vmatprep.subr.bf16.mxu0 %v1779
    %2916 = vmatpush2.bf16.msra.mxu0 %v1778
    %2917 = vmatprep.mubr.bf16.mxu0 %v2884
    %2918 = vmatmul.mubr.bf16.gmra.mxu0 %v2883
    %v2919 = vpop.f32.mrf.mxu0
    %v2920 = vadd.f32 0.0, %v2919
    %v2921 = vpop.f32.mrf.mxu0
    %v2922 = vadd.f32 0.0, %v2921
    %v2923 = vpop.f32.mrf.mxu0
    %v2924 = vadd.f32 0.0, %v2923
    %v2925 = vpop.f32.mrf.mxu0
    %v2926 = vadd.f32 0.0, %v2925
    %2927 = vdwg.mxu0
    %2928 = vmatprep.subr.bf16.mxu0 %v1773
    %2929 = vmatpush1.bf16.msra.mxu0 %v1772
    %2930 = vmatprep.subr.bf16.mxu0 %v1765
    %2931 = vmatpush1.bf16.msra.mxu0 %v1764
    %2932 = vmatprep.subr.bf16.mxu0 %v1757
    %2933 = vmatpush1.bf16.msra.mxu0 %v1756
    %2934 = vmatprep.subr.bf16.mxu0 %v1749
    %2935 = vmatpush1.bf16.msra.mxu0 %v1748
    %2936 = vmatprep.subr.bf16.mxu0 %v1741
    %2937 = vmatpush1.bf16.msra.mxu0 %v1740
    %2938 = vmatprep.subr.bf16.mxu0 %v1733
    %2939 = vmatpush1.bf16.msra.mxu0 %v1732
    %2940 = vmatprep.subr.bf16.mxu0 %v1725
    %2941 = vmatpush1.bf16.msra.mxu0 %v1724
    %2942 = vmatprep.subr.bf16.mxu0 %v1717
    %2943 = vmatpush1.bf16.msra.mxu0 %v1716
    %2944 = vmatprep.subr.bf16.mxu0 %v1837
    %2945 = vmatpush2.bf16.msra.mxu0 %v1836
    %2946 = vmatprep.subr.bf16.mxu0 %v1829
    %2947 = vmatpush2.bf16.msra.mxu0 %v1828
    %2948 = vmatprep.subr.bf16.mxu0 %v1821
    %2949 = vmatpush2.bf16.msra.mxu0 %v1820
    %2950 = vmatprep.subr.bf16.mxu0 %v1813
    %2951 = vmatpush2.bf16.msra.mxu0 %v1812
    %2952 = vmatprep.subr.bf16.mxu0 %v1805
    %2953 = vmatpush2.bf16.msra.mxu0 %v1804
    %2954 = vmatprep.subr.bf16.mxu0 %v1797
    %2955 = vmatpush2.bf16.msra.mxu0 %v1796
    %2956 = vmatprep.subr.bf16.mxu0 %v1789
    %2957 = vmatpush2.bf16.msra.mxu0 %v1788
    %2958 = vmatprep.subr.bf16.mxu0 %v1781
    %2959 = vmatpush2.bf16.msra.mxu0 %v1780
    %2960 = vmatprep.mubr.bf16.mxu0 %v2884
    %2961 = vmatmul.mubr.bf16.gmra.mxu0 %v2883
    %v2962 = vpop.f32.mrf.mxu0
    %v2963 = vadd.f32 0.0, %v2962
    %v2964 = vpop.f32.mrf.mxu0
    %v2965 = vadd.f32 0.0, %v2964
    %v2966 = vpop.f32.mrf.mxu0
    %v2967 = vadd.f32 0.0, %v2966
    %v2968 = vpop.f32.mrf.mxu0
    %v2969 = vadd.f32 0.0, %v2968
    %2970 = vdwg.mxu0
    %2971 = vmatprep.subr.bf16.mxu0 %v1775
    %2972 = vmatpush1.bf16.msra.mxu0 %v1774
    %2973 = vmatprep.subr.bf16.mxu0 %v1767
    %2974 = vmatpush1.bf16.msra.mxu0 %v1766
    %2975 = vmatprep.subr.bf16.mxu0 %v1759
    %2976 = vmatpush1.bf16.msra.mxu0 %v1758
    %2977 = vmatprep.subr.bf16.mxu0 %v1751
    %2978 = vmatpush1.bf16.msra.mxu0 %v1750
    %2979 = vmatprep.subr.bf16.mxu0 %v1743
    %2980 = vmatpush1.bf16.msra.mxu0 %v1742
    %2981 = vmatprep.subr.bf16.mxu0 %v1735
    %2982 = vmatpush1.bf16.msra.mxu0 %v1734
    %2983 = vmatprep.subr.bf16.mxu0 %v1727
    %2984 = vmatpush1.bf16.msra.mxu0 %v1726
    %2985 = vmatprep.subr.bf16.mxu0 %v1719
    %2986 = vmatpush1.bf16.msra.mxu0 %v1718
    %2987 = vmatprep.subr.bf16.mxu0 %v1839
    %2988 = vmatpush2.bf16.msra.mxu0 %v1838
    %2989 = vmatprep.subr.bf16.mxu0 %v1831
    %2990 = vmatpush2.bf16.msra.mxu0 %v1830
    %2991 = vmatprep.subr.bf16.mxu0 %v1823
    %2992 = vmatpush2.bf16.msra.mxu0 %v1822
    %2993 = vmatprep.subr.bf16.mxu0 %v1815
    %2994 = vmatpush2.bf16.msra.mxu0 %v1814
    %2995 = vmatprep.subr.bf16.mxu0 %v1807
    %2996 = vmatpush2.bf16.msra.mxu0 %v1806
    %2997 = vmatprep.subr.bf16.mxu0 %v1799
    %2998 = vmatpush2.bf16.msra.mxu0 %v1798
    %2999 = vmatprep.subr.bf16.mxu0 %v1791
    %3000 = vmatpush2.bf16.msra.mxu0 %v1790
    %3001 = vmatprep.subr.bf16.mxu0 %v1783
    %3002 = vmatpush2.bf16.msra.mxu0 %v1782
    %3003 = vmatprep.mubr.bf16.mxu0 %v2884
    %3004 = vmatmul.mubr.bf16.gmra.mxu0 %v2883
    %v3005 = vpop.f32.mrf.mxu0
    %v3006 = vadd.f32 0.0, %v3005
    %v3007 = vpop.f32.mrf.mxu0
    %v3008 = vadd.f32 0.0, %v3007
    %v3009 = vpop.f32.mrf.mxu0
    %v3010 = vadd.f32 0.0, %v3009
    %v3011 = vpop.f32.mrf.mxu0
    %v3012 = vadd.f32 0.0, %v3011
    %3013 = vdwg.mxu0
    %3014 = vmatprep.subr.bf16.mxu0 %v1777
    %3015 = vmatpush1.bf16.msra.mxu0 %v1776
    %3016 = vmatprep.subr.bf16.mxu0 %v1769
    %3017 = vmatpush1.bf16.msra.mxu0 %v1768
    %3018 = vmatprep.subr.bf16.mxu0 %v1761
    %3019 = vmatpush1.bf16.msra.mxu0 %v1760
    %3020 = vmatprep.subr.bf16.mxu0 %v1753
    %3021 = vmatpush1.bf16.msra.mxu0 %v1752
    %3022 = vmatprep.subr.bf16.mxu0 %v1745
    %3023 = vmatpush1.bf16.msra.mxu0 %v1744
    %3024 = vmatprep.subr.bf16.mxu0 %v1737
    %3025 = vmatpush1.bf16.msra.mxu0 %v1736
    %3026 = vmatprep.subr.bf16.mxu0 %v1729
    %3027 = vmatpush1.bf16.msra.mxu0 %v1728
    %3028 = vmatprep.subr.bf16.mxu0 %v1721
    %3029 = vmatpush1.bf16.msra.mxu0 %v1720
    %3030 = vmatprep.subr.bf16.mxu0 %v1841
    %3031 = vmatpush2.bf16.msra.mxu0 %v1840
    %3032 = vmatprep.subr.bf16.mxu0 %v1833
    %3033 = vmatpush2.bf16.msra.mxu0 %v1832
    %3034 = vmatprep.subr.bf16.mxu0 %v1825
    %3035 = vmatpush2.bf16.msra.mxu0 %v1824
    %3036 = vmatprep.subr.bf16.mxu0 %v1817
    %3037 = vmatpush2.bf16.msra.mxu0 %v1816
    %3038 = vmatprep.subr.bf16.mxu0 %v1809
    %3039 = vmatpush2.bf16.msra.mxu0 %v1808
    %3040 = vmatprep.subr.bf16.mxu0 %v1801
    %3041 = vmatpush2.bf16.msra.mxu0 %v1800
    %3042 = vmatprep.subr.bf16.mxu0 %v1793
    %3043 = vmatpush2.bf16.msra.mxu0 %v1792
    %3044 = vmatprep.subr.bf16.mxu0 %v1785
    %3045 = vmatpush2.bf16.msra.mxu0 %v1784
    %3046 = vmatprep.mubr.bf16.mxu0 %v2884
    %3047 = vmatmul.mubr.bf16.gmra.mxu0 %v2883
    %v3048 = vpop.f32.mrf.mxu0
    %v3049 = vadd.f32 0.0, %v3048
    %v3050 = vpop.f32.mrf.mxu0
    %v3051 = vadd.f32 0.0, %v3050
    %v3052 = vpop.f32.mrf.mxu0
    %v3053 = vadd.f32 0.0, %v3052
    %v3054 = vpop.f32.mrf.mxu0
    %v3055 = vadd.f32 0.0, %v3054
    %3056 = vdwg.mxu0
    %v3057 = vadd.f32 %v2867, %v2920
    %v3058 = vadd.f32 %v2868, %v2922
    %v3059 = vadd.f32 %v2869, %v2963
    %v3060 = vadd.f32 %v2870, %v2965
    %v3061 = vadd.f32 %v2871, %v3006
    %v3062 = vadd.f32 %v2872, %v3008
    %v3063 = vadd.f32 %v2873, %v3049
    %v3064 = vadd.f32 %v2874, %v3051
    %v3065 = vadd.f32 %v2875, %v2924
    %v3066 = vadd.f32 %v2876, %v2926
    %v3067 = vadd.f32 %v2877, %v2967
    %v3068 = vadd.f32 %v2878, %v2969
    %v3069 = vadd.f32 %v2879, %v3010
    %v3070 = vadd.f32 %v2880, %v3012
    %v3071 = vadd.f32 %v2881, %v3053
    %v3072 = vadd.f32 %v2882, %v3055
    %v3073 = vxor.u32 %v3057, 2147483648
    %v3074 = vxor.u32 %v3058, 2147483648
    %v3075 = vxor.u32 %v3065, 2147483648
    %v3076 = vxor.u32 %v3066, 2147483648
    %v3077 = vmul.f32 %v3073, 1.442695
    %v3078 = vpow.pop %v3077
    %v3079 = vmul.f32 %v3074, 1.442695
    %v3080 = vpow.pop %v3079
    %v3081 = vmul.f32 %v3075, 1.442695
    %v3082 = vpow.pop %v3081
    %v3083 = vmul.f32 %v3076, 1.442695
    %v3084 = vpow.pop %v3083
    %v3085 = vadd.f32 %v3078, 1.0
    %v3086 = vadd.f32 %v3080, 1.0
    %v3087 = vadd.f32 %v3082, 1.0
    %v3088 = vadd.f32 %v3084, 1.0
    %v3089 = vrcp.pop %v3085
    %v3090 = vmul.f32 1.0, %v3089
    %v3091 = vrcp.pop %v3086
    %v3092 = vmul.f32 1.0, %v3091
    %v3093 = vrcp.pop %v3087
    %v3094 = vmul.f32 1.0, %v3093
    %v3095 = vrcp.pop %v3088
    %v3096 = vmul.f32 1.0, %v3095
    %v3097 = vxor.u32 %v3059, 2147483648
    %v3098 = vxor.u32 %v3060, 2147483648
    %v3099 = vxor.u32 %v3067, 2147483648
    %v3100 = vxor.u32 %v3068, 2147483648
    %v3101 = vmul.f32 %v3097, 1.442695
    %v3102 = vpow.pop %v3101
    %v3103 = vmul.f32 %v3098, 1.442695
    %v3104 = vpow.pop %v3103
    %v3105 = vmul.f32 %v3099, 1.442695
    %v3106 = vpow.pop %v3105
    %v3107 = vmul.f32 %v3100, 1.442695
    %v3108 = vpow.pop %v3107
    %v3109 = vadd.f32 %v3102, 1.0
    %v3110 = vadd.f32 %v3104, 1.0
    %v3111 = vadd.f32 %v3106, 1.0
    %v3112 = vadd.f32 %v3108, 1.0
    %v3113 = vrcp.pop %v3109
    %v3114 = vmul.f32 1.0, %v3113
    %v3115 = vrcp.pop %v3110
    %v3116 = vmul.f32 1.0, %v3115
    %v3117 = vrcp.pop %v3111
    %v3118 = vmul.f32 1.0, %v3117
    %v3119 = vrcp.pop %v3112
    %v3120 = vmul.f32 1.0, %v3119
    %v3121 = vtanh.pop %v3061
    %v3122 = vtanh.pop %v3062
    %v3123 = vtanh.pop %v3069
    %v3124 = vtanh.pop %v3070
    %v3125 = vxor.u32 %v3063, 2147483648
    %v3126 = vxor.u32 %v3064, 2147483648
    %v3127 = vxor.u32 %v3071, 2147483648
    %v3128 = vxor.u32 %v3072, 2147483648
    %v3129 = vmul.f32 %v3125, 1.442695
    %v3130 = vpow.pop %v3129
    %v3131 = vmul.f32 %v3126, 1.442695
    %v3132 = vpow.pop %v3131
    %v3133 = vmul.f32 %v3127, 1.442695
    %v3134 = vpow.pop %v3133
    %v3135 = vmul.f32 %v3128, 1.442695
    %v3136 = vpow.pop %v3135
    %v3137 = vadd.f32 %v3130, 1.0
    %v3138 = vadd.f32 %v3132, 1.0
    %v3139 = vadd.f32 %v3134, 1.0
    %v3140 = vadd.f32 %v3136, 1.0
    %v3141 = vrcp.pop %v3137
    %v3142 = vmul.f32 1.0, %v3141
    %v3143 = vrcp.pop %v3138
    %v3144 = vmul.f32 1.0, %v3143
    %v3145 = vrcp.pop %v3139
    %v3146 = vmul.f32 1.0, %v3145
    %v3147 = vrcp.pop %v3140
    %v3148 = vmul.f32 1.0, %v3147
    %v3149 = vmul.f32 %v3114, %v2852
    %v3150 = vmul.f32 %v3116, %v2853
    %v3151 = vmul.f32 %v3118, %v2854
    %v3152 = vmul.f32 %v3120, %v2855
    %v3153 = vmul.f32 %v3090, %v3121
    %v3154 = vmul.f32 %v3092, %v3122
    %v3155 = vmul.f32 %v3094, %v3123
    %v3156 = vmul.f32 %v3096, %v3124
    %v3157 = vadd.f32 %v3149, %v3153
    %v3158 = vadd.f32 %v3150, %v3154
    %v3159 = vadd.f32 %v3151, %v3155
    %v3160 = vadd.f32 %v3152, %v3156
    %v3161 = vtanh.pop %v3157
    %v3162 = vtanh.pop %v3158
    %v3163 = vtanh.pop %v3159
    %v3164 = vtanh.pop %v3160
    %v3165 = vmul.f32 %v3142, %v3161
    %v3166 = vmul.f32 %v3144, %v3162
    %v3167 = vmul.f32 %v3146, %v3163
    %v3168 = vmul.f32 %v3148, %v3164
    %s3169 = smul.u32 8, 8
    %s3170 = smul.addr %s3169, 8
    %s3171 = scalar_lea.vmem [#allocation4], %s3170
    %v3172 = vld [vmem:[%s3171] sm:$0xff]
    %v3173 = vld [vmem:[%s3171 + $0x8] sm:$0xff]
    %v3174 = vld [vmem:[%s3171 + $0x10] sm:$0xff]
    %v3175 = vld [vmem:[%s3171 + $0x18] sm:$0xff]
    %v3176 = vld [vmem:[%s3171 + $0x20] sm:$0xff]
    %v3177 = vld [vmem:[%s3171 + $0x28] sm:$0xff]
    %v3178 = vld [vmem:[%s3171 + $0x30] sm:$0xff]
    %v3179 = vld [vmem:[%s3171 + $0x38] sm:$0xff]
    %v3180 = vld [vmem:[%s3171 + $0x40] sm:$0xff]
    %v3181 = vld [vmem:[%s3171 + $0x48] sm:$0xff]
    %v3182 = vld [vmem:[%s3171 + $0x50] sm:$0xff]
    %v3183 = vld [vmem:[%s3171 + $0x58] sm:$0xff]
    %v3184 = vld [vmem:[%s3171 + $0x60] sm:$0xff]
    %v3185 = vld [vmem:[%s3171 + $0x68] sm:$0xff]
    %v3186 = vld [vmem:[%s3171 + $0x70] sm:$0xff]
    %v3187 = vld [vmem:[%s3171 + $0x78] sm:$0xff]
    %v3188 = vpack.c.bf16 %v3167, %v3165
    %v3189 = vpack.c.bf16 %v3168, %v3166
    %3190 = vmatprep.subr.bf16.mxu0 %v1771
    %3191 = vmatpush1.bf16.msra.mxu0 %v1770
    %3192 = vmatprep.subr.bf16.mxu0 %v1763
    %3193 = vmatpush1.bf16.msra.mxu0 %v1762
    %3194 = vmatprep.subr.bf16.mxu0 %v1755
    %3195 = vmatpush1.bf16.msra.mxu0 %v1754
    %3196 = vmatprep.subr.bf16.mxu0 %v1747
    %3197 = vmatpush1.bf16.msra.mxu0 %v1746
    %3198 = vmatprep.subr.bf16.mxu0 %v1739
    %3199 = vmatpush1.bf16.msra.mxu0 %v1738
    %3200 = vmatprep.subr.bf16.mxu0 %v1731
    %3201 = vmatpush1.bf16.msra.mxu0 %v1730
    %3202 = vmatprep.subr.bf16.mxu0 %v1723
    %3203 = vmatpush1.bf16.msra.mxu0 %v1722
    %3204 = vmatprep.subr.bf16.mxu0 %v1715
    %3205 = vmatpush1.bf16.msra.mxu0 %v1714
    %3206 = vmatprep.subr.bf16.mxu0 %v1835
    %3207 = vmatpush2.bf16.msra.mxu0 %v1834
    %3208 = vmatprep.subr.bf16.mxu0 %v1827
    %3209 = vmatpush2.bf16.msra.mxu0 %v1826
    %3210 = vmatprep.subr.bf16.mxu0 %v1819
    %3211 = vmatpush2.bf16.msra.mxu0 %v1818
    %3212 = vmatprep.subr.bf16.mxu0 %v1811
    %3213 = vmatpush2.bf16.msra.mxu0 %v1810
    %3214 = vmatprep.subr.bf16.mxu0 %v1803
    %3215 = vmatpush2.bf16.msra.mxu0 %v1802
    %3216 = vmatprep.subr.bf16.mxu0 %v1795
    %3217 = vmatpush2.bf16.msra.mxu0 %v1794
    %3218 = vmatprep.subr.bf16.mxu0 %v1787
    %3219 = vmatpush2.bf16.msra.mxu0 %v1786
    %3220 = vmatprep.subr.bf16.mxu0 %v1779
    %3221 = vmatpush2.bf16.msra.mxu0 %v1778
    %3222 = vmatprep.mubr.bf16.mxu0 %v3189
    %3223 = vmatmul.mubr.bf16.gmra.mxu0 %v3188
    %v3224 = vpop.f32.mrf.mxu0
    %v3225 = vadd.f32 0.0, %v3224
    %v3226 = vpop.f32.mrf.mxu0
    %v3227 = vadd.f32 0.0, %v3226
    %v3228 = vpop.f32.mrf.mxu0
    %v3229 = vadd.f32 0.0, %v3228
    %v3230 = vpop.f32.mrf.mxu0
    %v3231 = vadd.f32 0.0, %v3230
    %3232 = vdwg.mxu0
    %3233 = vmatprep.subr.bf16.mxu0 %v1773
    %3234 = vmatpush1.bf16.msra.mxu0 %v1772
    %3235 = vmatprep.subr.bf16.mxu0 %v1765
    %3236 = vmatpush1.bf16.msra.mxu0 %v1764
    %3237 = vmatprep.subr.bf16.mxu0 %v1757
    %3238 = vmatpush1.bf16.msra.mxu0 %v1756
    %3239 = vmatprep.subr.bf16.mxu0 %v1749
    %3240 = vmatpush1.bf16.msra.mxu0 %v1748
    %3241 = vmatprep.subr.bf16.mxu0 %v1741
    %3242 = vmatpush1.bf16.msra.mxu0 %v1740
    %3243 = vmatprep.subr.bf16.mxu0 %v1733
    %3244 = vmatpush1.bf16.msra.mxu0 %v1732
    %3245 = vmatprep.subr.bf16.mxu0 %v1725
    %3246 = vmatpush1.bf16.msra.mxu0 %v1724
    %3247 = vmatprep.subr.bf16.mxu0 %v1717
    %3248 = vmatpush1.bf16.msra.mxu0 %v1716
    %3249 = vmatprep.subr.bf16.mxu0 %v1837
    %3250 = vmatpush2.bf16.msra.mxu0 %v1836
    %3251 = vmatprep.subr.bf16.mxu0 %v1829
    %3252 = vmatpush2.bf16.msra.mxu0 %v1828
    %3253 = vmatprep.subr.bf16.mxu0 %v1821
    %3254 = vmatpush2.bf16.msra.mxu0 %v1820
    %3255 = vmatprep.subr.bf16.mxu0 %v1813
    %3256 = vmatpush2.bf16.msra.mxu0 %v1812
    %3257 = vmatprep.subr.bf16.mxu0 %v1805
    %3258 = vmatpush2.bf16.msra.mxu0 %v1804
    %3259 = vmatprep.subr.bf16.mxu0 %v1797
    %3260 = vmatpush2.bf16.msra.mxu0 %v1796
    %3261 = vmatprep.subr.bf16.mxu0 %v1789
    %3262 = vmatpush2.bf16.msra.mxu0 %v1788
    %3263 = vmatprep.subr.bf16.mxu0 %v1781
    %3264 = vmatpush2.bf16.msra.mxu0 %v1780
    %3265 = vmatprep.mubr.bf16.mxu0 %v3189
    %3266 = vmatmul.mubr.bf16.gmra.mxu0 %v3188
    %v3267 = vpop.f32.mrf.mxu0
    %v3268 = vadd.f32 0.0, %v3267
    %v3269 = vpop.f32.mrf.mxu0
    %v3270 = vadd.f32 0.0, %v3269
    %v3271 = vpop.f32.mrf.mxu0
    %v3272 = vadd.f32 0.0, %v3271
    %v3273 = vpop.f32.mrf.mxu0
    %v3274 = vadd.f32 0.0, %v3273
    %3275 = vdwg.mxu0
    %3276 = vmatprep.subr.bf16.mxu0 %v1775
    %3277 = vmatpush1.bf16.msra.mxu0 %v1774
    %3278 = vmatprep.subr.bf16.mxu0 %v1767
    %3279 = vmatpush1.bf16.msra.mxu0 %v1766
    %3280 = vmatprep.subr.bf16.mxu0 %v1759
    %3281 = vmatpush1.bf16.msra.mxu0 %v1758
    %3282 = vmatprep.subr.bf16.mxu0 %v1751
    %3283 = vmatpush1.bf16.msra.mxu0 %v1750
    %3284 = vmatprep.subr.bf16.mxu0 %v1743
    %3285 = vmatpush1.bf16.msra.mxu0 %v1742
    %3286 = vmatprep.subr.bf16.mxu0 %v1735
    %3287 = vmatpush1.bf16.msra.mxu0 %v1734
    %3288 = vmatprep.subr.bf16.mxu0 %v1727
    %3289 = vmatpush1.bf16.msra.mxu0 %v1726
    %3290 = vmatprep.subr.bf16.mxu0 %v1719
    %3291 = vmatpush1.bf16.msra.mxu0 %v1718
    %3292 = vmatprep.subr.bf16.mxu0 %v1839
    %3293 = vmatpush2.bf16.msra.mxu0 %v1838
    %3294 = vmatprep.subr.bf16.mxu0 %v1831
    %3295 = vmatpush2.bf16.msra.mxu0 %v1830
    %3296 = vmatprep.subr.bf16.mxu0 %v1823
    %3297 = vmatpush2.bf16.msra.mxu0 %v1822
    %3298 = vmatprep.subr.bf16.mxu0 %v1815
    %3299 = vmatpush2.bf16.msra.mxu0 %v1814
    %3300 = vmatprep.subr.bf16.mxu0 %v1807
    %3301 = vmatpush2.bf16.msra.mxu0 %v1806
    %3302 = vmatprep.subr.bf16.mxu0 %v1799
    %3303 = vmatpush2.bf16.msra.mxu0 %v1798
    %3304 = vmatprep.subr.bf16.mxu0 %v1791
    %3305 = vmatpush2.bf16.msra.mxu0 %v1790
    %3306 = vmatprep.subr.bf16.mxu0 %v1783
    %3307 = vmatpush2.bf16.msra.mxu0 %v1782
    %3308 = vmatprep.mubr.bf16.mxu0 %v3189
    %3309 = vmatmul.mubr.bf16.gmra.mxu0 %v3188
    %v3310 = vpop.f32.mrf.mxu0
    %v3311 = vadd.f32 0.0, %v3310
    %v3312 = vpop.f32.mrf.mxu0
    %v3313 = vadd.f32 0.0, %v3312
    %v3314 = vpop.f32.mrf.mxu0
    %v3315 = vadd.f32 0.0, %v3314
    %v3316 = vpop.f32.mrf.mxu0
    %v3317 = vadd.f32 0.0, %v3316
    %3318 = vdwg.mxu0
    %3319 = vmatprep.subr.bf16.mxu0 %v1777
    %3320 = vmatpush1.bf16.msra.mxu0 %v1776
    %3321 = vmatprep.subr.bf16.mxu0 %v1769
    %3322 = vmatpush1.bf16.msra.mxu0 %v1768
    %3323 = vmatprep.subr.bf16.mxu0 %v1761
    %3324 = vmatpush1.bf16.msra.mxu0 %v1760
    %3325 = vmatprep.subr.bf16.mxu0 %v1753
    %3326 = vmatpush1.bf16.msra.mxu0 %v1752
    %3327 = vmatprep.subr.bf16.mxu0 %v1745
    %3328 = vmatpush1.bf16.msra.mxu0 %v1744
    %3329 = vmatprep.subr.bf16.mxu0 %v1737
    %3330 = vmatpush1.bf16.msra.mxu0 %v1736
    %3331 = vmatprep.subr.bf16.mxu0 %v1729
    %3332 = vmatpush1.bf16.msra.mxu0 %v1728
    %3333 = vmatprep.subr.bf16.mxu0 %v1721
    %3334 = vmatpush1.bf16.msra.mxu0 %v1720
    %3335 = vmatprep.subr.bf16.mxu0 %v1841
    %3336 = vmatpush2.bf16.msra.mxu0 %v1840
    %3337 = vmatprep.subr.bf16.mxu0 %v1833
    %3338 = vmatpush2.bf16.msra.mxu0 %v1832
    %3339 = vmatprep.subr.bf16.mxu0 %v1825
    %3340 = vmatpush2.bf16.msra.mxu0 %v1824
    %3341 = vmatprep.subr.bf16.mxu0 %v1817
    %3342 = vmatpush2.bf16.msra.mxu0 %v1816
    %3343 = vmatprep.subr.bf16.mxu0 %v1809
    %3344 = vmatpush2.bf16.msra.mxu0 %v1808
    %3345 = vmatprep.subr.bf16.mxu0 %v1801
    %3346 = vmatpush2.bf16.msra.mxu0 %v1800
    %3347 = vmatprep.subr.bf16.mxu0 %v1793
    %3348 = vmatpush2.bf16.msra.mxu0 %v1792
    %3349 = vmatprep.subr.bf16.mxu0 %v1785
    %3350 = vmatpush2.bf16.msra.mxu0 %v1784
    %3351 = vmatprep.mubr.bf16.mxu0 %v3189
    %3352 = vmatmul.mubr.bf16.gmra.mxu0 %v3188
    %v3353 = vpop.f32.mrf.mxu0
    %v3354 = vadd.f32 0.0, %v3353
    %v3355 = vpop.f32.mrf.mxu0
    %v3356 = vadd.f32 0.0, %v3355
    %v3357 = vpop.f32.mrf.mxu0
    %v3358 = vadd.f32 0.0, %v3357
    %v3359 = vpop.f32.mrf.mxu0
    %v3360 = vadd.f32 0.0, %v3359
    %3361 = vdwg.mxu0
    %v3362 = vadd.f32 %v3172, %v3225
    %v3363 = vadd.f32 %v3173, %v3227
    %v3364 = vadd.f32 %v3174, %v3268
    %v3365 = vadd.f32 %v3175, %v3270
    %v3366 = vadd.f32 %v3176, %v3311
    %v3367 = vadd.f32 %v3177, %v3313
    %v3368 = vadd.f32 %v3178, %v3354
    %v3369 = vadd.f32 %v3179, %v3356
    %v3370 = vadd.f32 %v3180, %v3229
    %v3371 = vadd.f32 %v3181, %v3231
    %v3372 = vadd.f32 %v3182, %v3272
    %v3373 = vadd.f32 %v3183, %v3274
    %v3374 = vadd.f32 %v3184, %v3315
    %v3375 = vadd.f32 %v3185, %v3317
    %v3376 = vadd.f32 %v3186, %v3358
    %v3377 = vadd.f32 %v3187, %v3360
    %v3378 = vxor.u32 %v3362, 2147483648
    %v3379 = vxor.u32 %v3363, 2147483648
    %v3380 = vxor.u32 %v3370, 2147483648
    %v3381 = vxor.u32 %v3371, 2147483648
    %v3382 = vmul.f32 %v3378, 1.442695
    %v3383 = vpow.pop %v3382
    %v3384 = vmul.f32 %v3379, 1.442695
    %v3385 = vpow.pop %v3384
    %v3386 = vmul.f32 %v3380, 1.442695
    %v3387 = vpow.pop %v3386
    %v3388 = vmul.f32 %v3381, 1.442695
    %v3389 = vpow.pop %v3388
    %v3390 = vadd.f32 %v3383, 1.0
    %v3391 = vadd.f32 %v3385, 1.0
    %v3392 = vadd.f32 %v3387, 1.0
    %v3393 = vadd.f32 %v3389, 1.0
    %v3394 = vrcp.pop %v3390
    %v3395 = vmul.f32 1.0, %v3394
    %v3396 = vrcp.pop %v3391
    %v3397 = vmul.f32 1.0, %v3396
    %v3398 = vrcp.pop %v3392
    %v3399 = vmul.f32 1.0, %v3398
    %v3400 = vrcp.pop %v3393
    %v3401 = vmul.f32 1.0, %v3400
    %v3402 = vxor.u32 %v3364, 2147483648
    %v3403 = vxor.u32 %v3365, 2147483648
    %v3404 = vxor.u32 %v3372, 2147483648
    %v3405 = vxor.u32 %v3373, 2147483648
    %v3406 = vmul.f32 %v3402, 1.442695
    %v3407 = vpow.pop %v3406
    %v3408 = vmul.f32 %v3403, 1.442695
    %v3409 = vpow.pop %v3408
    %v3410 = vmul.f32 %v3404, 1.442695
    %v3411 = vpow.pop %v3410
    %v3412 = vmul.f32 %v3405, 1.442695
    %v3413 = vpow.pop %v3412
    %v3414 = vadd.f32 %v3407, 1.0
    %v3415 = vadd.f32 %v3409, 1.0
    %v3416 = vadd.f32 %v3411, 1.0
    %v3417 = vadd.f32 %v3413, 1.0
    %v3418 = vrcp.pop %v3414
    %v3419 = vmul.f32 1.0, %v3418
    %v3420 = vrcp.pop %v3415
    %v3421 = vmul.f32 1.0, %v3420
    %v3422 = vrcp.pop %v3416
    %v3423 = vmul.f32 1.0, %v3422
    %v3424 = vrcp.pop %v3417
    %v3425 = vmul.f32 1.0, %v3424
    %v3426 = vtanh.pop %v3366
    %v3427 = vtanh.pop %v3367
    %v3428 = vtanh.pop %v3374
    %v3429 = vtanh.pop %v3375
    %v3430 = vxor.u32 %v3368, 2147483648
    %v3431 = vxor.u32 %v3369, 2147483648
    %v3432 = vxor.u32 %v3376, 2147483648
    %v3433 = vxor.u32 %v3377, 2147483648
    %v3434 = vmul.f32 %v3430, 1.442695
    %v3435 = vpow.pop %v3434
    %v3436 = vmul.f32 %v3431, 1.442695
    %v3437 = vpow.pop %v3436
    %v3438 = vmul.f32 %v3432, 1.442695
    %v3439 = vpow.pop %v3438
    %v3440 = vmul.f32 %v3433, 1.442695
    %v3441 = vpow.pop %v3440
    %v3442 = vadd.f32 %v3435, 1.0
    %v3443 = vadd.f32 %v3437, 1.0
    %v3444 = vadd.f32 %v3439, 1.0
    %v3445 = vadd.f32 %v3441, 1.0
    %v3446 = vrcp.pop %v3442
    %v3447 = vmul.f32 1.0, %v3446
    %v3448 = vrcp.pop %v3443
    %v3449 = vmul.f32 1.0, %v3448
    %v3450 = vrcp.pop %v3444
    %v3451 = vmul.f32 1.0, %v3450
    %v3452 = vrcp.pop %v3445
    %v3453 = vmul.f32 1.0, %v3452
    %v3454 = vmul.f32 %v3419, %v3157
    %v3455 = vmul.f32 %v3421, %v3158
    %v3456 = vmul.f32 %v3423, %v3159
    %v3457 = vmul.f32 %v3425, %v3160
    %v3458 = vmul.f32 %v3395, %v3426
    %v3459 = vmul.f32 %v3397, %v3427
    %v3460 = vmul.f32 %v3399, %v3428
    %v3461 = vmul.f32 %v3401, %v3429
    %v3462 = vadd.f32 %v3454, %v3458
    %v3463 = vadd.f32 %v3455, %v3459
    %v3464 = vadd.f32 %v3456, %v3460
    %v3465 = vadd.f32 %v3457, %v3461
    %v3466 = vtanh.pop %v3462
    %v3467 = vtanh.pop %v3463
    %v3468 = vtanh.pop %v3464
    %v3469 = vtanh.pop %v3465
    %v3470 = vmul.f32 %v3447, %v3466
    %v3471 = vmul.f32 %v3449, %v3467
    %v3472 = vmul.f32 %v3451, %v3468
    %v3473 = vmul.f32 %v3453, %v3469
    %s3474 = smul.u32 10, 8
    %s3475 = smul.addr %s3474, 8
    %s3476 = scalar_lea.vmem [#allocation4], %s3475
    %v3477 = vld [vmem:[%s3476] sm:$0xff]
    %v3478 = vld [vmem:[%s3476 + $0x8] sm:$0xff]
    %v3479 = vld [vmem:[%s3476 + $0x10] sm:$0xff]
    %v3480 = vld [vmem:[%s3476 + $0x18] sm:$0xff]
    %v3481 = vld [vmem:[%s3476 + $0x20] sm:$0xff]
    %v3482 = vld [vmem:[%s3476 + $0x28] sm:$0xff]
    %v3483 = vld [vmem:[%s3476 + $0x30] sm:$0xff]
    %v3484 = vld [vmem:[%s3476 + $0x38] sm:$0xff]
    %v3485 = vld [vmem:[%s3476 + $0x40] sm:$0xff]
    %v3486 = vld [vmem:[%s3476 + $0x48] sm:$0xff]
    %v3487 = vld [vmem:[%s3476 + $0x50] sm:$0xff]
    %v3488 = vld [vmem:[%s3476 + $0x58] sm:$0xff]
    %v3489 = vld [vmem:[%s3476 + $0x60] sm:$0xff]
    %v3490 = vld [vmem:[%s3476 + $0x68] sm:$0xff]
    %v3491 = vld [vmem:[%s3476 + $0x70] sm:$0xff]
    %v3492 = vld [vmem:[%s3476 + $0x78] sm:$0xff]
    %v3493 = vpack.c.bf16 %v3472, %v3470
    %v3494 = vpack.c.bf16 %v3473, %v3471
    %3495 = vmatprep.subr.bf16.mxu0 %v1771
    %3496 = vmatpush1.bf16.msra.mxu0 %v1770
    %3497 = vmatprep.subr.bf16.mxu0 %v1763
    %3498 = vmatpush1.bf16.msra.mxu0 %v1762
    %3499 = vmatprep.subr.bf16.mxu0 %v1755
    %3500 = vmatpush1.bf16.msra.mxu0 %v1754
    %3501 = vmatprep.subr.bf16.mxu0 %v1747
    %3502 = vmatpush1.bf16.msra.mxu0 %v1746
    %3503 = vmatprep.subr.bf16.mxu0 %v1739
    %3504 = vmatpush1.bf16.msra.mxu0 %v1738
    %3505 = vmatprep.subr.bf16.mxu0 %v1731
    %3506 = vmatpush1.bf16.msra.mxu0 %v1730
    %3507 = vmatprep.subr.bf16.mxu0 %v1723
    %3508 = vmatpush1.bf16.msra.mxu0 %v1722
    %3509 = vmatprep.subr.bf16.mxu0 %v1715
    %3510 = vmatpush1.bf16.msra.mxu0 %v1714
    %3511 = vmatprep.subr.bf16.mxu0 %v1835
    %3512 = vmatpush2.bf16.msra.mxu0 %v1834
    %3513 = vmatprep.subr.bf16.mxu0 %v1827
    %3514 = vmatpush2.bf16.msra.mxu0 %v1826
    %3515 = vmatprep.subr.bf16.mxu0 %v1819
    %3516 = vmatpush2.bf16.msra.mxu0 %v1818
    %3517 = vmatprep.subr.bf16.mxu0 %v1811
    %3518 = vmatpush2.bf16.msra.mxu0 %v1810
    %3519 = vmatprep.subr.bf16.mxu0 %v1803
    %3520 = vmatpush2.bf16.msra.mxu0 %v1802
    %3521 = vmatprep.subr.bf16.mxu0 %v1795
    %3522 = vmatpush2.bf16.msra.mxu0 %v1794
    %3523 = vmatprep.subr.bf16.mxu0 %v1787
    %3524 = vmatpush2.bf16.msra.mxu0 %v1786
    %3525 = vmatprep.subr.bf16.mxu0 %v1779
    %3526 = vmatpush2.bf16.msra.mxu0 %v1778
    %3527 = vmatprep.mubr.bf16.mxu0 %v3494
    %3528 = vmatmul.mubr.bf16.gmra.mxu0 %v3493
    %v3529 = vpop.f32.mrf.mxu0
    %v3530 = vadd.f32 0.0, %v3529
    %v3531 = vpop.f32.mrf.mxu0
    %v3532 = vadd.f32 0.0, %v3531
    %v3533 = vpop.f32.mrf.mxu0
    %v3534 = vadd.f32 0.0, %v3533
    %v3535 = vpop.f32.mrf.mxu0
    %v3536 = vadd.f32 0.0, %v3535
    %3537 = vdwg.mxu0
    %3538 = vmatprep.subr.bf16.mxu0 %v1773
    %3539 = vmatpush1.bf16.msra.mxu0 %v1772
    %3540 = vmatprep.subr.bf16.mxu0 %v1765
    %3541 = vmatpush1.bf16.msra.mxu0 %v1764
    %3542 = vmatprep.subr.bf16.mxu0 %v1757
    %3543 = vmatpush1.bf16.msra.mxu0 %v1756
    %3544 = vmatprep.subr.bf16.mxu0 %v1749
    %3545 = vmatpush1.bf16.msra.mxu0 %v1748
    %3546 = vmatprep.subr.bf16.mxu0 %v1741
    %3547 = vmatpush1.bf16.msra.mxu0 %v1740
    %3548 = vmatprep.subr.bf16.mxu0 %v1733
    %3549 = vmatpush1.bf16.msra.mxu0 %v1732
    %3550 = vmatprep.subr.bf16.mxu0 %v1725
    %3551 = vmatpush1.bf16.msra.mxu0 %v1724
    %3552 = vmatprep.subr.bf16.mxu0 %v1717
    %3553 = vmatpush1.bf16.msra.mxu0 %v1716
    %3554 = vmatprep.subr.bf16.mxu0 %v1837
    %3555 = vmatpush2.bf16.msra.mxu0 %v1836
    %3556 = vmatprep.subr.bf16.mxu0 %v1829
    %3557 = vmatpush2.bf16.msra.mxu0 %v1828
    %3558 = vmatprep.subr.bf16.mxu0 %v1821
    %3559 = vmatpush2.bf16.msra.mxu0 %v1820
    %3560 = vmatprep.subr.bf16.mxu0 %v1813
    %3561 = vmatpush2.bf16.msra.mxu0 %v1812
    %3562 = vmatprep.subr.bf16.mxu0 %v1805
    %3563 = vmatpush2.bf16.msra.mxu0 %v1804
    %3564 = vmatprep.subr.bf16.mxu0 %v1797
    %3565 = vmatpush2.bf16.msra.mxu0 %v1796
    %3566 = vmatprep.subr.bf16.mxu0 %v1789
    %3567 = vmatpush2.bf16.msra.mxu0 %v1788
    %3568 = vmatprep.subr.bf16.mxu0 %v1781
    %3569 = vmatpush2.bf16.msra.mxu0 %v1780
    %3570 = vmatprep.mubr.bf16.mxu0 %v3494
    %3571 = vmatmul.mubr.bf16.gmra.mxu0 %v3493
    %v3572 = vpop.f32.mrf.mxu0
    %v3573 = vadd.f32 0.0, %v3572
    %v3574 = vpop.f32.mrf.mxu0
    %v3575 = vadd.f32 0.0, %v3574
    %v3576 = vpop.f32.mrf.mxu0
    %v3577 = vadd.f32 0.0, %v3576
    %v3578 = vpop.f32.mrf.mxu0
    %v3579 = vadd.f32 0.0, %v3578
    %3580 = vdwg.mxu0
    %3581 = vmatprep.subr.bf16.mxu0 %v1775
    %3582 = vmatpush1.bf16.msra.mxu0 %v1774
    %3583 = vmatprep.subr.bf16.mxu0 %v1767
    %3584 = vmatpush1.bf16.msra.mxu0 %v1766
    %3585 = vmatprep.subr.bf16.mxu0 %v1759
    %3586 = vmatpush1.bf16.msra.mxu0 %v1758
    %3587 = vmatprep.subr.bf16.mxu0 %v1751
    %3588 = vmatpush1.bf16.msra.mxu0 %v1750
    %3589 = vmatprep.subr.bf16.mxu0 %v1743
    %3590 = vmatpush1.bf16.msra.mxu0 %v1742
    %3591 = vmatprep.subr.bf16.mxu0 %v1735
    %3592 = vmatpush1.bf16.msra.mxu0 %v1734
    %3593 = vmatprep.subr.bf16.mxu0 %v1727
    %3594 = vmatpush1.bf16.msra.mxu0 %v1726
    %3595 = vmatprep.subr.bf16.mxu0 %v1719
    %3596 = vmatpush1.bf16.msra.mxu0 %v1718
    %3597 = vmatprep.subr.bf16.mxu0 %v1839
    %3598 = vmatpush2.bf16.msra.mxu0 %v1838
    %3599 = vmatprep.subr.bf16.mxu0 %v1831
    %3600 = vmatpush2.bf16.msra.mxu0 %v1830
    %3601 = vmatprep.subr.bf16.mxu0 %v1823
    %3602 = vmatpush2.bf16.msra.mxu0 %v1822
    %3603 = vmatprep.subr.bf16.mxu0 %v1815
    %3604 = vmatpush2.bf16.msra.mxu0 %v1814
    %3605 = vmatprep.subr.bf16.mxu0 %v1807
    %3606 = vmatpush2.bf16.msra.mxu0 %v1806
    %3607 = vmatprep.subr.bf16.mxu0 %v1799
    %3608 = vmatpush2.bf16.msra.mxu0 %v1798
    %3609 = vmatprep.subr.bf16.mxu0 %v1791
    %3610 = vmatpush2.bf16.msra.mxu0 %v1790
    %3611 = vmatprep.subr.bf16.mxu0 %v1783
    %3612 = vmatpush2.bf16.msra.mxu0 %v1782
    %3613 = vmatprep.mubr.bf16.mxu0 %v3494
    %3614 = vmatmul.mubr.bf16.gmra.mxu0 %v3493
    %v3615 = vpop.f32.mrf.mxu0
    %v3616 = vadd.f32 0.0, %v3615
    %v3617 = vpop.f32.mrf.mxu0
    %v3618 = vadd.f32 0.0, %v3617
    %v3619 = vpop.f32.mrf.mxu0
    %v3620 = vadd.f32 0.0, %v3619
    %v3621 = vpop.f32.mrf.mxu0
    %v3622 = vadd.f32 0.0, %v3621
    %3623 = vdwg.mxu0
    %3624 = vmatprep.subr.bf16.mxu0 %v1777
    %3625 = vmatpush1.bf16.msra.mxu0 %v1776
    %3626 = vmatprep.subr.bf16.mxu0 %v1769
    %3627 = vmatpush1.bf16.msra.mxu0 %v1768
    %3628 = vmatprep.subr.bf16.mxu0 %v1761
    %3629 = vmatpush1.bf16.msra.mxu0 %v1760
    %3630 = vmatprep.subr.bf16.mxu0 %v1753
    %3631 = vmatpush1.bf16.msra.mxu0 %v1752
    %3632 = vmatprep.subr.bf16.mxu0 %v1745
    %3633 = vmatpush1.bf16.msra.mxu0 %v1744
    %3634 = vmatprep.subr.bf16.mxu0 %v1737
    %3635 = vmatpush1.bf16.msra.mxu0 %v1736
    %3636 = vmatprep.subr.bf16.mxu0 %v1729
    %3637 = vmatpush1.bf16.msra.mxu0 %v1728
    %3638 = vmatprep.subr.bf16.mxu0 %v1721
    %3639 = vmatpush1.bf16.msra.mxu0 %v1720
    %3640 = vmatprep.subr.bf16.mxu0 %v1841
    %3641 = vmatpush2.bf16.msra.mxu0 %v1840
    %3642 = vmatprep.subr.bf16.mxu0 %v1833
    %3643 = vmatpush2.bf16.msra.mxu0 %v1832
    %3644 = vmatprep.subr.bf16.mxu0 %v1825
    %3645 = vmatpush2.bf16.msra.mxu0 %v1824
    %3646 = vmatprep.subr.bf16.mxu0 %v1817
    %3647 = vmatpush2.bf16.msra.mxu0 %v1816
    %3648 = vmatprep.subr.bf16.mxu0 %v1809
    %3649 = vmatpush2.bf16.msra.mxu0 %v1808
    %3650 = vmatprep.subr.bf16.mxu0 %v1801
    %3651 = vmatpush2.bf16.msra.mxu0 %v1800
    %3652 = vmatprep.subr.bf16.mxu0 %v1793
    %3653 = vmatpush2.bf16.msra.mxu0 %v1792
    %3654 = vmatprep.subr.bf16.mxu0 %v1785
    %3655 = vmatpush2.bf16.msra.mxu0 %v1784
    %3656 = vmatprep.mubr.bf16.mxu0 %v3494
    %3657 = vmatmul.mubr.bf16.gmra.mxu0 %v3493
    %v3658 = vpop.f32.mrf.mxu0
    %v3659 = vadd.f32 0.0, %v3658
    %v3660 = vpop.f32.mrf.mxu0
    %v3661 = vadd.f32 0.0, %v3660
    %v3662 = vpop.f32.mrf.mxu0
    %v3663 = vadd.f32 0.0, %v3662
    %v3664 = vpop.f32.mrf.mxu0
    %v3665 = vadd.f32 0.0, %v3664
    %3666 = vdwg.mxu0
    %v3667 = vadd.f32 %v3477, %v3530
    %v3668 = vadd.f32 %v3478, %v3532
    %v3669 = vadd.f32 %v3479, %v3573
    %v3670 = vadd.f32 %v3480, %v3575
    %v3671 = vadd.f32 %v3481, %v3616
    %v3672 = vadd.f32 %v3482, %v3618
    %v3673 = vadd.f32 %v3483, %v3659
    %v3674 = vadd.f32 %v3484, %v3661
    %v3675 = vadd.f32 %v3485, %v3534
    %v3676 = vadd.f32 %v3486, %v3536
    %v3677 = vadd.f32 %v3487, %v3577
    %v3678 = vadd.f32 %v3488, %v3579
    %v3679 = vadd.f32 %v3489, %v3620
    %v3680 = vadd.f32 %v3490, %v3622
    %v3681 = vadd.f32 %v3491, %v3663
    %v3682 = vadd.f32 %v3492, %v3665
    %v3683 = vxor.u32 %v3667, 2147483648
    %v3684 = vxor.u32 %v3668, 2147483648
    %v3685 = vxor.u32 %v3675, 2147483648
    %v3686 = vxor.u32 %v3676, 2147483648
    %v3687 = vmul.f32 %v3683, 1.442695
    %v3688 = vpow.pop %v3687
    %v3689 = vmul.f32 %v3684, 1.442695
    %v3690 = vpow.pop %v3689
    %v3691 = vmul.f32 %v3685, 1.442695
    %v3692 = vpow.pop %v3691
    %v3693 = vmul.f32 %v3686, 1.442695
    %v3694 = vpow.pop %v3693
    %v3695 = vadd.f32 %v3688, 1.0
    %v3696 = vadd.f32 %v3690, 1.0
    %v3697 = vadd.f32 %v3692, 1.0
    %v3698 = vadd.f32 %v3694, 1.0
    %v3699 = vrcp.pop %v3695
    %v3700 = vmul.f32 1.0, %v3699
    %v3701 = vrcp.pop %v3696
    %v3702 = vmul.f32 1.0, %v3701
    %v3703 = vrcp.pop %v3697
    %v3704 = vmul.f32 1.0, %v3703
    %v3705 = vrcp.pop %v3698
    %v3706 = vmul.f32 1.0, %v3705
    %v3707 = vxor.u32 %v3669, 2147483648
    %v3708 = vxor.u32 %v3670, 2147483648
    %v3709 = vxor.u32 %v3677, 2147483648
    %v3710 = vxor.u32 %v3678, 2147483648
    %v3711 = vmul.f32 %v3707, 1.442695
    %v3712 = vpow.pop %v3711
    %v3713 = vmul.f32 %v3708, 1.442695
    %v3714 = vpow.pop %v3713
    %v3715 = vmul.f32 %v3709, 1.442695
    %v3716 = vpow.pop %v3715
    %v3717 = vmul.f32 %v3710, 1.442695
    %v3718 = vpow.pop %v3717
    %v3719 = vadd.f32 %v3712, 1.0
    %v3720 = vadd.f32 %v3714, 1.0
    %v3721 = vadd.f32 %v3716, 1.0
    %v3722 = vadd.f32 %v3718, 1.0
    %v3723 = vrcp.pop %v3719
    %v3724 = vmul.f32 1.0, %v3723
    %v3725 = vrcp.pop %v3720
    %v3726 = vmul.f32 1.0, %v3725
    %v3727 = vrcp.pop %v3721
    %v3728 = vmul.f32 1.0, %v3727
    %v3729 = vrcp.pop %v3722
    %v3730 = vmul.f32 1.0, %v3729
    %v3731 = vtanh.pop %v3671
    %v3732 = vtanh.pop %v3672
    %v3733 = vtanh.pop %v3679
    %v3734 = vtanh.pop %v3680
    %v3735 = vxor.u32 %v3673, 2147483648
    %v3736 = vxor.u32 %v3674, 2147483648
    %v3737 = vxor.u32 %v3681, 2147483648
    %v3738 = vxor.u32 %v3682, 2147483648
    %v3739 = vmul.f32 %v3735, 1.442695
    %v3740 = vpow.pop %v3739
    %v3741 = vmul.f32 %v3736, 1.442695
    %v3742 = vpow.pop %v3741
    %v3743 = vmul.f32 %v3737, 1.442695
    %v3744 = vpow.pop %v3743
    %v3745 = vmul.f32 %v3738, 1.442695
    %v3746 = vpow.pop %v3745
    %v3747 = vadd.f32 %v3740, 1.0
    %v3748 = vadd.f32 %v3742, 1.0
    %v3749 = vadd.f32 %v3744, 1.0
    %v3750 = vadd.f32 %v3746, 1.0
    %v3751 = vrcp.pop %v3747
    %v3752 = vmul.f32 1.0, %v3751
    %v3753 = vrcp.pop %v3748
    %v3754 = vmul.f32 1.0, %v3753
    %v3755 = vrcp.pop %v3749
    %v3756 = vmul.f32 1.0, %v3755
    %v3757 = vrcp.pop %v3750
    %v3758 = vmul.f32 1.0, %v3757
    %v3759 = vmul.f32 %v3724, %v3462
    %v3760 = vmul.f32 %v3726, %v3463
    %v3761 = vmul.f32 %v3728, %v3464
    %v3762 = vmul.f32 %v3730, %v3465
    %v3763 = vmul.f32 %v3700, %v3731
    %v3764 = vmul.f32 %v3702, %v3732
    %v3765 = vmul.f32 %v3704, %v3733
    %v3766 = vmul.f32 %v3706, %v3734
    %v3767 = vadd.f32 %v3759, %v3763
    %v3768 = vadd.f32 %v3760, %v3764
    %v3769 = vadd.f32 %v3761, %v3765
    %v3770 = vadd.f32 %v3762, %v3766
    %v3771 = vtanh.pop %v3767
    %v3772 = vtanh.pop %v3768
    %v3773 = vtanh.pop %v3769
    %v3774 = vtanh.pop %v3770
    %v3775 = vmul.f32 %v3752, %v3771
    %v3776 = vmul.f32 %v3754, %v3772
    %v3777 = vmul.f32 %v3756, %v3773
    %v3778 = vmul.f32 %v3758, %v3774
    %s3779 = smul.u32 12, 8
    %s3780 = smul.addr %s3779, 8
    %s3781 = scalar_lea.vmem [#allocation4], %s3780
    %v3782 = vld [vmem:[%s3781] sm:$0xff]
    %v3783 = vld [vmem:[%s3781 + $0x8] sm:$0xff]
    %v3784 = vld [vmem:[%s3781 + $0x10] sm:$0xff]
    %v3785 = vld [vmem:[%s3781 + $0x18] sm:$0xff]
    %v3786 = vld [vmem:[%s3781 + $0x20] sm:$0xff]
    %v3787 = vld [vmem:[%s3781 + $0x28] sm:$0xff]
    %v3788 = vld [vmem:[%s3781 + $0x30] sm:$0xff]
    %v3789 = vld [vmem:[%s3781 + $0x38] sm:$0xff]
    %v3790 = vld [vmem:[%s3781 + $0x40] sm:$0xff]
    %v3791 = vld [vmem:[%s3781 + $0x48] sm:$0xff]
    %v3792 = vld [vmem:[%s3781 + $0x50] sm:$0xff]
    %v3793 = vld [vmem:[%s3781 + $0x58] sm:$0xff]
    %v3794 = vld [vmem:[%s3781 + $0x60] sm:$0xff]
    %v3795 = vld [vmem:[%s3781 + $0x68] sm:$0xff]
    %v3796 = vld [vmem:[%s3781 + $0x70] sm:$0xff]
    %v3797 = vld [vmem:[%s3781 + $0x78] sm:$0xff]
    %v3798 = vpack.c.bf16 %v3777, %v3775
    %v3799 = vpack.c.bf16 %v3778, %v3776
    %3800 = vmatprep.subr.bf16.mxu0 %v1771
    %3801 = vmatpush1.bf16.msra.mxu0 %v1770
    %3802 = vmatprep.subr.bf16.mxu0 %v1763
    %3803 = vmatpush1.bf16.msra.mxu0 %v1762
    %3804 = vmatprep.subr.bf16.mxu0 %v1755
    %3805 = vmatpush1.bf16.msra.mxu0 %v1754
    %3806 = vmatprep.subr.bf16.mxu0 %v1747
    %3807 = vmatpush1.bf16.msra.mxu0 %v1746
    %3808 = vmatprep.subr.bf16.mxu0 %v1739
    %3809 = vmatpush1.bf16.msra.mxu0 %v1738
    %3810 = vmatprep.subr.bf16.mxu0 %v1731
    %3811 = vmatpush1.bf16.msra.mxu0 %v1730
    %3812 = vmatprep.subr.bf16.mxu0 %v1723
    %3813 = vmatpush1.bf16.msra.mxu0 %v1722
    %3814 = vmatprep.subr.bf16.mxu0 %v1715
    %3815 = vmatpush1.bf16.msra.mxu0 %v1714
    %3816 = vmatprep.subr.bf16.mxu0 %v1835
    %3817 = vmatpush2.bf16.msra.mxu0 %v1834
    %3818 = vmatprep.subr.bf16.mxu0 %v1827
    %3819 = vmatpush2.bf16.msra.mxu0 %v1826
    %3820 = vmatprep.subr.bf16.mxu0 %v1819
    %3821 = vmatpush2.bf16.msra.mxu0 %v1818
    %3822 = vmatprep.subr.bf16.mxu0 %v1811
    %3823 = vmatpush2.bf16.msra.mxu0 %v1810
    %3824 = vmatprep.subr.bf16.mxu0 %v1803
    %3825 = vmatpush2.bf16.msra.mxu0 %v1802
    %3826 = vmatprep.subr.bf16.mxu0 %v1795
    %3827 = vmatpush2.bf16.msra.mxu0 %v1794
    %3828 = vmatprep.subr.bf16.mxu0 %v1787
    %3829 = vmatpush2.bf16.msra.mxu0 %v1786
    %3830 = vmatprep.subr.bf16.mxu0 %v1779
    %3831 = vmatpush2.bf16.msra.mxu0 %v1778
    %3832 = vmatprep.mubr.bf16.mxu0 %v3799
    %3833 = vmatmul.mubr.bf16.gmra.mxu0 %v3798
    %v3834 = vpop.f32.mrf.mxu0
    %v3835 = vadd.f32 0.0, %v3834
    %v3836 = vpop.f32.mrf.mxu0
    %v3837 = vadd.f32 0.0, %v3836
    %v3838 = vpop.f32.mrf.mxu0
    %v3839 = vadd.f32 0.0, %v3838
    %v3840 = vpop.f32.mrf.mxu0
    %v3841 = vadd.f32 0.0, %v3840
    %3842 = vdwg.mxu0
    %3843 = vmatprep.subr.bf16.mxu0 %v1773
    %3844 = vmatpush1.bf16.msra.mxu0 %v1772
    %3845 = vmatprep.subr.bf16.mxu0 %v1765
    %3846 = vmatpush1.bf16.msra.mxu0 %v1764
    %3847 = vmatprep.subr.bf16.mxu0 %v1757
    %3848 = vmatpush1.bf16.msra.mxu0 %v1756
    %3849 = vmatprep.subr.bf16.mxu0 %v1749
    %3850 = vmatpush1.bf16.msra.mxu0 %v1748
    %3851 = vmatprep.subr.bf16.mxu0 %v1741
    %3852 = vmatpush1.bf16.msra.mxu0 %v1740
    %3853 = vmatprep.subr.bf16.mxu0 %v1733
    %3854 = vmatpush1.bf16.msra.mxu0 %v1732
    %3855 = vmatprep.subr.bf16.mxu0 %v1725
    %3856 = vmatpush1.bf16.msra.mxu0 %v1724
    %3857 = vmatprep.subr.bf16.mxu0 %v1717
    %3858 = vmatpush1.bf16.msra.mxu0 %v1716
    %3859 = vmatprep.subr.bf16.mxu0 %v1837
    %3860 = vmatpush2.bf16.msra.mxu0 %v1836
    %3861 = vmatprep.subr.bf16.mxu0 %v1829
    %3862 = vmatpush2.bf16.msra.mxu0 %v1828
    %3863 = vmatprep.subr.bf16.mxu0 %v1821
    %3864 = vmatpush2.bf16.msra.mxu0 %v1820
    %3865 = vmatprep.subr.bf16.mxu0 %v1813
    %3866 = vmatpush2.bf16.msra.mxu0 %v1812
    %3867 = vmatprep.subr.bf16.mxu0 %v1805
    %3868 = vmatpush2.bf16.msra.mxu0 %v1804
    %3869 = vmatprep.subr.bf16.mxu0 %v1797
    %3870 = vmatpush2.bf16.msra.mxu0 %v1796
    %3871 = vmatprep.subr.bf16.mxu0 %v1789
    %3872 = vmatpush2.bf16.msra.mxu0 %v1788
    %3873 = vmatprep.subr.bf16.mxu0 %v1781
    %3874 = vmatpush2.bf16.msra.mxu0 %v1780
    %3875 = vmatprep.mubr.bf16.mxu0 %v3799
    %3876 = vmatmul.mubr.bf16.gmra.mxu0 %v3798
    %v3877 = vpop.f32.mrf.mxu0
    %v3878 = vadd.f32 0.0, %v3877
    %v3879 = vpop.f32.mrf.mxu0
    %v3880 = vadd.f32 0.0, %v3879
    %v3881 = vpop.f32.mrf.mxu0
    %v3882 = vadd.f32 0.0, %v3881
    %v3883 = vpop.f32.mrf.mxu0
    %v3884 = vadd.f32 0.0, %v3883
    %3885 = vdwg.mxu0
    %3886 = vmatprep.subr.bf16.mxu0 %v1775
    %3887 = vmatpush1.bf16.msra.mxu0 %v1774
    %3888 = vmatprep.subr.bf16.mxu0 %v1767
    %3889 = vmatpush1.bf16.msra.mxu0 %v1766
    %3890 = vmatprep.subr.bf16.mxu0 %v1759
    %3891 = vmatpush1.bf16.msra.mxu0 %v1758
    %3892 = vmatprep.subr.bf16.mxu0 %v1751
    %3893 = vmatpush1.bf16.msra.mxu0 %v1750
    %3894 = vmatprep.subr.bf16.mxu0 %v1743
    %3895 = vmatpush1.bf16.msra.mxu0 %v1742
    %3896 = vmatprep.subr.bf16.mxu0 %v1735
    %3897 = vmatpush1.bf16.msra.mxu0 %v1734
    %3898 = vmatprep.subr.bf16.mxu0 %v1727
    %3899 = vmatpush1.bf16.msra.mxu0 %v1726
    %3900 = vmatprep.subr.bf16.mxu0 %v1719
    %3901 = vmatpush1.bf16.msra.mxu0 %v1718
    %3902 = vmatprep.subr.bf16.mxu0 %v1839
    %3903 = vmatpush2.bf16.msra.mxu0 %v1838
    %3904 = vmatprep.subr.bf16.mxu0 %v1831
    %3905 = vmatpush2.bf16.msra.mxu0 %v1830
    %3906 = vmatprep.subr.bf16.mxu0 %v1823
    %3907 = vmatpush2.bf16.msra.mxu0 %v1822
    %3908 = vmatprep.subr.bf16.mxu0 %v1815
    %3909 = vmatpush2.bf16.msra.mxu0 %v1814
    %3910 = vmatprep.subr.bf16.mxu0 %v1807
    %3911 = vmatpush2.bf16.msra.mxu0 %v1806
    %3912 = vmatprep.subr.bf16.mxu0 %v1799
    %3913 = vmatpush2.bf16.msra.mxu0 %v1798
    %3914 = vmatprep.subr.bf16.mxu0 %v1791
    %3915 = vmatpush2.bf16.msra.mxu0 %v1790
    %3916 = vmatprep.subr.bf16.mxu0 %v1783
    %3917 = vmatpush2.bf16.msra.mxu0 %v1782
    %3918 = vmatprep.mubr.bf16.mxu0 %v3799
    %3919 = vmatmul.mubr.bf16.gmra.mxu0 %v3798
    %v3920 = vpop.f32.mrf.mxu0
    %v3921 = vadd.f32 0.0, %v3920
    %v3922 = vpop.f32.mrf.mxu0
    %v3923 = vadd.f32 0.0, %v3922
    %v3924 = vpop.f32.mrf.mxu0
    %v3925 = vadd.f32 0.0, %v3924
    %v3926 = vpop.f32.mrf.mxu0
    %v3927 = vadd.f32 0.0, %v3926
    %3928 = vdwg.mxu0
    %3929 = vmatprep.subr.bf16.mxu0 %v1777
    %3930 = vmatpush1.bf16.msra.mxu0 %v1776
    %3931 = vmatprep.subr.bf16.mxu0 %v1769
    %3932 = vmatpush1.bf16.msra.mxu0 %v1768
    %3933 = vmatprep.subr.bf16.mxu0 %v1761
    %3934 = vmatpush1.bf16.msra.mxu0 %v1760
    %3935 = vmatprep.subr.bf16.mxu0 %v1753
    %3936 = vmatpush1.bf16.msra.mxu0 %v1752
    %3937 = vmatprep.subr.bf16.mxu0 %v1745
    %3938 = vmatpush1.bf16.msra.mxu0 %v1744
    %3939 = vmatprep.subr.bf16.mxu0 %v1737
    %3940 = vmatpush1.bf16.msra.mxu0 %v1736
    %3941 = vmatprep.subr.bf16.mxu0 %v1729
    %3942 = vmatpush1.bf16.msra.mxu0 %v1728
    %3943 = vmatprep.subr.bf16.mxu0 %v1721
    %3944 = vmatpush1.bf16.msra.mxu0 %v1720
    %3945 = vmatprep.subr.bf16.mxu0 %v1841
    %3946 = vmatpush2.bf16.msra.mxu0 %v1840
    %3947 = vmatprep.subr.bf16.mxu0 %v1833
    %3948 = vmatpush2.bf16.msra.mxu0 %v1832
    %3949 = vmatprep.subr.bf16.mxu0 %v1825
    %3950 = vmatpush2.bf16.msra.mxu0 %v1824
    %3951 = vmatprep.subr.bf16.mxu0 %v1817
    %3952 = vmatpush2.bf16.msra.mxu0 %v1816
    %3953 = vmatprep.subr.bf16.mxu0 %v1809
    %3954 = vmatpush2.bf16.msra.mxu0 %v1808
    %3955 = vmatprep.subr.bf16.mxu0 %v1801
    %3956 = vmatpush2.bf16.msra.mxu0 %v1800
    %3957 = vmatprep.subr.bf16.mxu0 %v1793
    %3958 = vmatpush2.bf16.msra.mxu0 %v1792
    %3959 = vmatprep.subr.bf16.mxu0 %v1785
    %3960 = vmatpush2.bf16.msra.mxu0 %v1784
    %3961 = vmatprep.mubr.bf16.mxu0 %v3799
    %3962 = vmatmul.mubr.bf16.gmra.mxu0 %v3798
    %v3963 = vpop.f32.mrf.mxu0
    %v3964 = vadd.f32 0.0, %v3963
    %v3965 = vpop.f32.mrf.mxu0
    %v3966 = vadd.f32 0.0, %v3965
    %v3967 = vpop.f32.mrf.mxu0
    %v3968 = vadd.f32 0.0, %v3967
    %v3969 = vpop.f32.mrf.mxu0
    %v3970 = vadd.f32 0.0, %v3969
    %3971 = vdwg.mxu0
    %v3972 = vadd.f32 %v3782, %v3835
    %v3973 = vadd.f32 %v3783, %v3837
    %v3974 = vadd.f32 %v3784, %v3878
    %v3975 = vadd.f32 %v3785, %v3880
    %v3976 = vadd.f32 %v3786, %v3921
    %v3977 = vadd.f32 %v3787, %v3923
    %v3978 = vadd.f32 %v3788, %v3964
    %v3979 = vadd.f32 %v3789, %v3966
    %v3980 = vadd.f32 %v3790, %v3839
    %v3981 = vadd.f32 %v3791, %v3841
    %v3982 = vadd.f32 %v3792, %v3882
    %v3983 = vadd.f32 %v3793, %v3884
    %v3984 = vadd.f32 %v3794, %v3925
    %v3985 = vadd.f32 %v3795, %v3927
    %v3986 = vadd.f32 %v3796, %v3968
    %v3987 = vadd.f32 %v3797, %v3970
    %v3988 = vxor.u32 %v3972, 2147483648
    %v3989 = vxor.u32 %v3973, 2147483648
    %v3990 = vxor.u32 %v3980, 2147483648
    %v3991 = vxor.u32 %v3981, 2147483648
    %v3992 = vmul.f32 %v3988, 1.442695
    %v3993 = vpow.pop %v3992
    %v3994 = vmul.f32 %v3989, 1.442695
    %v3995 = vpow.pop %v3994
    %v3996 = vmul.f32 %v3990, 1.442695
    %v3997 = vpow.pop %v3996
    %v3998 = vmul.f32 %v3991, 1.442695
    %v3999 = vpow.pop %v3998
    %v4000 = vadd.f32 %v3993, 1.0
    %v4001 = vadd.f32 %v3995, 1.0
    %v4002 = vadd.f32 %v3997, 1.0
    %v4003 = vadd.f32 %v3999, 1.0
    %v4004 = vrcp.pop %v4000
    %v4005 = vmul.f32 1.0, %v4004
    %v4006 = vrcp.pop %v4001
    %v4007 = vmul.f32 1.0, %v4006
    %v4008 = vrcp.pop %v4002
    %v4009 = vmul.f32 1.0, %v4008
    %v4010 = vrcp.pop %v4003
    %v4011 = vmul.f32 1.0, %v4010
    %v4012 = vxor.u32 %v3974, 2147483648
    %v4013 = vxor.u32 %v3975, 2147483648
    %v4014 = vxor.u32 %v3982, 2147483648
    %v4015 = vxor.u32 %v3983, 2147483648
    %v4016 = vmul.f32 %v4012, 1.442695
    %v4017 = vpow.pop %v4016
    %v4018 = vmul.f32 %v4013, 1.442695
    %v4019 = vpow.pop %v4018
    %v4020 = vmul.f32 %v4014, 1.442695
    %v4021 = vpow.pop %v4020
    %v4022 = vmul.f32 %v4015, 1.442695
    %v4023 = vpow.pop %v4022
    %v4024 = vadd.f32 %v4017, 1.0
    %v4025 = vadd.f32 %v4019, 1.0
    %v4026 = vadd.f32 %v4021, 1.0
    %v4027 = vadd.f32 %v4023, 1.0
    %v4028 = vrcp.pop %v4024
    %v4029 = vmul.f32 1.0, %v4028
    %v4030 = vrcp.pop %v4025
    %v4031 = vmul.f32 1.0, %v4030
    %v4032 = vrcp.pop %v4026
    %v4033 = vmul.f32 1.0, %v4032
    %v4034 = vrcp.pop %v4027
    %v4035 = vmul.f32 1.0, %v4034
    %v4036 = vtanh.pop %v3976
    %v4037 = vtanh.pop %v3977
    %v4038 = vtanh.pop %v3984
    %v4039 = vtanh.pop %v3985
    %v4040 = vxor.u32 %v3978, 2147483648
    %v4041 = vxor.u32 %v3979, 2147483648
    %v4042 = vxor.u32 %v3986, 2147483648
    %v4043 = vxor.u32 %v3987, 2147483648
    %v4044 = vmul.f32 %v4040, 1.442695
    %v4045 = vpow.pop %v4044
    %v4046 = vmul.f32 %v4041, 1.442695
    %v4047 = vpow.pop %v4046
    %v4048 = vmul.f32 %v4042, 1.442695
    %v4049 = vpow.pop %v4048
    %v4050 = vmul.f32 %v4043, 1.442695
    %v4051 = vpow.pop %v4050
    %v4052 = vadd.f32 %v4045, 1.0
    %v4053 = vadd.f32 %v4047, 1.0
    %v4054 = vadd.f32 %v4049, 1.0
    %v4055 = vadd.f32 %v4051, 1.0
    %v4056 = vrcp.pop %v4052
    %v4057 = vmul.f32 1.0, %v4056
    %v4058 = vrcp.pop %v4053
    %v4059 = vmul.f32 1.0, %v4058
    %v4060 = vrcp.pop %v4054
    %v4061 = vmul.f32 1.0, %v4060
    %v4062 = vrcp.pop %v4055
    %v4063 = vmul.f32 1.0, %v4062
    %v4064 = vmul.f32 %v4029, %v3767
    %v4065 = vmul.f32 %v4031, %v3768
    %v4066 = vmul.f32 %v4033, %v3769
    %v4067 = vmul.f32 %v4035, %v3770
    %v4068 = vmul.f32 %v4005, %v4036
    %v4069 = vmul.f32 %v4007, %v4037
    %v4070 = vmul.f32 %v4009, %v4038
    %v4071 = vmul.f32 %v4011, %v4039
    %v4072 = vadd.f32 %v4064, %v4068
    %v4073 = vadd.f32 %v4065, %v4069
    %v4074 = vadd.f32 %v4066, %v4070
    %v4075 = vadd.f32 %v4067, %v4071
    %v4076 = vtanh.pop %v4072
    %v4077 = vtanh.pop %v4073
    %v4078 = vtanh.pop %v4074
    %v4079 = vtanh.pop %v4075
    %v4080 = vmul.f32 %v4057, %v4076
    %v4081 = vmul.f32 %v4059, %v4077
    %v4082 = vmul.f32 %v4061, %v4078
    %v4083 = vmul.f32 %v4063, %v4079
    %s4084 = smul.u32 14, 8
    %s4085 = smul.addr %s4084, 8
    %s4086 = scalar_lea.vmem [#allocation4], %s4085
    %v4087 = vld [vmem:[%s4086] sm:$0xff]
    %v4088 = vld [vmem:[%s4086 + $0x8] sm:$0xff]
    %v4089 = vld [vmem:[%s4086 + $0x10] sm:$0xff]
    %v4090 = vld [vmem:[%s4086 + $0x18] sm:$0xff]
    %v4091 = vld [vmem:[%s4086 + $0x20] sm:$0xff]
    %v4092 = vld [vmem:[%s4086 + $0x28] sm:$0xff]
    %v4093 = vld [vmem:[%s4086 + $0x30] sm:$0xff]
    %v4094 = vld [vmem:[%s4086 + $0x38] sm:$0xff]
    %v4095 = vld [vmem:[%s4086 + $0x40] sm:$0xff]
    %v4096 = vld [vmem:[%s4086 + $0x48] sm:$0xff]
    %v4097 = vld [vmem:[%s4086 + $0x50] sm:$0xff]
    %v4098 = vld [vmem:[%s4086 + $0x58] sm:$0xff]
    %v4099 = vld [vmem:[%s4086 + $0x60] sm:$0xff]
    %v4100 = vld [vmem:[%s4086 + $0x68] sm:$0xff]
    %v4101 = vld [vmem:[%s4086 + $0x70] sm:$0xff]
    %v4102 = vld [vmem:[%s4086 + $0x78] sm:$0xff]
    %v4103 = vpack.c.bf16 %v4082, %v4080
    %v4104 = vpack.c.bf16 %v4083, %v4081
    %4105 = vmatprep.subr.bf16.mxu0 %v1771
    %4106 = vmatpush1.bf16.msra.mxu0 %v1770
    %4107 = vmatprep.subr.bf16.mxu0 %v1763
    %4108 = vmatpush1.bf16.msra.mxu0 %v1762
    %4109 = vmatprep.subr.bf16.mxu0 %v1755
    %4110 = vmatpush1.bf16.msra.mxu0 %v1754
    %4111 = vmatprep.subr.bf16.mxu0 %v1747
    %4112 = vmatpush1.bf16.msra.mxu0 %v1746
    %4113 = vmatprep.subr.bf16.mxu0 %v1739
    %4114 = vmatpush1.bf16.msra.mxu0 %v1738
    %4115 = vmatprep.subr.bf16.mxu0 %v1731
    %4116 = vmatpush1.bf16.msra.mxu0 %v1730
    %4117 = vmatprep.subr.bf16.mxu0 %v1723
    %4118 = vmatpush1.bf16.msra.mxu0 %v1722
    %4119 = vmatprep.subr.bf16.mxu0 %v1715
    %4120 = vmatpush1.bf16.msra.mxu0 %v1714
    %4121 = vmatprep.subr.bf16.mxu0 %v1835
    %4122 = vmatpush2.bf16.msra.mxu0 %v1834
    %4123 = vmatprep.subr.bf16.mxu0 %v1827
    %4124 = vmatpush2.bf16.msra.mxu0 %v1826
    %4125 = vmatprep.subr.bf16.mxu0 %v1819
    %4126 = vmatpush2.bf16.msra.mxu0 %v1818
    %4127 = vmatprep.subr.bf16.mxu0 %v1811
    %4128 = vmatpush2.bf16.msra.mxu0 %v1810
    %4129 = vmatprep.subr.bf16.mxu0 %v1803
    %4130 = vmatpush2.bf16.msra.mxu0 %v1802
    %4131 = vmatprep.subr.bf16.mxu0 %v1795
    %4132 = vmatpush2.bf16.msra.mxu0 %v1794
    %4133 = vmatprep.subr.bf16.mxu0 %v1787
    %4134 = vmatpush2.bf16.msra.mxu0 %v1786
    %4135 = vmatprep.subr.bf16.mxu0 %v1779
    %4136 = vmatpush2.bf16.msra.mxu0 %v1778
    %4137 = vmatprep.mubr.bf16.mxu0 %v4104
    %4138 = vmatmul.mubr.bf16.gmra.mxu0 %v4103
    %v4139 = vpop.f32.mrf.mxu0
    %v4140 = vadd.f32 0.0, %v4139
    %v4141 = vpop.f32.mrf.mxu0
    %v4142 = vadd.f32 0.0, %v4141
    %v4143 = vpop.f32.mrf.mxu0
    %v4144 = vadd.f32 0.0, %v4143
    %v4145 = vpop.f32.mrf.mxu0
    %v4146 = vadd.f32 0.0, %v4145
    %4147 = vdwg.mxu0
    %4148 = vmatprep.subr.bf16.mxu0 %v1773
    %4149 = vmatpush1.bf16.msra.mxu0 %v1772
    %4150 = vmatprep.subr.bf16.mxu0 %v1765
    %4151 = vmatpush1.bf16.msra.mxu0 %v1764
    %4152 = vmatprep.subr.bf16.mxu0 %v1757
    %4153 = vmatpush1.bf16.msra.mxu0 %v1756
    %4154 = vmatprep.subr.bf16.mxu0 %v1749
    %4155 = vmatpush1.bf16.msra.mxu0 %v1748
    %4156 = vmatprep.subr.bf16.mxu0 %v1741
    %4157 = vmatpush1.bf16.msra.mxu0 %v1740
    %4158 = vmatprep.subr.bf16.mxu0 %v1733
    %4159 = vmatpush1.bf16.msra.mxu0 %v1732
    %4160 = vmatprep.subr.bf16.mxu0 %v1725
    %4161 = vmatpush1.bf16.msra.mxu0 %v1724
    %4162 = vmatprep.subr.bf16.mxu0 %v1717
    %4163 = vmatpush1.bf16.msra.mxu0 %v1716
    %4164 = vmatprep.subr.bf16.mxu0 %v1837
    %4165 = vmatpush2.bf16.msra.mxu0 %v1836
    %4166 = vmatprep.subr.bf16.mxu0 %v1829
    %4167 = vmatpush2.bf16.msra.mxu0 %v1828
    %4168 = vmatprep.subr.bf16.mxu0 %v1821
    %4169 = vmatpush2.bf16.msra.mxu0 %v1820
    %4170 = vmatprep.subr.bf16.mxu0 %v1813
    %4171 = vmatpush2.bf16.msra.mxu0 %v1812
    %4172 = vmatprep.subr.bf16.mxu0 %v1805
    %4173 = vmatpush2.bf16.msra.mxu0 %v1804
    %4174 = vmatprep.subr.bf16.mxu0 %v1797
    %4175 = vmatpush2.bf16.msra.mxu0 %v1796
    %4176 = vmatprep.subr.bf16.mxu0 %v1789
    %4177 = vmatpush2.bf16.msra.mxu0 %v1788
    %4178 = vmatprep.subr.bf16.mxu0 %v1781
    %4179 = vmatpush2.bf16.msra.mxu0 %v1780
    %4180 = vmatprep.mubr.bf16.mxu0 %v4104
    %4181 = vmatmul.mubr.bf16.gmra.mxu0 %v4103
    %v4182 = vpop.f32.mrf.mxu0
    %v4183 = vadd.f32 0.0, %v4182
    %v4184 = vpop.f32.mrf.mxu0
    %v4185 = vadd.f32 0.0, %v4184
    %v4186 = vpop.f32.mrf.mxu0
    %v4187 = vadd.f32 0.0, %v4186
    %v4188 = vpop.f32.mrf.mxu0
    %v4189 = vadd.f32 0.0, %v4188
    %4190 = vdwg.mxu0
    %4191 = vmatprep.subr.bf16.mxu0 %v1775
    %4192 = vmatpush1.bf16.msra.mxu0 %v1774
    %4193 = vmatprep.subr.bf16.mxu0 %v1767
    %4194 = vmatpush1.bf16.msra.mxu0 %v1766
    %4195 = vmatprep.subr.bf16.mxu0 %v1759
    %4196 = vmatpush1.bf16.msra.mxu0 %v1758
    %4197 = vmatprep.subr.bf16.mxu0 %v1751
    %4198 = vmatpush1.bf16.msra.mxu0 %v1750
    %4199 = vmatprep.subr.bf16.mxu0 %v1743
    %4200 = vmatpush1.bf16.msra.mxu0 %v1742
    %4201 = vmatprep.subr.bf16.mxu0 %v1735
    %4202 = vmatpush1.bf16.msra.mxu0 %v1734
    %4203 = vmatprep.subr.bf16.mxu0 %v1727
    %4204 = vmatpush1.bf16.msra.mxu0 %v1726
    %4205 = vmatprep.subr.bf16.mxu0 %v1719
    %4206 = vmatpush1.bf16.msra.mxu0 %v1718
    %4207 = vmatprep.subr.bf16.mxu0 %v1839
    %4208 = vmatpush2.bf16.msra.mxu0 %v1838
    %4209 = vmatprep.subr.bf16.mxu0 %v1831
    %4210 = vmatpush2.bf16.msra.mxu0 %v1830
    %4211 = vmatprep.subr.bf16.mxu0 %v1823
    %4212 = vmatpush2.bf16.msra.mxu0 %v1822
    %4213 = vmatprep.subr.bf16.mxu0 %v1815
    %4214 = vmatpush2.bf16.msra.mxu0 %v1814
    %4215 = vmatprep.subr.bf16.mxu0 %v1807
    %4216 = vmatpush2.bf16.msra.mxu0 %v1806
    %4217 = vmatprep.subr.bf16.mxu0 %v1799
    %4218 = vmatpush2.bf16.msra.mxu0 %v1798
    %4219 = vmatprep.subr.bf16.mxu0 %v1791
    %4220 = vmatpush2.bf16.msra.mxu0 %v1790
    %4221 = vmatprep.subr.bf16.mxu0 %v1783
    %4222 = vmatpush2.bf16.msra.mxu0 %v1782
    %4223 = vmatprep.mubr.bf16.mxu0 %v4104
    %4224 = vmatmul.mubr.bf16.gmra.mxu0 %v4103
    %v4225 = vpop.f32.mrf.mxu0
    %v4226 = vadd.f32 0.0, %v4225
    %v4227 = vpop.f32.mrf.mxu0
    %v4228 = vadd.f32 0.0, %v4227
    %v4229 = vpop.f32.mrf.mxu0
    %v4230 = vadd.f32 0.0, %v4229
    %v4231 = vpop.f32.mrf.mxu0
    %v4232 = vadd.f32 0.0, %v4231
    %4233 = vdwg.mxu0
    %4234 = vmatprep.subr.bf16.mxu0 %v1777
    %4235 = vmatpush1.bf16.msra.mxu0 %v1776
    %4236 = vmatprep.subr.bf16.mxu0 %v1769
    %4237 = vmatpush1.bf16.msra.mxu0 %v1768
    %4238 = vmatprep.subr.bf16.mxu0 %v1761
    %4239 = vmatpush1.bf16.msra.mxu0 %v1760
    %4240 = vmatprep.subr.bf16.mxu0 %v1753
    %4241 = vmatpush1.bf16.msra.mxu0 %v1752
    %4242 = vmatprep.subr.bf16.mxu0 %v1745
    %4243 = vmatpush1.bf16.msra.mxu0 %v1744
    %4244 = vmatprep.subr.bf16.mxu0 %v1737
    %4245 = vmatpush1.bf16.msra.mxu0 %v1736
    %4246 = vmatprep.subr.bf16.mxu0 %v1729
    %4247 = vmatpush1.bf16.msra.mxu0 %v1728
    %4248 = vmatprep.subr.bf16.mxu0 %v1721
    %4249 = vmatpush1.bf16.msra.mxu0 %v1720
    %4250 = vmatprep.subr.bf16.mxu0 %v1841
    %4251 = vmatpush2.bf16.msra.mxu0 %v1840
    %4252 = vmatprep.subr.bf16.mxu0 %v1833
    %4253 = vmatpush2.bf16.msra.mxu0 %v1832
    %4254 = vmatprep.subr.bf16.mxu0 %v1825
    %4255 = vmatpush2.bf16.msra.mxu0 %v1824
    %4256 = vmatprep.subr.bf16.mxu0 %v1817
    %4257 = vmatpush2.bf16.msra.mxu0 %v1816
    %4258 = vmatprep.subr.bf16.mxu0 %v1809
    %4259 = vmatpush2.bf16.msra.mxu0 %v1808
    %4260 = vmatprep.subr.bf16.mxu0 %v1801
    %4261 = vmatpush2.bf16.msra.mxu0 %v1800
    %4262 = vmatprep.subr.bf16.mxu0 %v1793
    %4263 = vmatpush2.bf16.msra.mxu0 %v1792
    %4264 = vmatprep.subr.bf16.mxu0 %v1785
    %4265 = vmatpush2.bf16.msra.mxu0 %v1784
    %4266 = vmatprep.mubr.bf16.mxu0 %v4104
    %4267 = vmatmul.mubr.bf16.gmra.mxu0 %v4103
    %v4268 = vpop.f32.mrf.mxu0
    %v4269 = vadd.f32 0.0, %v4268
    %v4270 = vpop.f32.mrf.mxu0
    %v4271 = vadd.f32 0.0, %v4270
    %v4272 = vpop.f32.mrf.mxu0
    %v4273 = vadd.f32 0.0, %v4272
    %v4274 = vpop.f32.mrf.mxu0
    %v4275 = vadd.f32 0.0, %v4274
    %4276 = vdwg.mxu0
    %v4277 = vadd.f32 %v4087, %v4140
    %v4278 = vadd.f32 %v4088, %v4142
    %v4279 = vadd.f32 %v4089, %v4183
    %v4280 = vadd.f32 %v4090, %v4185
    %v4281 = vadd.f32 %v4091, %v4226
    %v4282 = vadd.f32 %v4092, %v4228
    %v4283 = vadd.f32 %v4093, %v4269
    %v4284 = vadd.f32 %v4094, %v4271
    %v4285 = vadd.f32 %v4095, %v4144
    %v4286 = vadd.f32 %v4096, %v4146
    %v4287 = vadd.f32 %v4097, %v4187
    %v4288 = vadd.f32 %v4098, %v4189
    %v4289 = vadd.f32 %v4099, %v4230
    %v4290 = vadd.f32 %v4100, %v4232
    %v4291 = vadd.f32 %v4101, %v4273
    %v4292 = vadd.f32 %v4102, %v4275
    %v4293 = vxor.u32 %v4277, 2147483648
    %v4294 = vxor.u32 %v4278, 2147483648
    %v4295 = vxor.u32 %v4285, 2147483648
    %v4296 = vxor.u32 %v4286, 2147483648
    %v4297 = vmul.f32 %v4293, 1.442695
    %v4298 = vpow.pop %v4297
    %v4299 = vmul.f32 %v4294, 1.442695
    %v4300 = vpow.pop %v4299
    %v4301 = vmul.f32 %v4295, 1.442695
    %v4302 = vpow.pop %v4301
    %v4303 = vmul.f32 %v4296, 1.442695
    %v4304 = vpow.pop %v4303
    %v4305 = vadd.f32 %v4298, 1.0
    %v4306 = vadd.f32 %v4300, 1.0
    %v4307 = vadd.f32 %v4302, 1.0
    %v4308 = vadd.f32 %v4304, 1.0
    %v4309 = vrcp.pop %v4305
    %v4310 = vmul.f32 1.0, %v4309
    %v4311 = vrcp.pop %v4306
    %v4312 = vmul.f32 1.0, %v4311
    %v4313 = vrcp.pop %v4307
    %v4314 = vmul.f32 1.0, %v4313
    %v4315 = vrcp.pop %v4308
    %v4316 = vmul.f32 1.0, %v4315
    %v4317 = vxor.u32 %v4279, 2147483648
    %v4318 = vxor.u32 %v4280, 2147483648
    %v4319 = vxor.u32 %v4287, 2147483648
    %v4320 = vxor.u32 %v4288, 2147483648
    %v4321 = vmul.f32 %v4317, 1.442695
    %v4322 = vpow.pop %v4321
    %v4323 = vmul.f32 %v4318, 1.442695
    %v4324 = vpow.pop %v4323
    %v4325 = vmul.f32 %v4319, 1.442695
    %v4326 = vpow.pop %v4325
    %v4327 = vmul.f32 %v4320, 1.442695
    %v4328 = vpow.pop %v4327
    %v4329 = vadd.f32 %v4322, 1.0
    %v4330 = vadd.f32 %v4324, 1.0
    %v4331 = vadd.f32 %v4326, 1.0
    %v4332 = vadd.f32 %v4328, 1.0
    %v4333 = vrcp.pop %v4329
    %v4334 = vmul.f32 1.0, %v4333
    %v4335 = vrcp.pop %v4330
    %v4336 = vmul.f32 1.0, %v4335
    %v4337 = vrcp.pop %v4331
    %v4338 = vmul.f32 1.0, %v4337
    %v4339 = vrcp.pop %v4332
    %v4340 = vmul.f32 1.0, %v4339
    %v4341 = vtanh.pop %v4281
    %v4342 = vtanh.pop %v4282
    %v4343 = vtanh.pop %v4289
    %v4344 = vtanh.pop %v4290
    %v4345 = vxor.u32 %v4283, 2147483648
    %v4346 = vxor.u32 %v4284, 2147483648
    %v4347 = vxor.u32 %v4291, 2147483648
    %v4348 = vxor.u32 %v4292, 2147483648
    %v4349 = vmul.f32 %v4345, 1.442695
    %v4350 = vpow.pop %v4349
    %v4351 = vmul.f32 %v4346, 1.442695
    %v4352 = vpow.pop %v4351
    %v4353 = vmul.f32 %v4347, 1.442695
    %v4354 = vpow.pop %v4353
    %v4355 = vmul.f32 %v4348, 1.442695
    %v4356 = vpow.pop %v4355
    %v4357 = vadd.f32 %v4350, 1.0
    %v4358 = vadd.f32 %v4352, 1.0
    %v4359 = vadd.f32 %v4354, 1.0
    %v4360 = vadd.f32 %v4356, 1.0
    %v4361 = vrcp.pop %v4357
    %v4362 = vmul.f32 1.0, %v4361
    %v4363 = vrcp.pop %v4358
    %v4364 = vmul.f32 1.0, %v4363
    %v4365 = vrcp.pop %v4359
    %v4366 = vmul.f32 1.0, %v4365
    %v4367 = vrcp.pop %v4360
    %v4368 = vmul.f32 1.0, %v4367
    %v4369 = vmul.f32 %v4334, %v4072
    %v4370 = vmul.f32 %v4336, %v4073
    %v4371 = vmul.f32 %v4338, %v4074
    %v4372 = vmul.f32 %v4340, %v4075
    %v4373 = vmul.f32 %v4310, %v4341
    %v4374 = vmul.f32 %v4312, %v4342
    %v4375 = vmul.f32 %v4314, %v4343
    %v4376 = vmul.f32 %v4316, %v4344
    %v4377 = vadd.f32 %v4369, %v4373
    %v4378 = vadd.f32 %v4370, %v4374
    %v4379 = vadd.f32 %v4371, %v4375
    %v4380 = vadd.f32 %v4372, %v4376
    %v4381 = vtanh.pop %v4377
    %v4382 = vtanh.pop %v4378
    %v4383 = vtanh.pop %v4379
    %v4384 = vtanh.pop %v4380
    %v4385 = vmul.f32 %v4362, %v4381
    %v4386 = vmul.f32 %v4364, %v4382
    %v4387 = vmul.f32 %v4366, %v4383
    %v4388 = vmul.f32 %v4368, %v4384
    %4389 = vst [vmem:[#allocation2] sm:$0xff] %v4385
    %4390 = vst [vmem:[#allocation2 + $0x8] sm:$0xff] %v4386
    %4391 = vst [vmem:[#allocation2 + $0x10] sm:$0xff] %v4387
    %4392 = vst [vmem:[#allocation2 + $0x18] sm:$0xff] %v4388
    %4393 = vst [vmem:[#allocation3] sm:$0xff] %v4377
    %4394 = vst [vmem:[#allocation3 + $0x8] sm:$0xff] %v4378
    %4395 = vst [vmem:[#allocation3 + $0x10] sm:$0xff] %v4379
    %4396 = vst [vmem:[#allocation3 + $0x18] sm:$0xff] %v4380
    // Predicated region
    $region50: #{tpu_custom_call.1} parent=1 // pred_check
      %p4397 = pneg %p91
    $region51: #{tpu_custom_call.1} parent=1 // pred_check_branch
      %4399 = sbr.rel (%p4397) target = $region53
    $region52: #{tpu_custom_call.1} parent=1 // pred_region
      %v4400 = vpack.c.bf16 %v4387, %v4385
      %v4401 = vpack.c.bf16 %v4388, %v4386
      %v4402 = vld [vmem:[#allocation13] sm:$0xff]
      %v4403 = vld [vmem:[#allocation13 + $0x8] sm:$0xff]
      %v4404 = vld [vmem:[#allocation13 + $0x10] sm:$0xff]
      %v4405 = vld [vmem:[#allocation13 + $0x18] sm:$0xff]
      %v4406 = vld [vmem:[#allocation13 + $0x20] sm:$0xff]
      %v4407 = vld [vmem:[#allocation13 + $0x28] sm:$0xff]
      %v4408 = vld [vmem:[#allocation13 + $0x30] sm:$0xff]
      %v4409 = vld [vmem:[#allocation13 + $0x38] sm:$0xff]
      %v4410 = vld [vmem:[#allocation13 + $0x40] sm:$0xff]
      %v4411 = vld [vmem:[#allocation13 + $0x48] sm:$0xff]
      %v4412 = vld [vmem:[#allocation13 + $0x50] sm:$0xff]
      %v4413 = vld [vmem:[#allocation13 + $0x58] sm:$0xff]
      %v4414 = vld [vmem:[#allocation13 + $0x60] sm:$0xff]
      %v4415 = vld [vmem:[#allocation13 + $0x68] sm:$0xff]
      %v4416 = vld [vmem:[#allocation13 + $0x70] sm:$0xff]
      %v4417 = vld [vmem:[#allocation13 + $0x78] sm:$0xff]
      %v4418 = vld [vmem:[#allocation13 + $0x80] sm:$0xff]
      %v4419 = vld [vmem:[#allocation13 + $0x88] sm:$0xff]
      %v4420 = vld [vmem:[#allocation13 + $0x90] sm:$0xff]
      %v4421 = vld [vmem:[#allocation13 + $0x98] sm:$0xff]
      %v4422 = vld [vmem:[#allocation13 + $0xa0] sm:$0xff]
      %v4423 = vld [vmem:[#allocation13 + $0xa8] sm:$0xff]
      %v4424 = vld [vmem:[#allocation13 + $0xb0] sm:$0xff]
      %v4425 = vld [vmem:[#allocation13 + $0xb8] sm:$0xff]
      %v4426 = vld [vmem:[#allocation13 + $0xc0] sm:$0xff]
      %v4427 = vld [vmem:[#allocation13 + $0xc8] sm:$0xff]
      %v4428 = vld [vmem:[#allocation13 + $0xd0] sm:$0xff]
      %v4429 = vld [vmem:[#allocation13 + $0xd8] sm:$0xff]
      %v4430 = vld [vmem:[#allocation13 + $0xe0] sm:$0xff]
      %v4431 = vld [vmem:[#allocation13 + $0xe8] sm:$0xff]
      %v4432 = vld [vmem:[#allocation13 + $0xf0] sm:$0xff]
      %v4433 = vld [vmem:[#allocation13 + $0xf8] sm:$0xff]
      %v4434 = vld [vmem:[%s5] sm:$0x3]
      %v4436 = vlaneseq
      %v4437 = vshrl.u32 %v4436, 7
      %v4438 = vsub.s32 0, %v4437
      %v4439 = vrot.slane %v4434, %v4438
      %v4440 = vlaneseq
      %v4441 = vshrl.u32 %v4440, 7
      %v4442 = vsub.s32 1, %v4441
      %v4443 = vrot.slane %v4434, %v4442
      %v4478 = vunpack.c.l.b16 %v4402
      %v4479 = vunpack.c.h.b16 %v4402
      %v4480 = vunpack.c.l.b16 %v4403
      %v4481 = vunpack.c.h.b16 %v4403
      %v4482 = vunpack.c.l.b16 %v4404
      %v4483 = vunpack.c.h.b16 %v4404
      %v4484 = vunpack.c.l.b16 %v4405
      %v4485 = vunpack.c.h.b16 %v4405
      %v4486 = vunpack.c.l.b16 %v4406
      %v4487 = vunpack.c.h.b16 %v4406
      %v4488 = vunpack.c.l.b16 %v4407
      %v4489 = vunpack.c.h.b16 %v4407
      %v4490 = vunpack.c.l.b16 %v4408
      %v4491 = vunpack.c.h.b16 %v4408
      %v4492 = vunpack.c.l.b16 %v4409
      %v4493 = vunpack.c.h.b16 %v4409
      %v4494 = vunpack.c.l.b16 %v4410
      %v4495 = vunpack.c.h.b16 %v4410
      %v4496 = vunpack.c.l.b16 %v4411
      %v4497 = vunpack.c.h.b16 %v4411
      %v4498 = vunpack.c.l.b16 %v4412
      %v4499 = vunpack.c.h.b16 %v4412
      %v4500 = vunpack.c.l.b16 %v4413
      %v4501 = vunpack.c.h.b16 %v4413
      %v4502 = vunpack.c.l.b16 %v4414
      %v4503 = vunpack.c.h.b16 %v4414
      %v4504 = vunpack.c.l.b16 %v4415
      %v4505 = vunpack.c.h.b16 %v4415
      %v4506 = vunpack.c.l.b16 %v4416
      %v4507 = vunpack.c.h.b16 %v4416
      %v4508 = vunpack.c.l.b16 %v4417
      %v4509 = vunpack.c.h.b16 %v4417
      %v4510 = vunpack.c.l.b16 %v4418
      %v4511 = vunpack.c.h.b16 %v4418
      %v4512 = vunpack.c.l.b16 %v4419
      %v4513 = vunpack.c.h.b16 %v4419
      %v4514 = vunpack.c.l.b16 %v4420
      %v4515 = vunpack.c.h.b16 %v4420
      %v4516 = vunpack.c.l.b16 %v4421
      %v4517 = vunpack.c.h.b16 %v4421
      %v4518 = vunpack.c.l.b16 %v4422
      %v4519 = vunpack.c.h.b16 %v4422
      %v4520 = vunpack.c.l.b16 %v4423
      %v4521 = vunpack.c.h.b16 %v4423
      %v4522 = vunpack.c.l.b16 %v4424
      %v4523 = vunpack.c.h.b16 %v4424
      %v4524 = vunpack.c.l.b16 %v4425
      %v4525 = vunpack.c.h.b16 %v4425
      %v4526 = vunpack.c.l.b16 %v4426
      %v4527 = vunpack.c.h.b16 %v4426
      %v4528 = vunpack.c.l.b16 %v4427
      %v4529 = vunpack.c.h.b16 %v4427
      %v4530 = vunpack.c.l.b16 %v4428
      %v4531 = vunpack.c.h.b16 %v4428
      %v4532 = vunpack.c.l.b16 %v4429
      %v4533 = vunpack.c.h.b16 %v4429
      %v4534 = vunpack.c.l.b16 %v4430
      %v4535 = vunpack.c.h.b16 %v4430
      %v4536 = vunpack.c.l.b16 %v4431
      %v4537 = vunpack.c.h.b16 %v4431
      %v4538 = vunpack.c.l.b16 %v4432
      %v4539 = vunpack.c.h.b16 %v4432
      %v4540 = vunpack.c.l.b16 %v4433
      %v4541 = vunpack.c.h.b16 %v4433
      %v4542 = vpack.c.b16 %v4480, %v4478
      %v4543 = vpack.c.b16 %v4481, %v4479
      %v4544 = vpack.c.b16 %v4484, %v4482
      %v4545 = vpack.c.b16 %v4485, %v4483
      %v4546 = vpack.c.b16 %v4488, %v4486
      %v4547 = vpack.c.b16 %v4489, %v4487
      %v4548 = vpack.c.b16 %v4492, %v4490
      %v4549 = vpack.c.b16 %v4493, %v4491
      %v4550 = vpack.c.b16 %v4496, %v4494
      %v4551 = vpack.c.b16 %v4497, %v4495
      %v4552 = vpack.c.b16 %v4500, %v4498
      %v4553 = vpack.c.b16 %v4501, %v4499
      %v4554 = vpack.c.b16 %v4504, %v4502
      %v4555 = vpack.c.b16 %v4505, %v4503
      %v4556 = vpack.c.b16 %v4508, %v4506
      %v4557 = vpack.c.b16 %v4509, %v4507
      %v4558 = vpack.c.b16 %v4512, %v4510
      %v4559 = vpack.c.b16 %v4513, %v4511
      %v4560 = vpack.c.b16 %v4516, %v4514
      %v4561 = vpack.c.b16 %v4517, %v4515
      %v4562 = vpack.c.b16 %v4520, %v4518
      %v4563 = vpack.c.b16 %v4521, %v4519
      %v4564 = vpack.c.b16 %v4524, %v4522
      %v4565 = vpack.c.b16 %v4525, %v4523
      %v4566 = vpack.c.b16 %v4528, %v4526
      %v4567 = vpack.c.b16 %v4529, %v4527
      %v4568 = vpack.c.b16 %v4532, %v4530
      %v4569 = vpack.c.b16 %v4533, %v4531
      %v4570 = vpack.c.b16 %v4536, %v4534
      %v4571 = vpack.c.b16 %v4537, %v4535
      %v4572 = vpack.c.b16 %v4540, %v4538
      %v4573 = vpack.c.b16 %v4541, %v4539
      %4606 = vmatprep.subr.bf16.mxu0 %v4557
      %4607 = vmatpush1.bf16.msra.mxu0 %v4556
      %4608 = vmatprep.subr.bf16.mxu0 %v4555
      %4609 = vmatpush1.bf16.msra.mxu0 %v4554
      %4610 = vmatprep.subr.bf16.mxu0 %v4553
      %4611 = vmatpush1.bf16.msra.mxu0 %v4552
      %4612 = vmatprep.subr.bf16.mxu0 %v4551
      %4613 = vmatpush1.bf16.msra.mxu0 %v4550
      %4614 = vmatprep.subr.bf16.mxu0 %v4549
      %4615 = vmatpush1.bf16.msra.mxu0 %v4548
      %4616 = vmatprep.subr.bf16.mxu0 %v4547
      %4617 = vmatpush1.bf16.msra.mxu0 %v4546
      %4618 = vmatprep.subr.bf16.mxu0 %v4545
      %4619 = vmatpush1.bf16.msra.mxu0 %v4544
      %4620 = vmatprep.subr.bf16.mxu0 %v4543
      %4621 = vmatpush1.bf16.msra.mxu0 %v4542
      %4622 = vmatprep.subr.bf16.mxu0 %v4573
      %4623 = vmatpush2.bf16.msra.mxu0 %v4572
      %4624 = vmatprep.subr.bf16.mxu0 %v4571
      %4625 = vmatpush2.bf16.msra.mxu0 %v4570
      %4626 = vmatprep.subr.bf16.mxu0 %v4569
      %4627 = vmatpush2.bf16.msra.mxu0 %v4568
      %4628 = vmatprep.subr.bf16.mxu0 %v4567
      %4629 = vmatpush2.bf16.msra.mxu0 %v4566
      %4630 = vmatprep.subr.bf16.mxu0 %v4565
      %4631 = vmatpush2.bf16.msra.mxu0 %v4564
      %4632 = vmatprep.subr.bf16.mxu0 %v4563
      %4633 = vmatpush2.bf16.msra.mxu0 %v4562
      %4634 = vmatprep.subr.bf16.mxu0 %v4561
      %4635 = vmatpush2.bf16.msra.mxu0 %v4560
      %4636 = vmatprep.subr.bf16.mxu0 %v4559
      %4637 = vmatpush2.bf16.msra.mxu0 %v4558
      %4638 = vmatprep.mubr.bf16.mxu0 %v4401
      %4639 = vmatmul.mubr.bf16.gmra.mxu0 %v4400
      %v4640 = vpop.f32.mrf.mxu0
      %v4641 = vadd.f32 %v4439, %v4640
      %v4642 = vpop.f32.mrf.mxu0
      %v4643 = vadd.f32 %v4443, %v4642
      %v4644 = vpop.f32.mrf.mxu0
      %v4645 = vadd.f32 %v4439, %v4644
      %v4646 = vpop.f32.mrf.mxu0
      %v4647 = vadd.f32 %v4443, %v4646
      %4648 = vdwg.mxu0
      %4649 = vst [vmem:[#allocation14] sm:$0xff] %v4641
      %4650 = vst [vmem:[#allocation14 + $0x8] sm:$0xff] %v4643
      %4651 = vst [vmem:[#allocation14 + $0x10] sm:$0xff] %v4645
      %4652 = vst [vmem:[#allocation14 + $0x18] sm:$0xff] %v4647
    $region53: #{tpu_custom_call.1} parent=1 // pred_fallthru
      _
    // Predicated region
    $region54: #{tpu_custom_call.1} parent=1 // pred_check
      _
    $region55: #{tpu_custom_call.1} parent=1 // pred_check_branch
      %4654 = sbr.rel (0) target = $region57
    $region56: #{tpu_custom_call.1} parent=1 // pred_region
      %s4656 = ssub.s32 512, 512
      %4657 = vsyncadd [#allocation7], %s4656
      %s4658 = sshll.u32 [#allocation14], 4
      %s4659 = int_to_ptr.vmem [resolvable:$true] %s4658
      %4664 = dma.vmem_to_hbm [thread:$0]  %s4659, 512, %s6, [#allocation7], 256, 256, 16
    $region57: #{tpu_custom_call.1} parent=1 // pred_fallthru
      _
    // Predicated region
    $region58: #{tpu_custom_call.1} parent=1 // pred_check
      _
    $region59: #{tpu_custom_call.1} parent=1 // pred_check_branch
      %4666 = sbr.rel (0) target = $region61
    $region60: #{tpu_custom_call.1} parent=1 // pred_region
      %4667 = dma.done [#allocation7], 512
    $region61: #{tpu_custom_call.1} parent=1 // pred_fallthru
      _
    %4668 = vsyncpa [#allocation6], 1
    %4669 = vsyncpa [#allocation9], 1
    %4670 = vsyncpa [#allocation12], 1
    %4671 = vsyncpa [#allocation7], 1

</llo_original>
